<compile_context>
chip_gen: v7x
topology: tpu7x:2x2x1
jax: 0.10.0
libtpu: 0.0.40
codegen_flags: <defaults>
</compile_context>

<pallas_src>
import jax
import jax.numpy as jnp
from jax.experimental import pallas as pl
from jax.experimental.pallas import tpu as pltpu

EPS = 1e-5
LATENT_DIM = 64
DIMS = [18, 128, 256, 512, 512, 512]              # enc_net widths (input first)
HIDDEN = DIMS[1:]                                 # [128, 256, 512, 512, 512]
BN_TOTAL = sum(HIDDEN)                            # 1920 = 15 * 128 (lane aligned)
BN_OFFSETS = [sum(HIDDEN[:i]) for i in range(len(HIDDEN))]  # 0,128,384,896,1408


def _make_kernel(latent_dim):
    def encoder_att_kernel(x_ref, w1, w2, w3, w4, w5, w6, p_ref, o_ref):
        # p_ref layout (f32, one DMA):
        #   row 0: [gamma1 | gamma2 | ... | gamma5]   (1920 lanes)
        #   row 1: [beta1  | beta2  | ... | beta5 ]
        #   row 2: [b6 (latent_dim) | zero pad      ]
        def lin_bn_relu(h_bf16, w_ref, off, f):
            # bf16 x bf16 -> f32 accumulation on the MXU.  Hidden Linear bias
            # dropped: exactly cancelled by the BN mean subtraction.
            z = jnp.dot(h_bf16, w_ref[...], preferred_element_type=jnp.float32)
            g = p_ref[0:1, off:off + f]           # static lane-aligned views
            be = p_ref[1:2, off:off + f]
            # BatchNorm1d, training-mode batch statistics (biased variance),
            # folded into a single per-feature scale/shift (f32 math).
            mean = jnp.mean(z, axis=0, keepdims=True)
            var = jnp.mean(jnp.square(z - mean), axis=0, keepdims=True)
            scale = g * jax.lax.rsqrt(var + EPS)  # rsqrt -> EUP slot
            shift = be - mean * scale
            # ReLU, emitted directly in bf16 for the next matmul.
            return jnp.maximum(z * scale + shift, 0.0).astype(jnp.bfloat16)

        # x.float(); 0/1 attribute features are exact in bf16.
        h = x_ref[...].astype(jnp.bfloat16)
        for w_ref, off, f in zip((w1, w2, w3, w4, w5), BN_OFFSETS, HIDDEN):
            h = lin_bn_relu(h, w_ref, off, f)
        # mu_lin: Linear(512, latent_dim) -- bias kept (no BN after it).
        b6 = p_ref[2:3, 0:latent_dim]
        o_ref[...] = (jnp.dot(h, w6[...], preferred_element_type=jnp.float32)
                      + b6)

    return encoder_att_kernel


def init_params(key, latent_dim=LATENT_DIM):
    """PyTorch-style init: W ~ U(-1/sqrt(fan_in), +1/sqrt(fan_in)).
    Weights stored transposed vs. PyTorch, i.e. (in, out), in bf16.
    Hidden-layer Linear biases omitted (cancelled by training-mode BN);
    mu_lin bias kept.  BN: gamma=1, beta=0 (f32)."""
    sizes = DIMS + [latent_dim]
    n_layers = len(sizes) - 1
    keys = jax.random.split(key, n_layers + 1)
    weights = []
    for i in range(n_layers):
        fin, fout = sizes[i], sizes[i + 1]
        bound = float(fin) ** -0.5
        w = jax.random.uniform(keys[i], (fin, fout), jnp.float32, -bound, bound)
        weights.append(w.astype(jnp.bfloat16))
    bound = float(sizes[-2]) ** -0.5
    b6 = jax.random.uniform(keys[-1], (1, latent_dim), jnp.float32, -bound, bound)
    bn = [(jnp.ones((1, f), jnp.float32), jnp.zeros((1, f), jnp.float32))
          for f in HIDDEN]  # 5 BatchNorm layers
    return weights, b6, bn


def pack_bn_params(bn, b6, latent_dim=LATENT_DIM):
    """Pack gammas / betas / b6 into one (3, 1920) f32 slab -> single DMA."""
    slab = jnp.zeros((3, BN_TOTAL), jnp.float32)
    for (g, be), off, f in zip(bn, BN_OFFSETS, HIDDEN):
        slab = slab.at[0, off:off + f].set(g.reshape(f))
        slab = slab.at[1, off:off + f].set(be.reshape(f))
    slab = slab.at[2, :latent_dim].set(b6.reshape(latent_dim))
    return slab


def encoder_att_forward(x, weights, b6, bn, latent_dim=LATENT_DIM):
    B = x.shape[0]
    slab = pack_bn_params(bn, b6, latent_dim)
    flat_args = [x] + list(weights) + [slab]

    vmem_spec = pl.BlockSpec(memory_space=pltpu.MemorySpace.VMEM)
    in_specs = [vmem_spec] * len(flat_args)

    # Advisory cost estimate so XLA can overlap the weight DMA with neighbours.
    sizes = DIMS + [latent_dim]
    flops = 2 * B * sum(sizes[i] * sizes[i + 1] for i in range(len(sizes) - 1))
    transcendentals = sum(HIDDEN)  # one rsqrt per BN feature
    bytes_accessed = (sum(int(w.size) * 2 for w in weights)   # bf16 weights
                      + int(x.size) * 4                       # input
                      + int(slab.size) * 4                    # packed BN slab
                      + B * latent_dim * 4)                   # output
    ce = pl.CostEstimate(flops=flops, transcendentals=transcendentals,
                         bytes_accessed=bytes_accessed)

    return pl.pallas_call(
        _make_kernel(latent_dim),
        out_shape=jax.ShapeDtypeStruct((B, latent_dim), jnp.float32),
        in_specs=in_specs,
        out_specs=vmem_spec,
        compiler_params=pltpu.CompilerParams(vmem_limit_bytes=4 << 20),
        cost_estimate=ce,
    )(*flat_args)


def encoder_att_reference(x, weights, b6, bn):
    """Pure-JAX reference mirroring the kernel numerics (bf16 matmul inputs,
    f32 accumulation, folded BN, bf16 inter-layer activations).  Mathematically
    equivalent to the PyTorch module's training-mode forward (hidden Linear
    biases cancelled by BN)."""
    h = x.astype(jnp.bfloat16)
    for i in range(5):
        g, be = bn[i]
        z = jnp.dot(h, weights[i], preferred_element_type=jnp.float32)
        mean = jnp.mean(z, axis=0, keepdims=True)
        var = jnp.mean(jnp.square(z - mean), axis=0, keepdims=True)
        scale = g * jax.lax.rsqrt(var + EPS)
        shift = be - mean * scale
        h = jnp.maximum(z * scale + shift, 0.0).astype(jnp.bfloat16)
    return jnp.dot(h, weights[5], preferred_element_type=jnp.float32) + b6


if __name__ == "__main__":
    key = jax.random.PRNGKey(0)
    kx, kp = jax.random.split(key)

    B = 8
    # 18 binary-ish attribute features, cast to float (module does x.float()).
    x = (jax.random.uniform(kx, (B, 18)) > 0.5).astype(jnp.float32)

    weights, b6, bn = init_params(kp)

    out = encoder_att_forward(x, weights, b6, bn)
    out = jax.block_until_ready(out)

    ref = encoder_att_reference(x, weights, b6, bn)
    assert out.shape == (B, LATENT_DIM)
    assert jnp.allclose(out, ref, atol=2e-3, rtol=2e-3), "mismatch vs reference"

    print("KERNEL_OK")
</pallas_src>

<mosaic_0001>
module attributes {stable_mosaic.version = 11 : i64} {
  func.func @encoder_att_kernel(%arg0: memref<8x18xf32, #tpu.memory_space<vmem>>, %arg1: memref<18x128xbf16, #tpu.memory_space<vmem>>, %arg2: memref<128x256xbf16, #tpu.memory_space<vmem>>, %arg3: memref<256x512xbf16, #tpu.memory_space<vmem>>, %arg4: memref<512x512xbf16, #tpu.memory_space<vmem>>, %arg5: memref<512x512xbf16, #tpu.memory_space<vmem>>, %arg6: memref<512x64xbf16, #tpu.memory_space<vmem>>, %arg7: memref<3x1920xf32, #tpu.memory_space<vmem>>, %arg8: memref<8x64xf32, #tpu.memory_space<vmem>>) attributes {dimension_semantics = [], scalar_prefetch = 0 : i64, scratch_operands = 0 : i64, tpu.core_type = #tpu.core_type<tc>} {
    %c0 = arith.constant 0 : index
    %c0_0 = arith.constant 0 : index
    %0 = vector.load %arg0[%c0, %c0_0] : memref<8x18xf32, #tpu.memory_space<vmem>>, vector<8x18xf32>
    %1 = arith.truncf %0 : vector<8x18xf32> to vector<8x18xbf16>
    %c0_1 = arith.constant 0 : index
    %c0_2 = arith.constant 0 : index
    %2 = vector.load %arg1[%c0_1, %c0_2] : memref<18x128xbf16, #tpu.memory_space<vmem>>, vector<18x128xbf16>
    %cst = arith.constant dense<0.000000e+00> : vector<8x128xf32>
    %3 = tpu.matmul %1, %2, %cst {dimension_numbers = #tpu.dot_dimension_numbers<[1], [0], [0], [1], [0, 0, 1, 1], [], []>} : vector<8x18xbf16>, vector<18x128xbf16>, vector<8x128xf32> -> vector<8x128xf32>
    %c0_3 = arith.constant 0 : index
    %c0_4 = arith.constant 0 : index
    %4 = vector.load %arg7[%c0_3, %c0_4] : memref<3x1920xf32, #tpu.memory_space<vmem>>, vector<1x128xf32>
    %c1 = arith.constant 1 : index
    %c0_5 = arith.constant 0 : index
    %5 = vector.load %arg7[%c1, %c0_5] : memref<3x1920xf32, #tpu.memory_space<vmem>>, vector<1x128xf32>
    %cst_6 = arith.constant dense<0.000000e+00> : vector<128xf32>
    %6 = vector.multi_reduction <add>, %3, %cst_6 [0] : vector<8x128xf32> to vector<128xf32>
    %7 = vector.shape_cast %6 : vector<128xf32> to vector<1x128xf32>
    %cst_7 = arith.constant 8.000000e+00 : f32
    %8 = vector.broadcast %cst_7 : f32 to vector<1x128xf32>
    %9 = arith.divf %7, %8 : vector<1x128xf32>
    %10 = vector.broadcast %9 : vector<1x128xf32> to vector<8x128xf32>
    %11 = arith.subf %3, %10 : vector<8x128xf32>
    %12 = arith.mulf %11, %11 : vector<8x128xf32>
    %cst_8 = arith.constant dense<0.000000e+00> : vector<128xf32>
    %13 = vector.multi_reduction <add>, %12, %cst_8 [0] : vector<8x128xf32> to vector<128xf32>
    %14 = vector.shape_cast %13 : vector<128xf32> to vector<1x128xf32>
    %cst_9 = arith.constant 8.000000e+00 : f32
    %15 = vector.broadcast %cst_9 : f32 to vector<1x128xf32>
    %16 = arith.divf %14, %15 : vector<1x128xf32>
    %cst_10 = arith.constant 9.99999974E-6 : f32
    %17 = vector.broadcast %cst_10 : f32 to vector<1x128xf32>
    %18 = arith.addf %16, %17 : vector<1x128xf32>
    %19 = math.rsqrt %18 : vector<1x128xf32>
    %20 = arith.mulf %4, %19 : vector<1x128xf32>
    %21 = arith.mulf %9, %20 : vector<1x128xf32>
    %22 = arith.subf %5, %21 : vector<1x128xf32>
    %23 = vector.broadcast %20 : vector<1x128xf32> to vector<8x128xf32>
    %24 = arith.mulf %3, %23 : vector<8x128xf32>
    %25 = vector.broadcast %22 : vector<1x128xf32> to vector<8x128xf32>
    %26 = arith.addf %24, %25 : vector<8x128xf32>
    %cst_11 = arith.constant 0.000000e+00 : f32
    %27 = vector.broadcast %cst_11 : f32 to vector<8x128xf32>
    %28 = arith.maximumf %26, %27 : vector<8x128xf32>
    %29 = arith.truncf %28 : vector<8x128xf32> to vector<8x128xbf16>
    %c0_12 = arith.constant 0 : index
    %c0_13 = arith.constant 0 : index
    %30 = vector.load %arg2[%c0_12, %c0_13] : memref<128x256xbf16, #tpu.memory_space<vmem>>, vector<128x256xbf16>
    %cst_14 = arith.constant dense<0.000000e+00> : vector<8x256xf32>
    %31 = tpu.matmul %29, %30, %cst_14 {dimension_numbers = #tpu.dot_dimension_numbers<[1], [0], [0], [1], [0, 0, 1, 1], [], []>} : vector<8x128xbf16>, vector<128x256xbf16>, vector<8x256xf32> -> vector<8x256xf32>
    %c0_15 = arith.constant 0 : index
    %c128 = arith.constant 128 : index
    %32 = vector.load %arg7[%c0_15, %c128] : memref<3x1920xf32, #tpu.memory_space<vmem>>, vector<1x256xf32>
    %c1_16 = arith.constant 1 : index
    %c128_17 = arith.constant 128 : index
    %33 = vector.load %arg7[%c1_16, %c128_17] : memref<3x1920xf32, #tpu.memory_space<vmem>>, vector<1x256xf32>
    %cst_18 = arith.constant dense<0.000000e+00> : vector<256xf32>
    %34 = vector.multi_reduction <add>, %31, %cst_18 [0] : vector<8x256xf32> to vector<256xf32>
    %35 = vector.shape_cast %34 : vector<256xf32> to vector<1x256xf32>
    %cst_19 = arith.constant 8.000000e+00 : f32
    %36 = vector.broadcast %cst_19 : f32 to vector<1x256xf32>
    %37 = arith.divf %35, %36 : vector<1x256xf32>
    %38 = vector.broadcast %37 : vector<1x256xf32> to vector<8x256xf32>
    %39 = arith.subf %31, %38 : vector<8x256xf32>
    %40 = arith.mulf %39, %39 : vector<8x256xf32>
    %cst_20 = arith.constant dense<0.000000e+00> : vector<256xf32>
    %41 = vector.multi_reduction <add>, %40, %cst_20 [0] : vector<8x256xf32> to vector<256xf32>
    %42 = vector.shape_cast %41 : vector<256xf32> to vector<1x256xf32>
    %cst_21 = arith.constant 8.000000e+00 : f32
    %43 = vector.broadcast %cst_21 : f32 to vector<1x256xf32>
    %44 = arith.divf %42, %43 : vector<1x256xf32>
    %cst_22 = arith.constant 9.99999974E-6 : f32
    %45 = vector.broadcast %cst_22 : f32 to vector<1x256xf32>
    %46 = arith.addf %44, %45 : vector<1x256xf32>
    %47 = math.rsqrt %46 : vector<1x256xf32>
    %48 = arith.mulf %32, %47 : vector<1x256xf32>
    %49 = arith.mulf %37, %48 : vector<1x256xf32>
    %50 = arith.subf %33, %49 : vector<1x256xf32>
    %51 = vector.broadcast %48 : vector<1x256xf32> to vector<8x256xf32>
    %52 = arith.mulf %31, %51 : vector<8x256xf32>
    %53 = vector.broadcast %50 : vector<1x256xf32> to vector<8x256xf32>
    %54 = arith.addf %52, %53 : vector<8x256xf32>
    %cst_23 = arith.constant 0.000000e+00 : f32
    %55 = vector.broadcast %cst_23 : f32 to vector<8x256xf32>
    %56 = arith.maximumf %54, %55 : vector<8x256xf32>
    %57 = arith.truncf %56 : vector<8x256xf32> to vector<8x256xbf16>
    %c0_24 = arith.constant 0 : index
    %c0_25 = arith.constant 0 : index
    %58 = vector.load %arg3[%c0_24, %c0_25] : memref<256x512xbf16, #tpu.memory_space<vmem>>, vector<256x512xbf16>
    %cst_26 = arith.constant dense<0.000000e+00> : vector<8x512xf32>
    %59 = tpu.matmul %57, %58, %cst_26 {dimension_numbers = #tpu.dot_dimension_numbers<[1], [0], [0], [1], [0, 0, 1, 1], [], []>} : vector<8x256xbf16>, vector<256x512xbf16>, vector<8x512xf32> -> vector<8x512xf32>
    %c0_27 = arith.constant 0 : index
    %c384 = arith.constant 384 : index
    %60 = vector.load %arg7[%c0_27, %c384] : memref<3x1920xf32, #tpu.memory_space<vmem>>, vector<1x512xf32>
    %c1_28 = arith.constant 1 : index
    %c384_29 = arith.constant 384 : index
    %61 = vector.load %arg7[%c1_28, %c384_29] : memref<3x1920xf32, #tpu.memory_space<vmem>>, vector<1x512xf32>
    %cst_30 = arith.constant dense<0.000000e+00> : vector<512xf32>
    %62 = vector.multi_reduction <add>, %59, %cst_30 [0] : vector<8x512xf32> to vector<512xf32>
    %63 = vector.shape_cast %62 : vector<512xf32> to vector<1x512xf32>
    %cst_31 = arith.constant 8.000000e+00 : f32
    %64 = vector.broadcast %cst_31 : f32 to vector<1x512xf32>
    %65 = arith.divf %63, %64 : vector<1x512xf32>
    %66 = vector.broadcast %65 : vector<1x512xf32> to vector<8x512xf32>
    %67 = arith.subf %59, %66 : vector<8x512xf32>
    %68 = arith.mulf %67, %67 : vector<8x512xf32>
    %cst_32 = arith.constant dense<0.000000e+00> : vector<512xf32>
    %69 = vector.multi_reduction <add>, %68, %cst_32 [0] : vector<8x512xf32> to vector<512xf32>
    %70 = vector.shape_cast %69 : vector<512xf32> to vector<1x512xf32>
    %cst_33 = arith.constant 8.000000e+00 : f32
    %71 = vector.broadcast %cst_33 : f32 to vector<1x512xf32>
    %72 = arith.divf %70, %71 : vector<1x512xf32>
    %cst_34 = arith.constant 9.99999974E-6 : f32
    %73 = vector.broadcast %cst_34 : f32 to vector<1x512xf32>
    %74 = arith.addf %72, %73 : vector<1x512xf32>
    %75 = math.rsqrt %74 : vector<1x512xf32>
    %76 = arith.mulf %60, %75 : vector<1x512xf32>
    %77 = arith.mulf %65, %76 : vector<1x512xf32>
    %78 = arith.subf %61, %77 : vector<1x512xf32>
    %79 = vector.broadcast %76 : vector<1x512xf32> to vector<8x512xf32>
    %80 = arith.mulf %59, %79 : vector<8x512xf32>
    %81 = vector.broadcast %78 : vector<1x512xf32> to vector<8x512xf32>
    %82 = arith.addf %80, %81 : vector<8x512xf32>
    %cst_35 = arith.constant 0.000000e+00 : f32
    %83 = vector.broadcast %cst_35 : f32 to vector<8x512xf32>
    %84 = arith.maximumf %82, %83 : vector<8x512xf32>
    %85 = arith.truncf %84 : vector<8x512xf32> to vector<8x512xbf16>
    %c0_36 = arith.constant 0 : index
    %c0_37 = arith.constant 0 : index
    %86 = vector.load %arg4[%c0_36, %c0_37] : memref<512x512xbf16, #tpu.memory_space<vmem>>, vector<512x512xbf16>
    %cst_38 = arith.constant dense<0.000000e+00> : vector<8x512xf32>
    %87 = tpu.matmul %85, %86, %cst_38 {dimension_numbers = #tpu.dot_dimension_numbers<[1], [0], [0], [1], [0, 0, 1, 1], [], []>} : vector<8x512xbf16>, vector<512x512xbf16>, vector<8x512xf32> -> vector<8x512xf32>
    %c0_39 = arith.constant 0 : index
    %c896 = arith.constant 896 : index
    %88 = vector.load %arg7[%c0_39, %c896] : memref<3x1920xf32, #tpu.memory_space<vmem>>, vector<1x512xf32>
    %c1_40 = arith.constant 1 : index
    %c896_41 = arith.constant 896 : index
    %89 = vector.load %arg7[%c1_40, %c896_41] : memref<3x1920xf32, #tpu.memory_space<vmem>>, vector<1x512xf32>
    %cst_42 = arith.constant dense<0.000000e+00> : vector<512xf32>
    %90 = vector.multi_reduction <add>, %87, %cst_42 [0] : vector<8x512xf32> to vector<512xf32>
    %91 = vector.shape_cast %90 : vector<512xf32> to vector<1x512xf32>
    %cst_43 = arith.constant 8.000000e+00 : f32
    %92 = vector.broadcast %cst_43 : f32 to vector<1x512xf32>
    %93 = arith.divf %91, %92 : vector<1x512xf32>
    %94 = vector.broadcast %93 : vector<1x512xf32> to vector<8x512xf32>
    %95 = arith.subf %87, %94 : vector<8x512xf32>
    %96 = arith.mulf %95, %95 : vector<8x512xf32>
    %cst_44 = arith.constant dense<0.000000e+00> : vector<512xf32>
    %97 = vector.multi_reduction <add>, %96, %cst_44 [0] : vector<8x512xf32> to vector<512xf32>
    %98 = vector.shape_cast %97 : vector<512xf32> to vector<1x512xf32>
    %cst_45 = arith.constant 8.000000e+00 : f32
    %99 = vector.broadcast %cst_45 : f32 to vector<1x512xf32>
    %100 = arith.divf %98, %99 : vector<1x512xf32>
    %cst_46 = arith.constant 9.99999974E-6 : f32
    %101 = vector.broadcast %cst_46 : f32 to vector<1x512xf32>
    %102 = arith.addf %100, %101 : vector<1x512xf32>
    %103 = math.rsqrt %102 : vector<1x512xf32>
    %104 = arith.mulf %88, %103 : vector<1x512xf32>
    %105 = arith.mulf %93, %104 : vector<1x512xf32>
    %106 = arith.subf %89, %105 : vector<1x512xf32>
    %107 = vector.broadcast %104 : vector<1x512xf32> to vector<8x512xf32>
    %108 = arith.mulf %87, %107 : vector<8x512xf32>
    %109 = vector.broadcast %106 : vector<1x512xf32> to vector<8x512xf32>
    %110 = arith.addf %108, %109 : vector<8x512xf32>
    %cst_47 = arith.constant 0.000000e+00 : f32
    %111 = vector.broadcast %cst_47 : f32 to vector<8x512xf32>
    %112 = arith.maximumf %110, %111 : vector<8x512xf32>
    %113 = arith.truncf %112 : vector<8x512xf32> to vector<8x512xbf16>
    %c0_48 = arith.constant 0 : index
    %c0_49 = arith.constant 0 : index
    %114 = vector.load %arg5[%c0_48, %c0_49] : memref<512x512xbf16, #tpu.memory_space<vmem>>, vector<512x512xbf16>
    %cst_50 = arith.constant dense<0.000000e+00> : vector<8x512xf32>
    %115 = tpu.matmul %113, %114, %cst_50 {dimension_numbers = #tpu.dot_dimension_numbers<[1], [0], [0], [1], [0, 0, 1, 1], [], []>} : vector<8x512xbf16>, vector<512x512xbf16>, vector<8x512xf32> -> vector<8x512xf32>
    %c0_51 = arith.constant 0 : index
    %c1408 = arith.constant 1408 : index
    %116 = vector.load %arg7[%c0_51, %c1408] : memref<3x1920xf32, #tpu.memory_space<vmem>>, vector<1x512xf32>
    %c1_52 = arith.constant 1 : index
    %c1408_53 = arith.constant 1408 : index
    %117 = vector.load %arg7[%c1_52, %c1408_53] : memref<3x1920xf32, #tpu.memory_space<vmem>>, vector<1x512xf32>
    %cst_54 = arith.constant dense<0.000000e+00> : vector<512xf32>
    %118 = vector.multi_reduction <add>, %115, %cst_54 [0] : vector<8x512xf32> to vector<512xf32>
    %119 = vector.shape_cast %118 : vector<512xf32> to vector<1x512xf32>
    %cst_55 = arith.constant 8.000000e+00 : f32
    %120 = vector.broadcast %cst_55 : f32 to vector<1x512xf32>
    %121 = arith.divf %119, %120 : vector<1x512xf32>
    %122 = vector.broadcast %121 : vector<1x512xf32> to vector<8x512xf32>
    %123 = arith.subf %115, %122 : vector<8x512xf32>
    %124 = arith.mulf %123, %123 : vector<8x512xf32>
    %cst_56 = arith.constant dense<0.000000e+00> : vector<512xf32>
    %125 = vector.multi_reduction <add>, %124, %cst_56 [0] : vector<8x512xf32> to vector<512xf32>
    %126 = vector.shape_cast %125 : vector<512xf32> to vector<1x512xf32>
    %cst_57 = arith.constant 8.000000e+00 : f32
    %127 = vector.broadcast %cst_57 : f32 to vector<1x512xf32>
    %128 = arith.divf %126, %127 : vector<1x512xf32>
    %cst_58 = arith.constant 9.99999974E-6 : f32
    %129 = vector.broadcast %cst_58 : f32 to vector<1x512xf32>
    %130 = arith.addf %128, %129 : vector<1x512xf32>
    %131 = math.rsqrt %130 : vector<1x512xf32>
    %132 = arith.mulf %116, %131 : vector<1x512xf32>
    %133 = arith.mulf %121, %132 : vector<1x512xf32>
    %134 = arith.subf %117, %133 : vector<1x512xf32>
    %135 = vector.broadcast %132 : vector<1x512xf32> to vector<8x512xf32>
    %136 = arith.mulf %115, %135 : vector<8x512xf32>
    %137 = vector.broadcast %134 : vector<1x512xf32> to vector<8x512xf32>
    %138 = arith.addf %136, %137 : vector<8x512xf32>
    %cst_59 = arith.constant 0.000000e+00 : f32
    %139 = vector.broadcast %cst_59 : f32 to vector<8x512xf32>
    %140 = arith.maximumf %138, %139 : vector<8x512xf32>
    %141 = arith.truncf %140 : vector<8x512xf32> to vector<8x512xbf16>
    %c2 = arith.constant 2 : index
    %c0_60 = arith.constant 0 : index
    %142 = vector.load %arg7[%c2, %c0_60] : memref<3x1920xf32, #tpu.memory_space<vmem>>, vector<1x64xf32>
    %c0_61 = arith.constant 0 : index
    %c0_62 = arith.constant 0 : index
    %143 = vector.load %arg6[%c0_61, %c0_62] : memref<512x64xbf16, #tpu.memory_space<vmem>>, vector<512x64xbf16>
    %cst_63 = arith.constant dense<0.000000e+00> : vector<8x64xf32>
    %144 = tpu.matmul %141, %143, %cst_63 {dimension_numbers = #tpu.dot_dimension_numbers<[1], [0], [0], [1], [0, 0, 1, 1], [], []>} : vector<8x512xbf16>, vector<512x64xbf16>, vector<8x64xf32> -> vector<8x64xf32>
    %145 = vector.broadcast %142 : vector<1x64xf32> to vector<8x64xf32>
    %146 = arith.addf %144, %145 : vector<8x64xf32>
    %c0_64 = arith.constant 0 : index
    %c0_65 = arith.constant 0 : index
    %147 = vector.load %arg8[%c0_64, %c0_65] : memref<8x64xf32, #tpu.memory_space<vmem>>, vector<8x64xf32>
    tpu.vector_store %arg8[%c0_64, %c0_65], %146 {strides = array<i32>} : memref<8x64xf32, #tpu.memory_space<vmem>>, vector<8x64xf32>,
    return
  }
}

</mosaic_0001>

<llo_original>
// kernel: tpu_custom_call.1
$region0: #{tpu_custom_call.1}
  #allocation0 [shape = 'u32[]', space=smem, size = 0x4, offset = 0x4, fixed_abs, tag = 'smem constant byte address 0x4 - core index']
  #allocation1 [shape = 'u32[144,128]{1,0:T(1,128)}', space=vmem, size = 0x12000, scoped, tag = 'internal scratch']
  %s0 = inlined_call_operand.vmem [shape: f32[8,18], index: 0, kind: input, shape index: {}]
  %s1 = inlined_call_operand.vmem [shape: bf16[18,128], index: 1, kind: input, shape index: {}]
  %s2 = inlined_call_operand.vmem [shape: bf16[128,256], index: 2, kind: input, shape index: {}]
  %s3 = inlined_call_operand.hbm [shape: bf16[256,512], index: 3, kind: input, shape index: {}]
  %s4 = inlined_call_operand.hbm [shape: bf16[512,512], index: 4, kind: input, shape index: {}]
  %s5 = inlined_call_operand.hbm [shape: bf16[512,512], index: 5, kind: input, shape index: {}]
  %s6 = inlined_call_operand.vmem [shape: bf16[512,64], index: 6, kind: input, shape index: {}]
  %s7 = inlined_call_operand.vmem [shape: f32[3,1920], index: 7, kind: input, shape index: {}]
  %s8 = inlined_call_operand.hbm [shape: f32[8,64], index: 8, kind: output, shape index: {}]
  %s9 = sld [smem:[#allocation0]]
  $region54: #{tpu_custom_call.1} parent=0
    _
  %s11 = ssub.s32 1, %s9
  %s12 = scalar_select 0, %s11, %s9
  $region1: #{tpu_custom_call.1} parent=0
    #allocation2 [shape = 'u8[262144]{0}', space=vmem, size = 0x40000, scoped, tag = 'input window, operand 3, single buffered']
    #allocation3 [shape = 's32[1]{0}', space=sflag, size = 0x4, scoped, tag = 'scoped memory for tpu_custom_call.1']
    #allocation4 [shape = 's32[1]{0}', space=sflag, size = 0x4, scoped, tag = 'scoped memory for tpu_custom_call.1']
    #allocation5 [shape = 'u8[524288]{0}', space=vmem, size = 0x80000, scoped, tag = 'input window, operand 4, single buffered']
    #allocation6 [shape = 's32[1]{0}', space=sflag, size = 0x4, scoped, tag = 'scoped memory for tpu_custom_call.1']
    #allocation7 [shape = 'u8[524288]{0}', space=vmem, size = 0x80000, scoped, tag = 'input window, operand 5, single buffered']
    #allocation8 [shape = 'u8[4096]{0}', space=vmem, size = 0x1000, scoped, tag = 'output window, operand 0, single buffered']
    %13 = vsyncpa [#allocation3], 0
    %14 = vsyncpa [#allocation6], 0
    %15 = vsyncpa [#allocation4], 0
    // Predicated region
    $region2: #{tpu_custom_call.1} parent=1 // pred_check
      _
    $region3: #{tpu_custom_call.1} parent=1 // pred_check_branch
      %17 = sbr.rel (0) target = $region5
    $region4: #{tpu_custom_call.1} parent=1 // pred_region
      _
    $region5: #{tpu_custom_call.1} parent=1 // pred_fallthru
      _
    // Predicated region
    $region6: #{tpu_custom_call.1} parent=1 // pred_check
      _
    $region7: #{tpu_custom_call.1} parent=1 // pred_check_branch
      %19 = sbr.rel (0) target = $region9
    $region8: #{tpu_custom_call.1} parent=1 // pred_region
      _
    $region9: #{tpu_custom_call.1} parent=1 // pred_fallthru
      _
    // Predicated region
    $region10: #{tpu_custom_call.1} parent=1 // pred_check
      _
    $region11: #{tpu_custom_call.1} parent=1 // pred_check_branch
      %21 = sbr.rel (0) target = $region13
    $region12: #{tpu_custom_call.1} parent=1 // pred_region
      _
    $region13: #{tpu_custom_call.1} parent=1 // pred_fallthru
      _
    // Predicated region
    $region14: #{tpu_custom_call.1} parent=1 // pred_check
      _
    $region15: #{tpu_custom_call.1} parent=1 // pred_check_branch
      %23 = sbr.rel (0) target = $region17
    $region16: #{tpu_custom_call.1} parent=1 // pred_region
      %s25 = ssub.s32 8192, 8192
      %26 = vsyncadd [#allocation3], %s25
      %s27 = sshll.u32 [#allocation2], 4
      %s28 = int_to_ptr.vmem [resolvable:$true] %s27
      %33 = dma.hbm_to_vmem [thread:$0]  %s3, 8192, %s28, [#allocation3], 256, 256, 16
    $region17: #{tpu_custom_call.1} parent=1 // pred_fallthru
      _
    // Predicated region
    $region18: #{tpu_custom_call.1} parent=1 // pred_check
      _
    $region19: #{tpu_custom_call.1} parent=1 // pred_check_branch
      %35 = sbr.rel (0) target = $region21
    $region20: #{tpu_custom_call.1} parent=1 // pred_region
      %s37 = ssub.s32 16384, 16384
      %38 = vsyncadd [#allocation6], %s37
      %s39 = sshll.u32 [#allocation5], 4
      %s40 = int_to_ptr.vmem [resolvable:$true] %s39
      %45 = dma.hbm_to_vmem [thread:$0]  %s4, 16384, %s40, [#allocation6], 256, 256, 16
    $region21: #{tpu_custom_call.1} parent=1 // pred_fallthru
      _
    // Predicated region
    $region22: #{tpu_custom_call.1} parent=1 // pred_check
      _
    $region23: #{tpu_custom_call.1} parent=1 // pred_check_branch
      %47 = sbr.rel (0) target = $region25
    $region24: #{tpu_custom_call.1} parent=1 // pred_region
      %s49 = ssub.s32 16384, 16384
      %50 = vsyncadd [#allocation6], %s49
      %s51 = sshll.u32 [#allocation7], 4
      %s52 = int_to_ptr.vmem [resolvable:$true] %s51
      %57 = dma.hbm_to_vmem [thread:$0]  %s5, 16384, %s52, [#allocation6], 256, 256, 16
    $region25: #{tpu_custom_call.1} parent=1 // pred_fallthru
      _
    // Predicated region
    $region26: #{tpu_custom_call.1} parent=1 // pred_check
      _
    $region27: #{tpu_custom_call.1} parent=1 // pred_check_branch
      %59 = sbr.rel (0) target = $region29
    $region28: #{tpu_custom_call.1} parent=1 // pred_region
      _
    $region29: #{tpu_custom_call.1} parent=1 // pred_fallthru
      _
    // Predicated region
    $region30: #{tpu_custom_call.1} parent=1 // pred_check
      _
    $region31: #{tpu_custom_call.1} parent=1 // pred_check_branch
      %61 = sbr.rel (0) target = $region33
    $region32: #{tpu_custom_call.1} parent=1 // pred_region
      _
    $region33: #{tpu_custom_call.1} parent=1 // pred_fallthru
      _
    // Predicated region
    $region34: #{tpu_custom_call.1} parent=1 // pred_check
      _
    $region35: #{tpu_custom_call.1} parent=1 // pred_check_branch
      %63 = sbr.rel (0) target = $region37
    $region36: #{tpu_custom_call.1} parent=1 // pred_region
      %64 = dma.done [#allocation3], 8192
    $region37: #{tpu_custom_call.1} parent=1 // pred_fallthru
      _
    // Predicated region
    $region38: #{tpu_custom_call.1} parent=1 // pred_check
      _
    $region39: #{tpu_custom_call.1} parent=1 // pred_check_branch
      %66 = sbr.rel (0) target = $region41
    $region40: #{tpu_custom_call.1} parent=1 // pred_region
      %67 = dma.done [#allocation6], 16384
    $region41: #{tpu_custom_call.1} parent=1 // pred_fallthru
      _
    // Predicated region
    $region42: #{tpu_custom_call.1} parent=1 // pred_check
      _
    $region43: #{tpu_custom_call.1} parent=1 // pred_check_branch
      %69 = sbr.rel (0) target = $region45
    $region44: #{tpu_custom_call.1} parent=1 // pred_region
      %70 = dma.done [#allocation6], 16384
    $region45: #{tpu_custom_call.1} parent=1 // pred_fallthru
      _
    %v72 = vld [vmem:[%s0] sm:$0xff]
    %v73 = vpack.c.bf16 %v72, %v72
    %v74 = vld [vmem:[%s1] sm:$0xf]
    %v75 = vld [vmem:[%s1 + $0x4] sm:$0xf]
    %v76 = vld [vmem:[%s1 + $0x8] sm:$0x1]
    %v80 = vunpack.c.l.b16 %v74
    %v81 = vunpack.c.l.b16 %v75
    %v82 = vunpack.c.l.b16 %v76
    %v83 = vpack.c.b16 %v81, %v80
    %v84 = vpack.c.b16 %v82, %v82
    %vm86 = vcmask 146432
    %v88 = vsel %vm86, %v73, 0
    %vm90 = vcmask 1040384
    %v92 = vsel %vm90, %v84, 0
    %94 = vmatprep.subr.bf16.mxu0 0
    %95 = vmatpush1.bf16.msra.mxu0 %v83
    %96 = vmatprep.subr.bf16.mxu0 0
    %97 = vmatpush1.bf16.msra.mxu0 %v92
    %98 = vmatprep.subr.bf16.mxu0 0
    %99 = vmatpush1.bf16.msra.mxu0 0
    %100 = vmatprep.subr.bf16.mxu0 0
    %101 = vmatpush1.bf16.msra.mxu0 0
    %102 = vmatprep.subr.bf16.mxu0 0
    %103 = vmatpush1.bf16.msra.mxu0 0
    %104 = vmatprep.subr.bf16.mxu0 0
    %105 = vmatpush1.bf16.msra.mxu0 0
    %106 = vmatprep.subr.bf16.mxu0 0
    %107 = vmatpush1.bf16.msra.mxu0 0
    %108 = vmatprep.subr.bf16.mxu0 0
    %109 = vmatpush1.bf16.msra.mxu0 0
    %110 = vmatprep.subr.bf16.mxu0 0
    %111 = vmatpush1.bf16.msra.mxu0 0
    %112 = vmatprep.subr.bf16.mxu0 0
    %113 = vmatpush1.bf16.msra.mxu0 0
    %114 = vmatprep.subr.bf16.mxu0 0
    %115 = vmatpush1.bf16.msra.mxu0 0
    %116 = vmatprep.subr.bf16.mxu0 0
    %117 = vmatpush1.bf16.msra.mxu0 0
    %118 = vmatprep.subr.bf16.mxu0 0
    %119 = vmatpush1.bf16.msra.mxu0 0
    %120 = vmatprep.subr.bf16.mxu0 0
    %121 = vmatpush1.bf16.msra.mxu0 0
    %122 = vmatprep.subr.bf16.mxu0 0
    %123 = vmatpush1.bf16.msra.mxu0 0
    %124 = vmatprep.subr.bf16.mxu0 0
    %125 = vmatpush1.bf16.msra.mxu0 0
    %126 = vmatprep.mubr.bf16.mxu0 0
    %127 = vmatmul.mubr.bf16.gmra.mrb[0].mxu0 %v88
    %v128 = vpop.f32.mrb[0].mxu0
    %v129 = vadd.f32 0.0, %v128
    %v130 = vpop.f32.mrb[0].mxu0
    %v131 = vpop.f32.mrb[0].mxu0
    %v132 = vpop.f32.mrb[0].mxu0
    %133 = vdwg.mxu0
    %v134 = vld [vmem:[%s7] sm:$0x1]
    %v135 = vld [vmem:[%s7 + $0x1] sm:$0x1]
    %v136 = vrot.slane %v129, 4
    %v137 = vadd.f32 %v129, %v136
    %v138 = vrot.slane %v137, 2
    %v139 = vadd.f32 %v137, %v138
    %v140 = vrot.slane %v139, 1
    %v141 = vadd.f32 %v139, %v140
    %v142 = vrcp.pop 8.0
    %v143 = vmul.f32 %v141, %v142
    %v144 = vsub.f32 %v129, %v143
    %v145 = vmul.f32 %v144, %v144
    %v146 = vrot.slane %v145, 4
    %v147 = vadd.f32 %v145, %v146
    %v148 = vrot.slane %v147, 2
    %v149 = vadd.f32 %v147, %v148
    %v150 = vrot.slane %v149, 1
    %v151 = vadd.f32 %v149, %v150
    %v152 = vmul.f32 %v151, %v142
    %v153 = vadd.f32 %v152, 1e-05
    %v154 = vrsqrt.pop %v153
    %v155 = vmul.f32 %v134, %v154
    %v156 = vmul.f32 %v143, %v155
    %v157 = vsub.f32 %v135, %v156
    %v158 = vlaneseq
    %v159 = vshrl.u32 %v158, 7
    %v160 = vsub.s32 0, %v159
    %v161 = vrot.slane %v155, %v160
    %v162 = vmul.f32 %v129, %v161
    %v163 = vlaneseq
    %v164 = vshrl.u32 %v163, 7
    %v165 = vsub.s32 0, %v164
    %v166 = vrot.slane %v157, %v165
    %v167 = vadd.f32 %v162, %v166
    %v168 = vmax.f32 %v167, 0.0
    %v169 = vpack.c.bf16 %v168, %v168
    %v170 = vld [vmem:[%s2] sm:$0xff]
    %v171 = vld [vmem:[%s2 + $0x8] sm:$0xff]
    %v172 = vld [vmem:[%s2 + $0x10] sm:$0xff]
    %v173 = vld [vmem:[%s2 + $0x18] sm:$0xff]
    %v174 = vld [vmem:[%s2 + $0x20] sm:$0xff]
    %v175 = vld [vmem:[%s2 + $0x28] sm:$0xff]
    %v176 = vld [vmem:[%s2 + $0x30] sm:$0xff]
    %v177 = vld [vmem:[%s2 + $0x38] sm:$0xff]
    %v178 = vld [vmem:[%s2 + $0x40] sm:$0xff]
    %v179 = vld [vmem:[%s2 + $0x48] sm:$0xff]
    %v180 = vld [vmem:[%s2 + $0x50] sm:$0xff]
    %v181 = vld [vmem:[%s2 + $0x58] sm:$0xff]
    %v182 = vld [vmem:[%s2 + $0x60] sm:$0xff]
    %v183 = vld [vmem:[%s2 + $0x68] sm:$0xff]
    %v184 = vld [vmem:[%s2 + $0x70] sm:$0xff]
    %v185 = vld [vmem:[%s2 + $0x78] sm:$0xff]
    %v202 = vunpack.c.l.b16 %v170
    %v203 = vunpack.c.h.b16 %v170
    %v204 = vunpack.c.l.b16 %v171
    %v205 = vunpack.c.h.b16 %v171
    %v206 = vunpack.c.l.b16 %v172
    %v207 = vunpack.c.h.b16 %v172
    %v208 = vunpack.c.l.b16 %v173
    %v209 = vunpack.c.h.b16 %v173
    %v210 = vunpack.c.l.b16 %v174
    %v211 = vunpack.c.h.b16 %v174
    %v212 = vunpack.c.l.b16 %v175
    %v213 = vunpack.c.h.b16 %v175
    %v214 = vunpack.c.l.b16 %v176
    %v215 = vunpack.c.h.b16 %v176
    %v216 = vunpack.c.l.b16 %v177
    %v217 = vunpack.c.h.b16 %v177
    %v218 = vunpack.c.l.b16 %v178
    %v219 = vunpack.c.h.b16 %v178
    %v220 = vunpack.c.l.b16 %v179
    %v221 = vunpack.c.h.b16 %v179
    %v222 = vunpack.c.l.b16 %v180
    %v223 = vunpack.c.h.b16 %v180
    %v224 = vunpack.c.l.b16 %v181
    %v225 = vunpack.c.h.b16 %v181
    %v226 = vunpack.c.l.b16 %v182
    %v227 = vunpack.c.h.b16 %v182
    %v228 = vunpack.c.l.b16 %v183
    %v229 = vunpack.c.h.b16 %v183
    %v230 = vunpack.c.l.b16 %v184
    %v231 = vunpack.c.h.b16 %v184
    %v232 = vunpack.c.l.b16 %v185
    %v233 = vunpack.c.h.b16 %v185
    %v234 = vpack.c.b16 %v204, %v202
    %v235 = vpack.c.b16 %v205, %v203
    %v236 = vpack.c.b16 %v208, %v206
    %v237 = vpack.c.b16 %v209, %v207
    %v238 = vpack.c.b16 %v212, %v210
    %v239 = vpack.c.b16 %v213, %v211
    %v240 = vpack.c.b16 %v216, %v214
    %v241 = vpack.c.b16 %v217, %v215
    %v242 = vpack.c.b16 %v220, %v218
    %v243 = vpack.c.b16 %v221, %v219
    %v244 = vpack.c.b16 %v224, %v222
    %v245 = vpack.c.b16 %v225, %v223
    %v246 = vpack.c.b16 %v228, %v226
    %v247 = vpack.c.b16 %v229, %v227
    %v248 = vpack.c.b16 %v232, %v230
    %v249 = vpack.c.b16 %v233, %v231
    %266 = vmatprep.subr.bf16.mxu0 %v235
    %267 = vmatpush1.bf16.msra.mxu0 %v234
    %268 = vmatprep.subr.bf16.mxu0 %v237
    %269 = vmatpush1.bf16.msra.mxu0 %v236
    %270 = vmatprep.subr.bf16.mxu0 %v239
    %271 = vmatpush1.bf16.msra.mxu0 %v238
    %272 = vmatprep.subr.bf16.mxu0 %v241
    %273 = vmatpush1.bf16.msra.mxu0 %v240
    %274 = vmatprep.subr.bf16.mxu0 %v243
    %275 = vmatpush1.bf16.msra.mxu0 %v242
    %276 = vmatprep.subr.bf16.mxu0 %v245
    %277 = vmatpush1.bf16.msra.mxu0 %v244
    %278 = vmatprep.subr.bf16.mxu0 %v247
    %279 = vmatpush1.bf16.msra.mxu0 %v246
    %280 = vmatprep.subr.bf16.mxu0 %v249
    %281 = vmatpush1.bf16.msra.mxu0 %v248
    %282 = vmatprep.subr.bf16.mxu0 0
    %283 = vmatpush1.bf16.msra.mxu0 0
    %284 = vmatprep.subr.bf16.mxu0 0
    %285 = vmatpush1.bf16.msra.mxu0 0
    %286 = vmatprep.subr.bf16.mxu0 0
    %287 = vmatpush1.bf16.msra.mxu0 0
    %288 = vmatprep.subr.bf16.mxu0 0
    %289 = vmatpush1.bf16.msra.mxu0 0
    %290 = vmatprep.subr.bf16.mxu0 0
    %291 = vmatpush1.bf16.msra.mxu0 0
    %292 = vmatprep.subr.bf16.mxu0 0
    %293 = vmatpush1.bf16.msra.mxu0 0
    %294 = vmatprep.subr.bf16.mxu0 0
    %295 = vmatpush1.bf16.msra.mxu0 0
    %296 = vmatprep.subr.bf16.mxu0 0
    %297 = vmatpush1.bf16.msra.mxu0 0
    %298 = vmatprep.mubr.bf16.mxu0 0
    %299 = vmatmul.mubr.bf16.gmra.mrb[0].mxu0 %v169
    %v300 = vpop.f32.mrb[0].mxu0
    %v301 = vadd.f32 0.0, %v300
    %v302 = vpop.f32.mrb[0].mxu0
    %v303 = vadd.f32 0.0, %v302
    %v304 = vpop.f32.mrb[0].mxu0
    %v305 = vpop.f32.mrb[0].mxu0
    %306 = vdwg.mxu0
    %s307 = scalar_lea.vmem %s7, 4
    %v308 = vld [vmem:[%s307] ss:$4 sm:$0x3]
    %s309 = scalar_lea.vmem %s7, 5
    %v310 = vld [vmem:[%s309] ss:$4 sm:$0x3]
    %v311 = vrot.slane %v301, 4
    %v312 = vadd.f32 %v301, %v311
    %v313 = vrot.slane %v312, 2
    %v314 = vadd.f32 %v312, %v313
    %v315 = vrot.slane %v314, 1
    %v316 = vadd.f32 %v314, %v315
    %v317 = vrot.slane %v303, 4
    %v318 = vadd.f32 %v303, %v317
    %v319 = vrot.slane %v318, 2
    %v320 = vadd.f32 %v318, %v319
    %v321 = vrot.slane %v320, 1
    %v322 = vadd.f32 %v320, %v321
    %v323 = vmul.f32 %v316, %v142
    %v324 = vmul.f32 %v322, %v142
    %v325 = vsub.f32 %v301, %v323
    %v326 = vsub.f32 %v303, %v324
    %v327 = vmul.f32 %v325, %v325
    %v328 = vmul.f32 %v326, %v326
    %v329 = vrot.slane %v327, 4
    %v330 = vadd.f32 %v327, %v329
    %v331 = vrot.slane %v330, 2
    %v332 = vadd.f32 %v330, %v331
    %v333 = vrot.slane %v332, 1
    %v334 = vadd.f32 %v332, %v333
    %v335 = vrot.slane %v328, 4
    %v336 = vadd.f32 %v328, %v335
    %v337 = vrot.slane %v336, 2
    %v338 = vadd.f32 %v336, %v337
    %v339 = vrot.slane %v338, 1
    %v340 = vadd.f32 %v338, %v339
    %v341 = vmul.f32 %v334, %v142
    %v342 = vmul.f32 %v340, %v142
    %v343 = vadd.f32 %v341, 1e-05
    %v344 = vadd.f32 %v342, 1e-05
    %v345 = vrsqrt.pop %v343
    %v346 = vrsqrt.pop %v344
    %v349 = vcombine.low %v345, %v346
    %v351 = vunpack.c.l.s4 1966171168
    %v352 = vunpack.c.0.s8 %v351
    %v353 = vlaneseq
    %v354 = vshrl.u32 %v353, 7
    %v355 = vsub.s32 %v352, %v354
    %v356 = vrot.slane %v349, %v355
    %v358 = vunpack.c.l.s4 1966171168
    %v359 = vunpack.c.0.s8 %v358
    %v360 = vlaneseq
    %v361 = vshrl.u32 %v360, 7
    %v362 = vsub.s32 %v359, %v361
    %v363 = vrot.slane %v356, %v362
    %v365 = vmul.f32 %v308, %v363
    %v367 = vlaneseq
    %v368 = vshrl.u32 %v367, 7
    %v369 = vsub.s32 0, %v368
    %v370 = vrot.slane %v365, %v369
    %v371 = vlaneseq
    %v372 = vshrl.u32 %v371, 7
    %v373 = vsub.s32 1, %v372
    %v374 = vrot.slane %v365, %v373
    %v377 = vmul.f32 %v323, %v370
    %v378 = vmul.f32 %v324, %v374
    %v381 = vcombine.low %v377, %v378
    %v383 = vunpack.c.l.s4 1966171168
    %v384 = vunpack.c.0.s8 %v383
    %v385 = vlaneseq
    %v386 = vshrl.u32 %v385, 7
    %v387 = vsub.s32 %v384, %v386
    %v388 = vrot.slane %v381, %v387
    %v390 = vunpack.c.l.s4 1966171168
    %v391 = vunpack.c.0.s8 %v390
    %v392 = vlaneseq
    %v393 = vshrl.u32 %v392, 7
    %v394 = vsub.s32 %v391, %v393
    %v395 = vrot.slane %v388, %v394
    %v397 = vsub.f32 %v310, %v395
    %v398 = vmul.f32 %v301, %v370
    %v399 = vmul.f32 %v303, %v374
    %v401 = vlaneseq
    %v402 = vshrl.u32 %v401, 7
    %v403 = vsub.s32 0, %v402
    %v404 = vrot.slane %v397, %v403
    %v405 = vlaneseq
    %v406 = vshrl.u32 %v405, 7
    %v407 = vsub.s32 1, %v406
    %v408 = vrot.slane %v397, %v407
    %v411 = vadd.f32 %v398, %v404
    %v412 = vadd.f32 %v399, %v408
    %v413 = vmax.f32 %v411, 0.0
    %v414 = vmax.f32 %v412, 0.0
    %v415 = vpack.c.bf16 %v413, %v413
    %v416 = vpack.c.bf16 %v414, %v414
    %v417 = vld [vmem:[#allocation2] sm:$0xff]
    %v418 = vld [vmem:[#allocation2 + $0x8] sm:$0xff]
    %v419 = vld [vmem:[#allocation2 + $0x10] sm:$0xff]
    %v420 = vld [vmem:[#allocation2 + $0x18] sm:$0xff]
    %v421 = vld [vmem:[#allocation2 + $0x20] sm:$0xff]
    %v422 = vld [vmem:[#allocation2 + $0x28] sm:$0xff]
    %v423 = vld [vmem:[#allocation2 + $0x30] sm:$0xff]
    %v424 = vld [vmem:[#allocation2 + $0x38] sm:$0xff]
    %v425 = vld [vmem:[#allocation2 + $0x40] sm:$0xff]
    %v426 = vld [vmem:[#allocation2 + $0x48] sm:$0xff]
    %v427 = vld [vmem:[#allocation2 + $0x50] sm:$0xff]
    %v428 = vld [vmem:[#allocation2 + $0x58] sm:$0xff]
    %v429 = vld [vmem:[#allocation2 + $0x60] sm:$0xff]
    %v430 = vld [vmem:[#allocation2 + $0x68] sm:$0xff]
    %v431 = vld [vmem:[#allocation2 + $0x70] sm:$0xff]
    %v432 = vld [vmem:[#allocation2 + $0x78] sm:$0xff]
    %v433 = vld [vmem:[#allocation2 + $0x80] sm:$0xff]
    %v434 = vld [vmem:[#allocation2 + $0x88] sm:$0xff]
    %v435 = vld [vmem:[#allocation2 + $0x90] sm:$0xff]
    %v436 = vld [vmem:[#allocation2 + $0x98] sm:$0xff]
    %v437 = vld [vmem:[#allocation2 + $0xa0] sm:$0xff]
    %v438 = vld [vmem:[#allocation2 + $0xa8] sm:$0xff]
    %v439 = vld [vmem:[#allocation2 + $0xb0] sm:$0xff]
    %v440 = vld [vmem:[#allocation2 + $0xb8] sm:$0xff]
    %v441 = vld [vmem:[#allocation2 + $0xc0] sm:$0xff]
    %v442 = vld [vmem:[#allocation2 + $0xc8] sm:$0xff]
    %v443 = vld [vmem:[#allocation2 + $0xd0] sm:$0xff]
    %v444 = vld [vmem:[#allocation2 + $0xd8] sm:$0xff]
    %v445 = vld [vmem:[#allocation2 + $0xe0] sm:$0xff]
    %v446 = vld [vmem:[#allocation2 + $0xe8] sm:$0xff]
    %v447 = vld [vmem:[#allocation2 + $0xf0] sm:$0xff]
    %v448 = vld [vmem:[#allocation2 + $0xf8] sm:$0xff]
    %v449 = vld [vmem:[#allocation2 + $0x100] sm:$0xff]
    %v450 = vld [vmem:[#allocation2 + $0x108] sm:$0xff]
    %v451 = vld [vmem:[#allocation2 + $0x110] sm:$0xff]
    %v452 = vld [vmem:[#allocation2 + $0x118] sm:$0xff]
    %v453 = vld [vmem:[#allocation2 + $0x120] sm:$0xff]
    %v454 = vld [vmem:[#allocation2 + $0x128] sm:$0xff]
    %v455 = vld [vmem:[#allocation2 + $0x130] sm:$0xff]
    %v456 = vld [vmem:[#allocation2 + $0x138] sm:$0xff]
    %v457 = vld [vmem:[#allocation2 + $0x140] sm:$0xff]
    %v458 = vld [vmem:[#allocation2 + $0x148] sm:$0xff]
    %v459 = vld [vmem:[#allocation2 + $0x150] sm:$0xff]
    %v460 = vld [vmem:[#allocation2 + $0x158] sm:$0xff]
    %v461 = vld [vmem:[#allocation2 + $0x160] sm:$0xff]
    %v462 = vld [vmem:[#allocation2 + $0x168] sm:$0xff]
    %v463 = vld [vmem:[#allocation2 + $0x170] sm:$0xff]
    %v464 = vld [vmem:[#allocation2 + $0x178] sm:$0xff]
    %v465 = vld [vmem:[#allocation2 + $0x180] sm:$0xff]
    %v466 = vld [vmem:[#allocation2 + $0x188] sm:$0xff]
    %v467 = vld [vmem:[#allocation2 + $0x190] sm:$0xff]
    %v468 = vld [vmem:[#allocation2 + $0x198] sm:$0xff]
    %v469 = vld [vmem:[#allocation2 + $0x1a0] sm:$0xff]
    %v470 = vld [vmem:[#allocation2 + $0x1a8] sm:$0xff]
    %v471 = vld [vmem:[#allocation2 + $0x1b0] sm:$0xff]
    %v472 = vld [vmem:[#allocation2 + $0x1b8] sm:$0xff]
    %v473 = vld [vmem:[#allocation2 + $0x1c0] sm:$0xff]
    %v474 = vld [vmem:[#allocation2 + $0x1c8] sm:$0xff]
    %v475 = vld [vmem:[#allocation2 + $0x1d0] sm:$0xff]
    %v476 = vld [vmem:[#allocation2 + $0x1d8] sm:$0xff]
    %v477 = vld [vmem:[#allocation2 + $0x1e0] sm:$0xff]
    %v478 = vld [vmem:[#allocation2 + $0x1e8] sm:$0xff]
    %v479 = vld [vmem:[#allocation2 + $0x1f0] sm:$0xff]
    %v480 = vld [vmem:[#allocation2 + $0x1f8] sm:$0xff]
    %v545 = vunpack.c.l.b16 %v417
    %v546 = vunpack.c.h.b16 %v417
    %v547 = vunpack.c.l.b16 %v418
    %v548 = vunpack.c.h.b16 %v418
    %v549 = vunpack.c.l.b16 %v419
    %v550 = vunpack.c.h.b16 %v419
    %v551 = vunpack.c.l.b16 %v420
    %v552 = vunpack.c.h.b16 %v420
    %v553 = vunpack.c.l.b16 %v421
    %v554 = vunpack.c.h.b16 %v421
    %v555 = vunpack.c.l.b16 %v422
    %v556 = vunpack.c.h.b16 %v422
    %v557 = vunpack.c.l.b16 %v423
    %v558 = vunpack.c.h.b16 %v423
    %v559 = vunpack.c.l.b16 %v424
    %v560 = vunpack.c.h.b16 %v424
    %v561 = vunpack.c.l.b16 %v425
    %v562 = vunpack.c.h.b16 %v425
    %v563 = vunpack.c.l.b16 %v426
    %v564 = vunpack.c.h.b16 %v426
    %v565 = vunpack.c.l.b16 %v427
    %v566 = vunpack.c.h.b16 %v427
    %v567 = vunpack.c.l.b16 %v428
    %v568 = vunpack.c.h.b16 %v428
    %v569 = vunpack.c.l.b16 %v429
    %v570 = vunpack.c.h.b16 %v429
    %v571 = vunpack.c.l.b16 %v430
    %v572 = vunpack.c.h.b16 %v430
    %v573 = vunpack.c.l.b16 %v431
    %v574 = vunpack.c.h.b16 %v431
    %v575 = vunpack.c.l.b16 %v432
    %v576 = vunpack.c.h.b16 %v432
    %v577 = vunpack.c.l.b16 %v433
    %v578 = vunpack.c.h.b16 %v433
    %v579 = vunpack.c.l.b16 %v434
    %v580 = vunpack.c.h.b16 %v434
    %v581 = vunpack.c.l.b16 %v435
    %v582 = vunpack.c.h.b16 %v435
    %v583 = vunpack.c.l.b16 %v436
    %v584 = vunpack.c.h.b16 %v436
    %v585 = vunpack.c.l.b16 %v437
    %v586 = vunpack.c.h.b16 %v437
    %v587 = vunpack.c.l.b16 %v438
    %v588 = vunpack.c.h.b16 %v438
    %v589 = vunpack.c.l.b16 %v439
    %v590 = vunpack.c.h.b16 %v439
    %v591 = vunpack.c.l.b16 %v440
    %v592 = vunpack.c.h.b16 %v440
    %v593 = vunpack.c.l.b16 %v441
    %v594 = vunpack.c.h.b16 %v441
    %v595 = vunpack.c.l.b16 %v442
    %v596 = vunpack.c.h.b16 %v442
    %v597 = vunpack.c.l.b16 %v443
    %v598 = vunpack.c.h.b16 %v443
    %v599 = vunpack.c.l.b16 %v444
    %v600 = vunpack.c.h.b16 %v444
    %v601 = vunpack.c.l.b16 %v445
    %v602 = vunpack.c.h.b16 %v445
    %v603 = vunpack.c.l.b16 %v446
    %v604 = vunpack.c.h.b16 %v446
    %v605 = vunpack.c.l.b16 %v447
    %v606 = vunpack.c.h.b16 %v447
    %v607 = vunpack.c.l.b16 %v448
    %v608 = vunpack.c.h.b16 %v448
    %v609 = vunpack.c.l.b16 %v449
    %v610 = vunpack.c.h.b16 %v449
    %v611 = vunpack.c.l.b16 %v450
    %v612 = vunpack.c.h.b16 %v450
    %v613 = vunpack.c.l.b16 %v451
    %v614 = vunpack.c.h.b16 %v451
    %v615 = vunpack.c.l.b16 %v452
    %v616 = vunpack.c.h.b16 %v452
    %v617 = vunpack.c.l.b16 %v453
    %v618 = vunpack.c.h.b16 %v453
    %v619 = vunpack.c.l.b16 %v454
    %v620 = vunpack.c.h.b16 %v454
    %v621 = vunpack.c.l.b16 %v455
    %v622 = vunpack.c.h.b16 %v455
    %v623 = vunpack.c.l.b16 %v456
    %v624 = vunpack.c.h.b16 %v456
    %v625 = vunpack.c.l.b16 %v457
    %v626 = vunpack.c.h.b16 %v457
    %v627 = vunpack.c.l.b16 %v458
    %v628 = vunpack.c.h.b16 %v458
    %v629 = vunpack.c.l.b16 %v459
    %v630 = vunpack.c.h.b16 %v459
    %v631 = vunpack.c.l.b16 %v460
    %v632 = vunpack.c.h.b16 %v460
    %v633 = vunpack.c.l.b16 %v461
    %v634 = vunpack.c.h.b16 %v461
    %v635 = vunpack.c.l.b16 %v462
    %v636 = vunpack.c.h.b16 %v462
    %v637 = vunpack.c.l.b16 %v463
    %v638 = vunpack.c.h.b16 %v463
    %v639 = vunpack.c.l.b16 %v464
    %v640 = vunpack.c.h.b16 %v464
    %v641 = vunpack.c.l.b16 %v465
    %v642 = vunpack.c.h.b16 %v465
    %v643 = vunpack.c.l.b16 %v466
    %v644 = vunpack.c.h.b16 %v466
    %v645 = vunpack.c.l.b16 %v467
    %v646 = vunpack.c.h.b16 %v467
    %v647 = vunpack.c.l.b16 %v468
    %v648 = vunpack.c.h.b16 %v468
    %v649 = vunpack.c.l.b16 %v469
    %v650 = vunpack.c.h.b16 %v469
    %v651 = vunpack.c.l.b16 %v470
    %v652 = vunpack.c.h.b16 %v470
    %v653 = vunpack.c.l.b16 %v471
    %v654 = vunpack.c.h.b16 %v471
    %v655 = vunpack.c.l.b16 %v472
    %v656 = vunpack.c.h.b16 %v472
    %v657 = vunpack.c.l.b16 %v473
    %v658 = vunpack.c.h.b16 %v473
    %v659 = vunpack.c.l.b16 %v474
    %v660 = vunpack.c.h.b16 %v474
    %v661 = vunpack.c.l.b16 %v475
    %v662 = vunpack.c.h.b16 %v475
    %v663 = vunpack.c.l.b16 %v476
    %v664 = vunpack.c.h.b16 %v476
    %v665 = vunpack.c.l.b16 %v477
    %v666 = vunpack.c.h.b16 %v477
    %v667 = vunpack.c.l.b16 %v478
    %v668 = vunpack.c.h.b16 %v478
    %v669 = vunpack.c.l.b16 %v479
    %v670 = vunpack.c.h.b16 %v479
    %v671 = vunpack.c.l.b16 %v480
    %v672 = vunpack.c.h.b16 %v480
    %v673 = vpack.c.b16 %v549, %v545
    %v674 = vpack.c.b16 %v550, %v546
    %v675 = vpack.c.b16 %v551, %v547
    %v676 = vpack.c.b16 %v552, %v548
    %v677 = vpack.c.b16 %v557, %v553
    %v678 = vpack.c.b16 %v558, %v554
    %v679 = vpack.c.b16 %v559, %v555
    %v680 = vpack.c.b16 %v560, %v556
    %v681 = vpack.c.b16 %v565, %v561
    %v682 = vpack.c.b16 %v566, %v562
    %v683 = vpack.c.b16 %v567, %v563
    %v684 = vpack.c.b16 %v568, %v564
    %v685 = vpack.c.b16 %v573, %v569
    %v686 = vpack.c.b16 %v574, %v570
    %v687 = vpack.c.b16 %v575, %v571
    %v688 = vpack.c.b16 %v576, %v572
    %v689 = vpack.c.b16 %v581, %v577
    %v690 = vpack.c.b16 %v582, %v578
    %v691 = vpack.c.b16 %v583, %v579
    %v692 = vpack.c.b16 %v584, %v580
    %v693 = vpack.c.b16 %v589, %v585
    %v694 = vpack.c.b16 %v590, %v586
    %v695 = vpack.c.b16 %v591, %v587
    %v696 = vpack.c.b16 %v592, %v588
    %v697 = vpack.c.b16 %v597, %v593
    %v698 = vpack.c.b16 %v598, %v594
    %v699 = vpack.c.b16 %v599, %v595
    %v700 = vpack.c.b16 %v600, %v596
    %v701 = vpack.c.b16 %v605, %v601
    %v702 = vpack.c.b16 %v606, %v602
    %v703 = vpack.c.b16 %v607, %v603
    %v704 = vpack.c.b16 %v608, %v604
    %v705 = vpack.c.b16 %v613, %v609
    %v706 = vpack.c.b16 %v614, %v610
    %v707 = vpack.c.b16 %v615, %v611
    %v708 = vpack.c.b16 %v616, %v612
    %v709 = vpack.c.b16 %v621, %v617
    %v710 = vpack.c.b16 %v622, %v618
    %v711 = vpack.c.b16 %v623, %v619
    %v712 = vpack.c.b16 %v624, %v620
    %v713 = vpack.c.b16 %v629, %v625
    %v714 = vpack.c.b16 %v630, %v626
    %v715 = vpack.c.b16 %v631, %v627
    %v716 = vpack.c.b16 %v632, %v628
    %v717 = vpack.c.b16 %v637, %v633
    %v718 = vpack.c.b16 %v638, %v634
    %v719 = vpack.c.b16 %v639, %v635
    %v720 = vpack.c.b16 %v640, %v636
    %v721 = vpack.c.b16 %v645, %v641
    %v722 = vpack.c.b16 %v646, %v642
    %v723 = vpack.c.b16 %v647, %v643
    %v724 = vpack.c.b16 %v648, %v644
    %v725 = vpack.c.b16 %v653, %v649
    %v726 = vpack.c.b16 %v654, %v650
    %v727 = vpack.c.b16 %v655, %v651
    %v728 = vpack.c.b16 %v656, %v652
    %v729 = vpack.c.b16 %v661, %v657
    %v730 = vpack.c.b16 %v662, %v658
    %v731 = vpack.c.b16 %v663, %v659
    %v732 = vpack.c.b16 %v664, %v660
    %v733 = vpack.c.b16 %v669, %v665
    %v734 = vpack.c.b16 %v670, %v666
    %v735 = vpack.c.b16 %v671, %v667
    %v736 = vpack.c.b16 %v672, %v668
    %801 = vmatprep.subr.bf16.mxu0 %v674
    %802 = vmatpush1.bf16.msra.mxu0 %v673
    %803 = vmatprep.subr.bf16.mxu0 %v678
    %804 = vmatpush1.bf16.msra.mxu0 %v677
    %805 = vmatprep.subr.bf16.mxu0 %v682
    %806 = vmatpush1.bf16.msra.mxu0 %v681
    %807 = vmatprep.subr.bf16.mxu0 %v686
    %808 = vmatpush1.bf16.msra.mxu0 %v685
    %809 = vmatprep.subr.bf16.mxu0 %v690
    %810 = vmatpush1.bf16.msra.mxu0 %v689
    %811 = vmatprep.subr.bf16.mxu0 %v694
    %812 = vmatpush1.bf16.msra.mxu0 %v693
    %813 = vmatprep.subr.bf16.mxu0 %v698
    %814 = vmatpush1.bf16.msra.mxu0 %v697
    %815 = vmatprep.subr.bf16.mxu0 %v702
    %816 = vmatpush1.bf16.msra.mxu0 %v701
    %817 = vmatprep.subr.bf16.mxu0 %v706
    %818 = vmatpush1.bf16.msra.mxu0 %v705
    %819 = vmatprep.subr.bf16.mxu0 %v710
    %820 = vmatpush1.bf16.msra.mxu0 %v709
    %821 = vmatprep.subr.bf16.mxu0 %v714
    %822 = vmatpush1.bf16.msra.mxu0 %v713
    %823 = vmatprep.subr.bf16.mxu0 %v718
    %824 = vmatpush1.bf16.msra.mxu0 %v717
    %825 = vmatprep.subr.bf16.mxu0 %v722
    %826 = vmatpush1.bf16.msra.mxu0 %v721
    %827 = vmatprep.subr.bf16.mxu0 %v726
    %828 = vmatpush1.bf16.msra.mxu0 %v725
    %829 = vmatprep.subr.bf16.mxu0 %v730
    %830 = vmatpush1.bf16.msra.mxu0 %v729
    %831 = vmatprep.subr.bf16.mxu0 %v734
    %832 = vmatpush1.bf16.msra.mxu0 %v733
    %833 = vmatprep.mubr.bf16.mxu0 %v416
    %834 = vmatmul.mubr.bf16.gmra.mrb[0].mxu0 %v415
    %v835 = vpop.f32.mrb[0].mxu0
    %v836 = vadd.f32 0.0, %v835
    %v837 = vpop.f32.mrb[0].mxu0
    %v838 = vadd.f32 0.0, %v837
    %v839 = vpop.f32.mrb[0].mxu0
    %v840 = vpop.f32.mrb[0].mxu0
    %841 = vdwg.mxu0
    %842 = vmatprep.subr.bf16.mxu0 %v676
    %843 = vmatpush1.bf16.msra.mxu0 %v675
    %844 = vmatprep.subr.bf16.mxu0 %v680
    %845 = vmatpush1.bf16.msra.mxu0 %v679
    %846 = vmatprep.subr.bf16.mxu0 %v684
    %847 = vmatpush1.bf16.msra.mxu0 %v683
    %848 = vmatprep.subr.bf16.mxu0 %v688
    %849 = vmatpush1.bf16.msra.mxu0 %v687
    %850 = vmatprep.subr.bf16.mxu0 %v692
    %851 = vmatpush1.bf16.msra.mxu0 %v691
    %852 = vmatprep.subr.bf16.mxu0 %v696
    %853 = vmatpush1.bf16.msra.mxu0 %v695
    %854 = vmatprep.subr.bf16.mxu0 %v700
    %855 = vmatpush1.bf16.msra.mxu0 %v699
    %856 = vmatprep.subr.bf16.mxu0 %v704
    %857 = vmatpush1.bf16.msra.mxu0 %v703
    %858 = vmatprep.subr.bf16.mxu0 %v708
    %859 = vmatpush1.bf16.msra.mxu0 %v707
    %860 = vmatprep.subr.bf16.mxu0 %v712
    %861 = vmatpush1.bf16.msra.mxu0 %v711
    %862 = vmatprep.subr.bf16.mxu0 %v716
    %863 = vmatpush1.bf16.msra.mxu0 %v715
    %864 = vmatprep.subr.bf16.mxu0 %v720
    %865 = vmatpush1.bf16.msra.mxu0 %v719
    %866 = vmatprep.subr.bf16.mxu0 %v724
    %867 = vmatpush1.bf16.msra.mxu0 %v723
    %868 = vmatprep.subr.bf16.mxu0 %v728
    %869 = vmatpush1.bf16.msra.mxu0 %v727
    %870 = vmatprep.subr.bf16.mxu0 %v732
    %871 = vmatpush1.bf16.msra.mxu0 %v731
    %872 = vmatprep.subr.bf16.mxu0 %v736
    %873 = vmatpush1.bf16.msra.mxu0 %v735
    %874 = vmatprep.mubr.bf16.mxu0 %v416
    %875 = vmatmul.mubr.bf16.gmra.mrb[0].mxu0 %v415
    %v876 = vpop.f32.mrb[0].mxu0
    %v877 = vadd.f32 0.0, %v876
    %v878 = vpop.f32.mrb[0].mxu0
    %v879 = vadd.f32 0.0, %v878
    %v880 = vpop.f32.mrb[0].mxu0
    %v881 = vpop.f32.mrb[0].mxu0
    %882 = vdwg.mxu0
    %s883 = scalar_lea.vmem %s7, 12
    %v884 = vld [vmem:[%s883] ss:$4 sm:$0xf]
    %s885 = scalar_lea.vmem %s7, 13
    %v886 = vld [vmem:[%s885] ss:$4 sm:$0xf]
    %v887 = vrot.slane %v836, 4
    %v888 = vadd.f32 %v836, %v887
    %v889 = vrot.slane %v888, 2
    %v890 = vadd.f32 %v888, %v889
    %v891 = vrot.slane %v890, 1
    %v892 = vadd.f32 %v890, %v891
    %v893 = vrot.slane %v838, 4
    %v894 = vadd.f32 %v838, %v893
    %v895 = vrot.slane %v894, 2
    %v896 = vadd.f32 %v894, %v895
    %v897 = vrot.slane %v896, 1
    %v898 = vadd.f32 %v896, %v897
    %v899 = vrot.slane %v877, 4
    %v900 = vadd.f32 %v877, %v899
    %v901 = vrot.slane %v900, 2
    %v902 = vadd.f32 %v900, %v901
    %v903 = vrot.slane %v902, 1
    %v904 = vadd.f32 %v902, %v903
    %v905 = vrot.slane %v879, 4
    %v906 = vadd.f32 %v879, %v905
    %v907 = vrot.slane %v906, 2
    %v908 = vadd.f32 %v906, %v907
    %v909 = vrot.slane %v908, 1
    %v910 = vadd.f32 %v908, %v909
    %v911 = vmul.f32 %v892, %v142
    %v912 = vmul.f32 %v898, %v142
    %v913 = vmul.f32 %v904, %v142
    %v914 = vmul.f32 %v910, %v142
    %v915 = vsub.f32 %v836, %v911
    %v916 = vsub.f32 %v838, %v912
    %v917 = vsub.f32 %v877, %v913
    %v918 = vsub.f32 %v879, %v914
    %v919 = vmul.f32 %v915, %v915
    %v920 = vmul.f32 %v916, %v916
    %v921 = vmul.f32 %v917, %v917
    %v922 = vmul.f32 %v918, %v918
    %v923 = vrot.slane %v919, 4
    %v924 = vadd.f32 %v919, %v923
    %v925 = vrot.slane %v924, 2
    %v926 = vadd.f32 %v924, %v925
    %v927 = vrot.slane %v926, 1
    %v928 = vadd.f32 %v926, %v927
    %v929 = vrot.slane %v920, 4
    %v930 = vadd.f32 %v920, %v929
    %v931 = vrot.slane %v930, 2
    %v932 = vadd.f32 %v930, %v931
    %v933 = vrot.slane %v932, 1
    %v934 = vadd.f32 %v932, %v933
    %v935 = vrot.slane %v921, 4
    %v936 = vadd.f32 %v921, %v935
    %v937 = vrot.slane %v936, 2
    %v938 = vadd.f32 %v936, %v937
    %v939 = vrot.slane %v938, 1
    %v940 = vadd.f32 %v938, %v939
    %v941 = vrot.slane %v922, 4
    %v942 = vadd.f32 %v922, %v941
    %v943 = vrot.slane %v942, 2
    %v944 = vadd.f32 %v942, %v943
    %v945 = vrot.slane %v944, 1
    %v946 = vadd.f32 %v944, %v945
    %v947 = vmul.f32 %v928, %v142
    %v948 = vmul.f32 %v934, %v142
    %v949 = vmul.f32 %v940, %v142
    %v950 = vmul.f32 %v946, %v142
    %v951 = vadd.f32 %v947, 1e-05
    %v952 = vadd.f32 %v948, 1e-05
    %v953 = vadd.f32 %v949, 1e-05
    %v954 = vadd.f32 %v950, 1e-05
    %v955 = vrsqrt.pop %v951
    %v956 = vrsqrt.pop %v952
    %v957 = vrsqrt.pop %v953
    %v958 = vrsqrt.pop %v954
    %v963 = vcombine.low %v955, %v956
    %v964 = vcombine.low %v957, %v958
    %v966 = vunpack.c.l.s4 1966171168
    %v967 = vunpack.c.0.s8 %v966
    %v968 = vlaneseq
    %v969 = vshrl.u32 %v968, 7
    %v970 = vsub.s32 %v967, %v969
    %v971 = vrot.slane %v963, %v970
    %v973 = vunpack.c.l.s4 1966171168
    %v974 = vunpack.c.0.s8 %v973
    %v975 = vlaneseq
    %v976 = vshrl.u32 %v975, 7
    %v977 = vsub.s32 %v974, %v976
    %v978 = vrot.slane %v964, %v977
    %v979 = vcombine.low %v971, %v978
    %v981 = vunpack.c.l.s4 1966171168
    %v982 = vunpack.c.0.s8 %v981
    %v983 = vlaneseq
    %v984 = vshrl.u32 %v983, 7
    %v985 = vsub.s32 %v982, %v984
    %v986 = vrot.slane %v979, %v985
    %v988 = vmul.f32 %v884, %v986
    %v990 = vlaneseq
    %v991 = vshrl.u32 %v990, 7
    %v992 = vsub.s32 0, %v991
    %v993 = vrot.slane %v988, %v992
    %v994 = vlaneseq
    %v995 = vshrl.u32 %v994, 7
    %v996 = vsub.s32 1, %v995
    %v997 = vrot.slane %v988, %v996
    %v998 = vlaneseq
    %v999 = vshrl.u32 %v998, 7
    %v1000 = vsub.s32 2, %v999
    %v1001 = vrot.slane %v988, %v1000
    %v1002 = vlaneseq
    %v1003 = vshrl.u32 %v1002, 7
    %v1004 = vsub.s32 3, %v1003
    %v1005 = vrot.slane %v988, %v1004
    %v1010 = vmul.f32 %v911, %v993
    %v1011 = vmul.f32 %v912, %v997
    %v1012 = vmul.f32 %v913, %v1001
    %v1013 = vmul.f32 %v914, %v1005
    %v1018 = vcombine.low %v1010, %v1011
    %v1019 = vcombine.low %v1012, %v1013
    %v1021 = vunpack.c.l.s4 1966171168
    %v1022 = vunpack.c.0.s8 %v1021
    %v1023 = vlaneseq
    %v1024 = vshrl.u32 %v1023, 7
    %v1025 = vsub.s32 %v1022, %v1024
    %v1026 = vrot.slane %v1018, %v1025
    %v1028 = vunpack.c.l.s4 1966171168
    %v1029 = vunpack.c.0.s8 %v1028
    %v1030 = vlaneseq
    %v1031 = vshrl.u32 %v1030, 7
    %v1032 = vsub.s32 %v1029, %v1031
    %v1033 = vrot.slane %v1019, %v1032
    %v1034 = vcombine.low %v1026, %v1033
    %v1036 = vunpack.c.l.s4 1966171168
    %v1037 = vunpack.c.0.s8 %v1036
    %v1038 = vlaneseq
    %v1039 = vshrl.u32 %v1038, 7
    %v1040 = vsub.s32 %v1037, %v1039
    %v1041 = vrot.slane %v1034, %v1040
    %v1043 = vsub.f32 %v886, %v1041
    %v1044 = vmul.f32 %v836, %v993
    %v1045 = vmul.f32 %v838, %v997
    %v1046 = vmul.f32 %v877, %v1001
    %v1047 = vmul.f32 %v879, %v1005
    %v1049 = vlaneseq
    %v1050 = vshrl.u32 %v1049, 7
    %v1051 = vsub.s32 0, %v1050
    %v1052 = vrot.slane %v1043, %v1051
    %v1053 = vlaneseq
    %v1054 = vshrl.u32 %v1053, 7
    %v1055 = vsub.s32 1, %v1054
    %v1056 = vrot.slane %v1043, %v1055
    %v1057 = vlaneseq
    %v1058 = vshrl.u32 %v1057, 7
    %v1059 = vsub.s32 2, %v1058
    %v1060 = vrot.slane %v1043, %v1059
    %v1061 = vlaneseq
    %v1062 = vshrl.u32 %v1061, 7
    %v1063 = vsub.s32 3, %v1062
    %v1064 = vrot.slane %v1043, %v1063
    %v1069 = vadd.f32 %v1044, %v1052
    %v1070 = vadd.f32 %v1045, %v1056
    %v1071 = vadd.f32 %v1046, %v1060
    %v1072 = vadd.f32 %v1047, %v1064
    %v1073 = vmax.f32 %v1069, 0.0
    %v1074 = vmax.f32 %v1070, 0.0
    %v1075 = vmax.f32 %v1071, 0.0
    %v1076 = vmax.f32 %v1072, 0.0
    %v1077 = vpack.c.bf16 %v1073, %v1073
    %v1078 = vpack.c.bf16 %v1074, %v1074
    %v1079 = vpack.c.bf16 %v1075, %v1075
    %v1080 = vpack.c.bf16 %v1076, %v1076
    %v1081 = vld [vmem:[#allocation5] sm:$0xff]
    %v1082 = vld [vmem:[#allocation5 + $0x8] sm:$0xff]
    %v1083 = vld [vmem:[#allocation5 + $0x10] sm:$0xff]
    %v1084 = vld [vmem:[#allocation5 + $0x18] sm:$0xff]
    %v1085 = vld [vmem:[#allocation5 + $0x20] sm:$0xff]
    %v1086 = vld [vmem:[#allocation5 + $0x28] sm:$0xff]
    %v1087 = vld [vmem:[#allocation5 + $0x30] sm:$0xff]
    %v1088 = vld [vmem:[#allocation5 + $0x38] sm:$0xff]
    %v1089 = vld [vmem:[#allocation5 + $0x40] sm:$0xff]
    %v1090 = vld [vmem:[#allocation5 + $0x48] sm:$0xff]
    %v1091 = vld [vmem:[#allocation5 + $0x50] sm:$0xff]
    %v1092 = vld [vmem:[#allocation5 + $0x58] sm:$0xff]
    %v1093 = vld [vmem:[#allocation5 + $0x60] sm:$0xff]
    %v1094 = vld [vmem:[#allocation5 + $0x68] sm:$0xff]
    %v1095 = vld [vmem:[#allocation5 + $0x70] sm:$0xff]
    %v1096 = vld [vmem:[#allocation5 + $0x78] sm:$0xff]
    %v1097 = vld [vmem:[#allocation5 + $0x80] sm:$0xff]
    %v1098 = vld [vmem:[#allocation5 + $0x88] sm:$0xff]
    %v1099 = vld [vmem:[#allocation5 + $0x90] sm:$0xff]
    %v1100 = vld [vmem:[#allocation5 + $0x98] sm:$0xff]
    %v1101 = vld [vmem:[#allocation5 + $0xa0] sm:$0xff]
    %v1102 = vld [vmem:[#allocation5 + $0xa8] sm:$0xff]
    %v1103 = vld [vmem:[#allocation5 + $0xb0] sm:$0xff]
    %v1104 = vld [vmem:[#allocation5 + $0xb8] sm:$0xff]
    %v1105 = vld [vmem:[#allocation5 + $0xc0] sm:$0xff]
    %v1106 = vld [vmem:[#allocation5 + $0xc8] sm:$0xff]
    %v1107 = vld [vmem:[#allocation5 + $0xd0] sm:$0xff]
    %v1108 = vld [vmem:[#allocation5 + $0xd8] sm:$0xff]
    %v1109 = vld [vmem:[#allocation5 + $0xe0] sm:$0xff]
    %v1110 = vld [vmem:[#allocation5 + $0xe8] sm:$0xff]
    %v1111 = vld [vmem:[#allocation5 + $0xf0] sm:$0xff]
    %v1112 = vld [vmem:[#allocation5 + $0xf8] sm:$0xff]
    %v1113 = vld [vmem:[#allocation5 + $0x100] sm:$0xff]
    %v1114 = vld [vmem:[#allocation5 + $0x108] sm:$0xff]
    %v1115 = vld [vmem:[#allocation5 + $0x110] sm:$0xff]
    %v1116 = vld [vmem:[#allocation5 + $0x118] sm:$0xff]
    %v1117 = vld [vmem:[#allocation5 + $0x120] sm:$0xff]
    %v1118 = vld [vmem:[#allocation5 + $0x128] sm:$0xff]
    %v1119 = vld [vmem:[#allocation5 + $0x130] sm:$0xff]
    %v1120 = vld [vmem:[#allocation5 + $0x138] sm:$0xff]
    %v1121 = vld [vmem:[#allocation5 + $0x140] sm:$0xff]
    %v1122 = vld [vmem:[#allocation5 + $0x148] sm:$0xff]
    %v1123 = vld [vmem:[#allocation5 + $0x150] sm:$0xff]
    %v1124 = vld [vmem:[#allocation5 + $0x158] sm:$0xff]
    %v1125 = vld [vmem:[#allocation5 + $0x160] sm:$0xff]
    %v1126 = vld [vmem:[#allocation5 + $0x168] sm:$0xff]
    %v1127 = vld [vmem:[#allocation5 + $0x170] sm:$0xff]
    %v1128 = vld [vmem:[#allocation5 + $0x178] sm:$0xff]
    %v1129 = vld [vmem:[#allocation5 + $0x180] sm:$0xff]
    %v1130 = vld [vmem:[#allocation5 + $0x188] sm:$0xff]
    %v1131 = vld [vmem:[#allocation5 + $0x190] sm:$0xff]
    %v1132 = vld [vmem:[#allocation5 + $0x198] sm:$0xff]
    %v1133 = vld [vmem:[#allocation5 + $0x1a0] sm:$0xff]
    %v1134 = vld [vmem:[#allocation5 + $0x1a8] sm:$0xff]
    %v1135 = vld [vmem:[#allocation5 + $0x1b0] sm:$0xff]
    %v1136 = vld [vmem:[#allocation5 + $0x1b8] sm:$0xff]
    %v1137 = vld [vmem:[#allocation5 + $0x1c0] sm:$0xff]
    %v1138 = vld [vmem:[#allocation5 + $0x1c8] sm:$0xff]
    %v1139 = vld [vmem:[#allocation5 + $0x1d0] sm:$0xff]
    %v1140 = vld [vmem:[#allocation5 + $0x1d8] sm:$0xff]
    %v1141 = vld [vmem:[#allocation5 + $0x1e0] sm:$0xff]
    %v1142 = vld [vmem:[#allocation5 + $0x1e8] sm:$0xff]
    %v1143 = vld [vmem:[#allocation5 + $0x1f0] sm:$0xff]
    %v1144 = vld [vmem:[#allocation5 + $0x1f8] sm:$0xff]
    %v1145 = vld [vmem:[#allocation5 + $0x200] sm:$0xff]
    %v1146 = vld [vmem:[#allocation5 + $0x208] sm:$0xff]
    %v1147 = vld [vmem:[#allocation5 + $0x210] sm:$0xff]
    %v1148 = vld [vmem:[#allocation5 + $0x218] sm:$0xff]
    %v1149 = vld [vmem:[#allocation5 + $0x220] sm:$0xff]
    %v1150 = vld [vmem:[#allocation5 + $0x228] sm:$0xff]
    %v1151 = vld [vmem:[#allocation5 + $0x230] sm:$0xff]
    %v1152 = vld [vmem:[#allocation5 + $0x238] sm:$0xff]
    %v1153 = vld [vmem:[#allocation5 + $0x240] sm:$0xff]
    %v1154 = vld [vmem:[#allocation5 + $0x248] sm:$0xff]
    %v1155 = vld [vmem:[#allocation5 + $0x250] sm:$0xff]
    %v1156 = vld [vmem:[#allocation5 + $0x258] sm:$0xff]
    %v1157 = vld [vmem:[#allocation5 + $0x260] sm:$0xff]
    %v1158 = vld [vmem:[#allocation5 + $0x268] sm:$0xff]
    %v1159 = vld [vmem:[#allocation5 + $0x270] sm:$0xff]
    %v1160 = vld [vmem:[#allocation5 + $0x278] sm:$0xff]
    %v1161 = vld [vmem:[#allocation5 + $0x280] sm:$0xff]
    %v1162 = vld [vmem:[#allocation5 + $0x288] sm:$0xff]
    %v1163 = vld [vmem:[#allocation5 + $0x290] sm:$0xff]
    %v1164 = vld [vmem:[#allocation5 + $0x298] sm:$0xff]
    %v1165 = vld [vmem:[#allocation5 + $0x2a0] sm:$0xff]
    %v1166 = vld [vmem:[#allocation5 + $0x2a8] sm:$0xff]
    %v1167 = vld [vmem:[#allocation5 + $0x2b0] sm:$0xff]
    %v1168 = vld [vmem:[#allocation5 + $0x2b8] sm:$0xff]
    %v1169 = vld [vmem:[#allocation5 + $0x2c0] sm:$0xff]
    %v1170 = vld [vmem:[#allocation5 + $0x2c8] sm:$0xff]
    %v1171 = vld [vmem:[#allocation5 + $0x2d0] sm:$0xff]
    %v1172 = vld [vmem:[#allocation5 + $0x2d8] sm:$0xff]
    %v1173 = vld [vmem:[#allocation5 + $0x2e0] sm:$0xff]
    %v1174 = vld [vmem:[#allocation5 + $0x2e8] sm:$0xff]
    %v1175 = vld [vmem:[#allocation5 + $0x2f0] sm:$0xff]
    %v1176 = vld [vmem:[#allocation5 + $0x2f8] sm:$0xff]
    %v1177 = vld [vmem:[#allocation5 + $0x300] sm:$0xff]
    %v1178 = vld [vmem:[#allocation5 + $0x308] sm:$0xff]
    %v1179 = vld [vmem:[#allocation5 + $0x310] sm:$0xff]
    %v1180 = vld [vmem:[#allocation5 + $0x318] sm:$0xff]
    %v1181 = vld [vmem:[#allocation5 + $0x320] sm:$0xff]
    %v1182 = vld [vmem:[#allocation5 + $0x328] sm:$0xff]
    %v1183 = vld [vmem:[#allocation5 + $0x330] sm:$0xff]
    %v1184 = vld [vmem:[#allocation5 + $0x338] sm:$0xff]
    %v1185 = vld [vmem:[#allocation5 + $0x340] sm:$0xff]
    %v1186 = vld [vmem:[#allocation5 + $0x348] sm:$0xff]
    %v1187 = vld [vmem:[#allocation5 + $0x350] sm:$0xff]
    %v1188 = vld [vmem:[#allocation5 + $0x358] sm:$0xff]
    %v1189 = vld [vmem:[#allocation5 + $0x360] sm:$0xff]
    %v1190 = vld [vmem:[#allocation5 + $0x368] sm:$0xff]
    %v1191 = vld [vmem:[#allocation5 + $0x370] sm:$0xff]
    %v1192 = vld [vmem:[#allocation5 + $0x378] sm:$0xff]
    %v1193 = vld [vmem:[#allocation5 + $0x380] sm:$0xff]
    %v1194 = vld [vmem:[#allocation5 + $0x388] sm:$0xff]
    %v1195 = vld [vmem:[#allocation5 + $0x390] sm:$0xff]
    %v1196 = vld [vmem:[#allocation5 + $0x398] sm:$0xff]
    %v1197 = vld [vmem:[#allocation5 + $0x3a0] sm:$0xff]
    %v1198 = vld [vmem:[#allocation5 + $0x3a8] sm:$0xff]
    %v1199 = vld [vmem:[#allocation5 + $0x3b0] sm:$0xff]
    %v1200 = vld [vmem:[#allocation5 + $0x3b8] sm:$0xff]
    %v1201 = vld [vmem:[#allocation5 + $0x3c0] sm:$0xff]
    %v1202 = vld [vmem:[#allocation5 + $0x3c8] sm:$0xff]
    %v1203 = vld [vmem:[#allocation5 + $0x3d0] sm:$0xff]
    %v1204 = vld [vmem:[#allocation5 + $0x3d8] sm:$0xff]
    %v1205 = vld [vmem:[#allocation5 + $0x3e0] sm:$0xff]
    %v1206 = vld [vmem:[#allocation5 + $0x3e8] sm:$0xff]
    %v1207 = vld [vmem:[#allocation5 + $0x3f0] sm:$0xff]
    %v1208 = vld [vmem:[#allocation5 + $0x3f8] sm:$0xff]
    %v1337 = vunpack.c.l.b16 %v1081
    %v1338 = vunpack.c.h.b16 %v1081
    %v1339 = vunpack.c.l.b16 %v1082
    %v1340 = vunpack.c.h.b16 %v1082
    %v1341 = vunpack.c.l.b16 %v1083
    %v1342 = vunpack.c.h.b16 %v1083
    %v1343 = vunpack.c.l.b16 %v1084
    %v1344 = vunpack.c.h.b16 %v1084
    %v1345 = vunpack.c.l.b16 %v1085
    %v1346 = vunpack.c.h.b16 %v1085
    %v1347 = vunpack.c.l.b16 %v1086
    %v1348 = vunpack.c.h.b16 %v1086
    %v1349 = vunpack.c.l.b16 %v1087
    %v1350 = vunpack.c.h.b16 %v1087
    %v1351 = vunpack.c.l.b16 %v1088
    %v1352 = vunpack.c.h.b16 %v1088
    %v1353 = vunpack.c.l.b16 %v1089
    %v1354 = vunpack.c.h.b16 %v1089
    %v1355 = vunpack.c.l.b16 %v1090
    %v1356 = vunpack.c.h.b16 %v1090
    %v1357 = vunpack.c.l.b16 %v1091
    %v1358 = vunpack.c.h.b16 %v1091
    %v1359 = vunpack.c.l.b16 %v1092
    %v1360 = vunpack.c.h.b16 %v1092
    %v1361 = vunpack.c.l.b16 %v1093
    %v1362 = vunpack.c.h.b16 %v1093
    %v1363 = vunpack.c.l.b16 %v1094
    %v1364 = vunpack.c.h.b16 %v1094
    %v1365 = vunpack.c.l.b16 %v1095
    %v1366 = vunpack.c.h.b16 %v1095
    %v1367 = vunpack.c.l.b16 %v1096
    %v1368 = vunpack.c.h.b16 %v1096
    %v1369 = vunpack.c.l.b16 %v1097
    %v1370 = vunpack.c.h.b16 %v1097
    %v1371 = vunpack.c.l.b16 %v1098
    %v1372 = vunpack.c.h.b16 %v1098
    %v1373 = vunpack.c.l.b16 %v1099
    %v1374 = vunpack.c.h.b16 %v1099
    %v1375 = vunpack.c.l.b16 %v1100
    %v1376 = vunpack.c.h.b16 %v1100
    %v1377 = vunpack.c.l.b16 %v1101
    %v1378 = vunpack.c.h.b16 %v1101
    %v1379 = vunpack.c.l.b16 %v1102
    %v1380 = vunpack.c.h.b16 %v1102
    %v1381 = vunpack.c.l.b16 %v1103
    %v1382 = vunpack.c.h.b16 %v1103
    %v1383 = vunpack.c.l.b16 %v1104
    %v1384 = vunpack.c.h.b16 %v1104
    %v1385 = vunpack.c.l.b16 %v1105
    %v1386 = vunpack.c.h.b16 %v1105
    %v1387 = vunpack.c.l.b16 %v1106
    %v1388 = vunpack.c.h.b16 %v1106
    %v1389 = vunpack.c.l.b16 %v1107
    %v1390 = vunpack.c.h.b16 %v1107
    %v1391 = vunpack.c.l.b16 %v1108
    %v1392 = vunpack.c.h.b16 %v1108
    %v1393 = vunpack.c.l.b16 %v1109
    %v1394 = vunpack.c.h.b16 %v1109
    %v1395 = vunpack.c.l.b16 %v1110
    %v1396 = vunpack.c.h.b16 %v1110
    %v1397 = vunpack.c.l.b16 %v1111
    %v1398 = vunpack.c.h.b16 %v1111
    %v1399 = vunpack.c.l.b16 %v1112
    %v1400 = vunpack.c.h.b16 %v1112
    %v1401 = vunpack.c.l.b16 %v1113
    %v1402 = vunpack.c.h.b16 %v1113
    %v1403 = vunpack.c.l.b16 %v1114
    %v1404 = vunpack.c.h.b16 %v1114
    %v1405 = vunpack.c.l.b16 %v1115
    %v1406 = vunpack.c.h.b16 %v1115
    %v1407 = vunpack.c.l.b16 %v1116
    %v1408 = vunpack.c.h.b16 %v1116
    %v1409 = vunpack.c.l.b16 %v1117
    %v1410 = vunpack.c.h.b16 %v1117
    %v1411 = vunpack.c.l.b16 %v1118
    %v1412 = vunpack.c.h.b16 %v1118
    %v1413 = vunpack.c.l.b16 %v1119
    %v1414 = vunpack.c.h.b16 %v1119
    %v1415 = vunpack.c.l.b16 %v1120
    %v1416 = vunpack.c.h.b16 %v1120
    %v1417 = vunpack.c.l.b16 %v1121
    %v1418 = vunpack.c.h.b16 %v1121
    %v1419 = vunpack.c.l.b16 %v1122
    %v1420 = vunpack.c.h.b16 %v1122
    %v1421 = vunpack.c.l.b16 %v1123
    %v1422 = vunpack.c.h.b16 %v1123
    %v1423 = vunpack.c.l.b16 %v1124
    %v1424 = vunpack.c.h.b16 %v1124
    %v1425 = vunpack.c.l.b16 %v1125
    %v1426 = vunpack.c.h.b16 %v1125
    %v1427 = vunpack.c.l.b16 %v1126
    %v1428 = vunpack.c.h.b16 %v1126
    %v1429 = vunpack.c.l.b16 %v1127
    %v1430 = vunpack.c.h.b16 %v1127
    %v1431 = vunpack.c.l.b16 %v1128
    %v1432 = vunpack.c.h.b16 %v1128
    %v1433 = vunpack.c.l.b16 %v1129
    %v1434 = vunpack.c.h.b16 %v1129
    %v1435 = vunpack.c.l.b16 %v1130
    %v1436 = vunpack.c.h.b16 %v1130
    %v1437 = vunpack.c.l.b16 %v1131
    %v1438 = vunpack.c.h.b16 %v1131
    %v1439 = vunpack.c.l.b16 %v1132
    %v1440 = vunpack.c.h.b16 %v1132
    %v1441 = vunpack.c.l.b16 %v1133
    %v1442 = vunpack.c.h.b16 %v1133
    %v1443 = vunpack.c.l.b16 %v1134
    %v1444 = vunpack.c.h.b16 %v1134
    %v1445 = vunpack.c.l.b16 %v1135
    %v1446 = vunpack.c.h.b16 %v1135
    %v1447 = vunpack.c.l.b16 %v1136
    %v1448 = vunpack.c.h.b16 %v1136
    %v1449 = vunpack.c.l.b16 %v1137
    %v1450 = vunpack.c.h.b16 %v1137
    %v1451 = vunpack.c.l.b16 %v1138
    %v1452 = vunpack.c.h.b16 %v1138
    %v1453 = vunpack.c.l.b16 %v1139
    %v1454 = vunpack.c.h.b16 %v1139
    %v1455 = vunpack.c.l.b16 %v1140
    %v1456 = vunpack.c.h.b16 %v1140
    %v1457 = vunpack.c.l.b16 %v1141
    %v1458 = vunpack.c.h.b16 %v1141
    %v1459 = vunpack.c.l.b16 %v1142
    %v1460 = vunpack.c.h.b16 %v1142
    %v1461 = vunpack.c.l.b16 %v1143
    %v1462 = vunpack.c.h.b16 %v1143
    %v1463 = vunpack.c.l.b16 %v1144
    %v1464 = vunpack.c.h.b16 %v1144
    %v1465 = vunpack.c.l.b16 %v1145
    %v1466 = vunpack.c.h.b16 %v1145
    %v1467 = vunpack.c.l.b16 %v1146
    %v1468 = vunpack.c.h.b16 %v1146
    %v1469 = vunpack.c.l.b16 %v1147
    %v1470 = vunpack.c.h.b16 %v1147
    %v1471 = vunpack.c.l.b16 %v1148
    %v1472 = vunpack.c.h.b16 %v1148
    %v1473 = vunpack.c.l.b16 %v1149
    %v1474 = vunpack.c.h.b16 %v1149
    %v1475 = vunpack.c.l.b16 %v1150
    %v1476 = vunpack.c.h.b16 %v1150
    %v1477 = vunpack.c.l.b16 %v1151
    %v1478 = vunpack.c.h.b16 %v1151
    %v1479 = vunpack.c.l.b16 %v1152
    %v1480 = vunpack.c.h.b16 %v1152
    %v1481 = vunpack.c.l.b16 %v1153
    %v1482 = vunpack.c.h.b16 %v1153
    %v1483 = vunpack.c.l.b16 %v1154
    %v1484 = vunpack.c.h.b16 %v1154
    %v1485 = vunpack.c.l.b16 %v1155
    %v1486 = vunpack.c.h.b16 %v1155
    %v1487 = vunpack.c.l.b16 %v1156
    %v1488 = vunpack.c.h.b16 %v1156
    %v1489 = vunpack.c.l.b16 %v1157
    %v1490 = vunpack.c.h.b16 %v1157
    %v1491 = vunpack.c.l.b16 %v1158
    %v1492 = vunpack.c.h.b16 %v1158
    %v1493 = vunpack.c.l.b16 %v1159
    %v1494 = vunpack.c.h.b16 %v1159
    %v1495 = vunpack.c.l.b16 %v1160
    %v1496 = vunpack.c.h.b16 %v1160
    %v1497 = vunpack.c.l.b16 %v1161
    %v1498 = vunpack.c.h.b16 %v1161
    %v1499 = vunpack.c.l.b16 %v1162
    %v1500 = vunpack.c.h.b16 %v1162
    %v1501 = vunpack.c.l.b16 %v1163
    %v1502 = vunpack.c.h.b16 %v1163
    %v1503 = vunpack.c.l.b16 %v1164
    %v1504 = vunpack.c.h.b16 %v1164
    %v1505 = vunpack.c.l.b16 %v1165
    %v1506 = vunpack.c.h.b16 %v1165
    %v1507 = vunpack.c.l.b16 %v1166
    %v1508 = vunpack.c.h.b16 %v1166
    %v1509 = vunpack.c.l.b16 %v1167
    %v1510 = vunpack.c.h.b16 %v1167
    %v1511 = vunpack.c.l.b16 %v1168
    %v1512 = vunpack.c.h.b16 %v1168
    %v1513 = vunpack.c.l.b16 %v1169
    %v1514 = vunpack.c.h.b16 %v1169
    %v1515 = vunpack.c.l.b16 %v1170
    %v1516 = vunpack.c.h.b16 %v1170
    %v1517 = vunpack.c.l.b16 %v1171
    %v1518 = vunpack.c.h.b16 %v1171
    %v1519 = vunpack.c.l.b16 %v1172
    %v1520 = vunpack.c.h.b16 %v1172
    %v1521 = vunpack.c.l.b16 %v1173
    %v1522 = vunpack.c.h.b16 %v1173
    %v1523 = vunpack.c.l.b16 %v1174
    %v1524 = vunpack.c.h.b16 %v1174
    %v1525 = vunpack.c.l.b16 %v1175
    %v1526 = vunpack.c.h.b16 %v1175
    %v1527 = vunpack.c.l.b16 %v1176
    %v1528 = vunpack.c.h.b16 %v1176
    %v1529 = vunpack.c.l.b16 %v1177
    %v1530 = vunpack.c.h.b16 %v1177
    %v1531 = vunpack.c.l.b16 %v1178
    %v1532 = vunpack.c.h.b16 %v1178
    %v1533 = vunpack.c.l.b16 %v1179
    %v1534 = vunpack.c.h.b16 %v1179
    %v1535 = vunpack.c.l.b16 %v1180
    %v1536 = vunpack.c.h.b16 %v1180
    %v1537 = vunpack.c.l.b16 %v1181
    %v1538 = vunpack.c.h.b16 %v1181
    %v1539 = vunpack.c.l.b16 %v1182
    %v1540 = vunpack.c.h.b16 %v1182
    %v1541 = vunpack.c.l.b16 %v1183
    %v1542 = vunpack.c.h.b16 %v1183
    %v1543 = vunpack.c.l.b16 %v1184
    %v1544 = vunpack.c.h.b16 %v1184
    %v1545 = vunpack.c.l.b16 %v1185
    %v1546 = vunpack.c.h.b16 %v1185
    %v1547 = vunpack.c.l.b16 %v1186
    %v1548 = vunpack.c.h.b16 %v1186
    %v1549 = vunpack.c.l.b16 %v1187
    %v1550 = vunpack.c.h.b16 %v1187
    %v1551 = vunpack.c.l.b16 %v1188
    %v1552 = vunpack.c.h.b16 %v1188
    %v1553 = vunpack.c.l.b16 %v1189
    %v1554 = vunpack.c.h.b16 %v1189
    %v1555 = vunpack.c.l.b16 %v1190
    %v1556 = vunpack.c.h.b16 %v1190
    %v1557 = vunpack.c.l.b16 %v1191
    %v1558 = vunpack.c.h.b16 %v1191
    %v1559 = vunpack.c.l.b16 %v1192
    %v1560 = vunpack.c.h.b16 %v1192
    %v1561 = vunpack.c.l.b16 %v1193
    %v1562 = vunpack.c.h.b16 %v1193
    %v1563 = vunpack.c.l.b16 %v1194
    %v1564 = vunpack.c.h.b16 %v1194
    %v1565 = vunpack.c.l.b16 %v1195
    %v1566 = vunpack.c.h.b16 %v1195
    %v1567 = vunpack.c.l.b16 %v1196
    %v1568 = vunpack.c.h.b16 %v1196
    %v1569 = vunpack.c.l.b16 %v1197
    %v1570 = vunpack.c.h.b16 %v1197
    %v1571 = vunpack.c.l.b16 %v1198
    %v1572 = vunpack.c.h.b16 %v1198
    %v1573 = vunpack.c.l.b16 %v1199
    %v1574 = vunpack.c.h.b16 %v1199
    %v1575 = vunpack.c.l.b16 %v1200
    %v1576 = vunpack.c.h.b16 %v1200
    %v1577 = vunpack.c.l.b16 %v1201
    %v1578 = vunpack.c.h.b16 %v1201
    %v1579 = vunpack.c.l.b16 %v1202
    %v1580 = vunpack.c.h.b16 %v1202
    %v1581 = vunpack.c.l.b16 %v1203
    %v1582 = vunpack.c.h.b16 %v1203
    %v1583 = vunpack.c.l.b16 %v1204
    %v1584 = vunpack.c.h.b16 %v1204
    %v1585 = vunpack.c.l.b16 %v1205
    %v1586 = vunpack.c.h.b16 %v1205
    %v1587 = vunpack.c.l.b16 %v1206
    %v1588 = vunpack.c.h.b16 %v1206
    %v1589 = vunpack.c.l.b16 %v1207
    %v1590 = vunpack.c.h.b16 %v1207
    %v1591 = vunpack.c.l.b16 %v1208
    %v1592 = vunpack.c.h.b16 %v1208
    %v1593 = vpack.c.b16 %v1341, %v1337
    %v1594 = vpack.c.b16 %v1342, %v1338
    %v1595 = vpack.c.b16 %v1343, %v1339
    %v1596 = vpack.c.b16 %v1344, %v1340
    %v1597 = vpack.c.b16 %v1349, %v1345
    %v1598 = vpack.c.b16 %v1350, %v1346
    %v1599 = vpack.c.b16 %v1351, %v1347
    %v1600 = vpack.c.b16 %v1352, %v1348
    %v1601 = vpack.c.b16 %v1357, %v1353
    %v1602 = vpack.c.b16 %v1358, %v1354
    %v1603 = vpack.c.b16 %v1359, %v1355
    %v1604 = vpack.c.b16 %v1360, %v1356
    %v1605 = vpack.c.b16 %v1365, %v1361
    %v1606 = vpack.c.b16 %v1366, %v1362
    %v1607 = vpack.c.b16 %v1367, %v1363
    %v1608 = vpack.c.b16 %v1368, %v1364
    %v1609 = vpack.c.b16 %v1373, %v1369
    %v1610 = vpack.c.b16 %v1374, %v1370
    %v1611 = vpack.c.b16 %v1375, %v1371
    %v1612 = vpack.c.b16 %v1376, %v1372
    %v1613 = vpack.c.b16 %v1381, %v1377
    %v1614 = vpack.c.b16 %v1382, %v1378
    %v1615 = vpack.c.b16 %v1383, %v1379
    %v1616 = vpack.c.b16 %v1384, %v1380
    %v1617 = vpack.c.b16 %v1389, %v1385
    %v1618 = vpack.c.b16 %v1390, %v1386
    %v1619 = vpack.c.b16 %v1391, %v1387
    %v1620 = vpack.c.b16 %v1392, %v1388
    %v1621 = vpack.c.b16 %v1397, %v1393
    %v1622 = vpack.c.b16 %v1398, %v1394
    %v1623 = vpack.c.b16 %v1399, %v1395
    %v1624 = vpack.c.b16 %v1400, %v1396
    %v1625 = vpack.c.b16 %v1405, %v1401
    %v1626 = vpack.c.b16 %v1406, %v1402
    %v1627 = vpack.c.b16 %v1407, %v1403
    %v1628 = vpack.c.b16 %v1408, %v1404
    %v1629 = vpack.c.b16 %v1413, %v1409
    %v1630 = vpack.c.b16 %v1414, %v1410
    %v1631 = vpack.c.b16 %v1415, %v1411
    %v1632 = vpack.c.b16 %v1416, %v1412
    %v1633 = vpack.c.b16 %v1421, %v1417
    %v1634 = vpack.c.b16 %v1422, %v1418
    %v1635 = vpack.c.b16 %v1423, %v1419
    %v1636 = vpack.c.b16 %v1424, %v1420
    %v1637 = vpack.c.b16 %v1429, %v1425
    %v1638 = vpack.c.b16 %v1430, %v1426
    %v1639 = vpack.c.b16 %v1431, %v1427
    %v1640 = vpack.c.b16 %v1432, %v1428
    %v1641 = vpack.c.b16 %v1437, %v1433
    %v1642 = vpack.c.b16 %v1438, %v1434
    %v1643 = vpack.c.b16 %v1439, %v1435
    %v1644 = vpack.c.b16 %v1440, %v1436
    %v1645 = vpack.c.b16 %v1445, %v1441
    %v1646 = vpack.c.b16 %v1446, %v1442
    %v1647 = vpack.c.b16 %v1447, %v1443
    %v1648 = vpack.c.b16 %v1448, %v1444
    %v1649 = vpack.c.b16 %v1453, %v1449
    %v1650 = vpack.c.b16 %v1454, %v1450
    %v1651 = vpack.c.b16 %v1455, %v1451
    %v1652 = vpack.c.b16 %v1456, %v1452
    %v1653 = vpack.c.b16 %v1461, %v1457
    %v1654 = vpack.c.b16 %v1462, %v1458
    %v1655 = vpack.c.b16 %v1463, %v1459
    %v1656 = vpack.c.b16 %v1464, %v1460
    %v1657 = vpack.c.b16 %v1469, %v1465
    %v1658 = vpack.c.b16 %v1470, %v1466
    %v1659 = vpack.c.b16 %v1471, %v1467
    %v1660 = vpack.c.b16 %v1472, %v1468
    %v1661 = vpack.c.b16 %v1477, %v1473
    %v1662 = vpack.c.b16 %v1478, %v1474
    %v1663 = vpack.c.b16 %v1479, %v1475
    %v1664 = vpack.c.b16 %v1480, %v1476
    %v1665 = vpack.c.b16 %v1485, %v1481
    %v1666 = vpack.c.b16 %v1486, %v1482
    %v1667 = vpack.c.b16 %v1487, %v1483
    %v1668 = vpack.c.b16 %v1488, %v1484
    %v1669 = vpack.c.b16 %v1493, %v1489
    %v1670 = vpack.c.b16 %v1494, %v1490
    %v1671 = vpack.c.b16 %v1495, %v1491
    %v1672 = vpack.c.b16 %v1496, %v1492
    %v1673 = vpack.c.b16 %v1501, %v1497
    %v1674 = vpack.c.b16 %v1502, %v1498
    %v1675 = vpack.c.b16 %v1503, %v1499
    %v1676 = vpack.c.b16 %v1504, %v1500
    %v1677 = vpack.c.b16 %v1509, %v1505
    %v1678 = vpack.c.b16 %v1510, %v1506
    %v1679 = vpack.c.b16 %v1511, %v1507
    %v1680 = vpack.c.b16 %v1512, %v1508
    %v1681 = vpack.c.b16 %v1517, %v1513
    %v1682 = vpack.c.b16 %v1518, %v1514
    %v1683 = vpack.c.b16 %v1519, %v1515
    %v1684 = vpack.c.b16 %v1520, %v1516
    %v1685 = vpack.c.b16 %v1525, %v1521
    %v1686 = vpack.c.b16 %v1526, %v1522
    %v1687 = vpack.c.b16 %v1527, %v1523
    %v1688 = vpack.c.b16 %v1528, %v1524
    %v1689 = vpack.c.b16 %v1533, %v1529
    %v1690 = vpack.c.b16 %v1534, %v1530
    %v1691 = vpack.c.b16 %v1535, %v1531
    %v1692 = vpack.c.b16 %v1536, %v1532
    %v1693 = vpack.c.b16 %v1541, %v1537
    %v1694 = vpack.c.b16 %v1542, %v1538
    %v1695 = vpack.c.b16 %v1543, %v1539
    %v1696 = vpack.c.b16 %v1544, %v1540
    %v1697 = vpack.c.b16 %v1549, %v1545
    %v1698 = vpack.c.b16 %v1550, %v1546
    %v1699 = vpack.c.b16 %v1551, %v1547
    %v1700 = vpack.c.b16 %v1552, %v1548
    %v1701 = vpack.c.b16 %v1557, %v1553
    %v1702 = vpack.c.b16 %v1558, %v1554
    %v1703 = vpack.c.b16 %v1559, %v1555
    %v1704 = vpack.c.b16 %v1560, %v1556
    %v1705 = vpack.c.b16 %v1565, %v1561
    %v1706 = vpack.c.b16 %v1566, %v1562
    %v1707 = vpack.c.b16 %v1567, %v1563
    %v1708 = vpack.c.b16 %v1568, %v1564
    %v1709 = vpack.c.b16 %v1573, %v1569
    %v1710 = vpack.c.b16 %v1574, %v1570
    %v1711 = vpack.c.b16 %v1575, %v1571
    %v1712 = vpack.c.b16 %v1576, %v1572
    %v1713 = vpack.c.b16 %v1581, %v1577
    %v1714 = vpack.c.b16 %v1582, %v1578
    %v1715 = vpack.c.b16 %v1583, %v1579
    %v1716 = vpack.c.b16 %v1584, %v1580
    %v1717 = vpack.c.b16 %v1589, %v1585
    %v1718 = vpack.c.b16 %v1590, %v1586
    %v1719 = vpack.c.b16 %v1591, %v1587
    %v1720 = vpack.c.b16 %v1592, %v1588
    %1849 = vmatprep.subr.bf16.mxu0 %v1594
    %1850 = vmatpush1.bf16.msra.mxu0 %v1593
    %1851 = vmatprep.subr.bf16.mxu0 %v1598
    %1852 = vmatpush1.bf16.msra.mxu0 %v1597
    %1853 = vmatprep.subr.bf16.mxu0 %v1602
    %1854 = vmatpush1.bf16.msra.mxu0 %v1601
    %1855 = vmatprep.subr.bf16.mxu0 %v1606
    %1856 = vmatpush1.bf16.msra.mxu0 %v1605
    %1857 = vmatprep.subr.bf16.mxu0 %v1610
    %1858 = vmatpush1.bf16.msra.mxu0 %v1609
    %1859 = vmatprep.subr.bf16.mxu0 %v1614
    %1860 = vmatpush1.bf16.msra.mxu0 %v1613
    %1861 = vmatprep.subr.bf16.mxu0 %v1618
    %1862 = vmatpush1.bf16.msra.mxu0 %v1617
    %1863 = vmatprep.subr.bf16.mxu0 %v1622
    %1864 = vmatpush1.bf16.msra.mxu0 %v1621
    %1865 = vmatprep.subr.bf16.mxu0 %v1626
    %1866 = vmatpush1.bf16.msra.mxu0 %v1625
    %1867 = vmatprep.subr.bf16.mxu0 %v1630
    %1868 = vmatpush1.bf16.msra.mxu0 %v1629
    %1869 = vmatprep.subr.bf16.mxu0 %v1634
    %1870 = vmatpush1.bf16.msra.mxu0 %v1633
    %1871 = vmatprep.subr.bf16.mxu0 %v1638
    %1872 = vmatpush1.bf16.msra.mxu0 %v1637
    %1873 = vmatprep.subr.bf16.mxu0 %v1642
    %1874 = vmatpush1.bf16.msra.mxu0 %v1641
    %1875 = vmatprep.subr.bf16.mxu0 %v1646
    %1876 = vmatpush1.bf16.msra.mxu0 %v1645
    %1877 = vmatprep.subr.bf16.mxu0 %v1650
    %1878 = vmatpush1.bf16.msra.mxu0 %v1649
    %1879 = vmatprep.subr.bf16.mxu0 %v1654
    %1880 = vmatpush1.bf16.msra.mxu0 %v1653
    %1881 = vmatprep.mubr.bf16.mxu0 %v1078
    %1882 = vmatmul.mubr.bf16.gmra.mrb[0].mxu0 %v1077
    %v1883 = vpop.f32.mrb[0].mxu0
    %v1884 = vadd.f32 0.0, %v1883
    %v1885 = vpop.f32.mrb[0].mxu0
    %v1886 = vadd.f32 0.0, %v1885
    %v1887 = vpop.f32.mrb[0].mxu0
    %v1888 = vpop.f32.mrb[0].mxu0
    %1889 = vdwg.mxu0
    %1890 = vmatprep.subr.bf16.mxu0 %v1658
    %1891 = vmatpush1.bf16.msra.mxu0 %v1657
    %1892 = vmatprep.subr.bf16.mxu0 %v1662
    %1893 = vmatpush1.bf16.msra.mxu0 %v1661
    %1894 = vmatprep.subr.bf16.mxu0 %v1666
    %1895 = vmatpush1.bf16.msra.mxu0 %v1665
    %1896 = vmatprep.subr.bf16.mxu0 %v1670
    %1897 = vmatpush1.bf16.msra.mxu0 %v1669
    %1898 = vmatprep.subr.bf16.mxu0 %v1674
    %1899 = vmatpush1.bf16.msra.mxu0 %v1673
    %1900 = vmatprep.subr.bf16.mxu0 %v1678
    %1901 = vmatpush1.bf16.msra.mxu0 %v1677
    %1902 = vmatprep.subr.bf16.mxu0 %v1682
    %1903 = vmatpush1.bf16.msra.mxu0 %v1681
    %1904 = vmatprep.subr.bf16.mxu0 %v1686
    %1905 = vmatpush1.bf16.msra.mxu0 %v1685
    %1906 = vmatprep.subr.bf16.mxu0 %v1690
    %1907 = vmatpush1.bf16.msra.mxu0 %v1689
    %1908 = vmatprep.subr.bf16.mxu0 %v1694
    %1909 = vmatpush1.bf16.msra.mxu0 %v1693
    %1910 = vmatprep.subr.bf16.mxu0 %v1698
    %1911 = vmatpush1.bf16.msra.mxu0 %v1697
    %1912 = vmatprep.subr.bf16.mxu0 %v1702
    %1913 = vmatpush1.bf16.msra.mxu0 %v1701
    %1914 = vmatprep.subr.bf16.mxu0 %v1706
    %1915 = vmatpush1.bf16.msra.mxu0 %v1705
    %1916 = vmatprep.subr.bf16.mxu0 %v1710
    %1917 = vmatpush1.bf16.msra.mxu0 %v1709
    %1918 = vmatprep.subr.bf16.mxu0 %v1714
    %1919 = vmatpush1.bf16.msra.mxu0 %v1713
    %1920 = vmatprep.subr.bf16.mxu0 %v1718
    %1921 = vmatpush1.bf16.msra.mxu0 %v1717
    %1922 = vmatprep.mubr.bf16.mxu0 %v1080
    %1923 = vmatmul.mubr.bf16.gmra.mrb[0].mxu0 %v1079
    %v1924 = vpop.f32.mrb[0].mxu0
    %v1925 = vadd.f32 %v1884, %v1924
    %v1926 = vpop.f32.mrb[0].mxu0
    %v1927 = vadd.f32 %v1886, %v1926
    %v1928 = vpop.f32.mrb[0].mxu0
    %v1929 = vpop.f32.mrb[0].mxu0
    %1930 = vdwg.mxu0
    %1931 = vmatprep.subr.bf16.mxu0 %v1596
    %1932 = vmatpush1.bf16.msra.mxu0 %v1595
    %1933 = vmatprep.subr.bf16.mxu0 %v1600
    %1934 = vmatpush1.bf16.msra.mxu0 %v1599
    %1935 = vmatprep.subr.bf16.mxu0 %v1604
    %1936 = vmatpush1.bf16.msra.mxu0 %v1603
    %1937 = vmatprep.subr.bf16.mxu0 %v1608
    %1938 = vmatpush1.bf16.msra.mxu0 %v1607
    %1939 = vmatprep.subr.bf16.mxu0 %v1612
    %1940 = vmatpush1.bf16.msra.mxu0 %v1611
    %1941 = vmatprep.subr.bf16.mxu0 %v1616
    %1942 = vmatpush1.bf16.msra.mxu0 %v1615
    %1943 = vmatprep.subr.bf16.mxu0 %v1620
    %1944 = vmatpush1.bf16.msra.mxu0 %v1619
    %1945 = vmatprep.subr.bf16.mxu0 %v1624
    %1946 = vmatpush1.bf16.msra.mxu0 %v1623
    %1947 = vmatprep.subr.bf16.mxu0 %v1628
    %1948 = vmatpush1.bf16.msra.mxu0 %v1627
    %1949 = vmatprep.subr.bf16.mxu0 %v1632
    %1950 = vmatpush1.bf16.msra.mxu0 %v1631
    %1951 = vmatprep.subr.bf16.mxu0 %v1636
    %1952 = vmatpush1.bf16.msra.mxu0 %v1635
    %1953 = vmatprep.subr.bf16.mxu0 %v1640
    %1954 = vmatpush1.bf16.msra.mxu0 %v1639
    %1955 = vmatprep.subr.bf16.mxu0 %v1644
    %1956 = vmatpush1.bf16.msra.mxu0 %v1643
    %1957 = vmatprep.subr.bf16.mxu0 %v1648
    %1958 = vmatpush1.bf16.msra.mxu0 %v1647
    %1959 = vmatprep.subr.bf16.mxu0 %v1652
    %1960 = vmatpush1.bf16.msra.mxu0 %v1651
    %1961 = vmatprep.subr.bf16.mxu0 %v1656
    %1962 = vmatpush1.bf16.msra.mxu0 %v1655
    %1963 = vmatprep.mubr.bf16.mxu0 %v1078
    %1964 = vmatmul.mubr.bf16.gmra.mrb[0].mxu0 %v1077
    %v1965 = vpop.f32.mrb[0].mxu0
    %v1966 = vadd.f32 0.0, %v1965
    %v1967 = vpop.f32.mrb[0].mxu0
    %v1968 = vadd.f32 0.0, %v1967
    %v1969 = vpop.f32.mrb[0].mxu0
    %v1970 = vpop.f32.mrb[0].mxu0
    %1971 = vdwg.mxu0
    %1972 = vmatprep.subr.bf16.mxu0 %v1660
    %1973 = vmatpush1.bf16.msra.mxu0 %v1659
    %1974 = vmatprep.subr.bf16.mxu0 %v1664
    %1975 = vmatpush1.bf16.msra.mxu0 %v1663
    %1976 = vmatprep.subr.bf16.mxu0 %v1668
    %1977 = vmatpush1.bf16.msra.mxu0 %v1667
    %1978 = vmatprep.subr.bf16.mxu0 %v1672
    %1979 = vmatpush1.bf16.msra.mxu0 %v1671
    %1980 = vmatprep.subr.bf16.mxu0 %v1676
    %1981 = vmatpush1.bf16.msra.mxu0 %v1675
    %1982 = vmatprep.subr.bf16.mxu0 %v1680
    %1983 = vmatpush1.bf16.msra.mxu0 %v1679
    %1984 = vmatprep.subr.bf16.mxu0 %v1684
    %1985 = vmatpush1.bf16.msra.mxu0 %v1683
    %1986 = vmatprep.subr.bf16.mxu0 %v1688
    %1987 = vmatpush1.bf16.msra.mxu0 %v1687
    %1988 = vmatprep.subr.bf16.mxu0 %v1692
    %1989 = vmatpush1.bf16.msra.mxu0 %v1691
    %1990 = vmatprep.subr.bf16.mxu0 %v1696
    %1991 = vmatpush1.bf16.msra.mxu0 %v1695
    %1992 = vmatprep.subr.bf16.mxu0 %v1700
    %1993 = vmatpush1.bf16.msra.mxu0 %v1699
    %1994 = vmatprep.subr.bf16.mxu0 %v1704
    %1995 = vmatpush1.bf16.msra.mxu0 %v1703
    %1996 = vmatprep.subr.bf16.mxu0 %v1708
    %1997 = vmatpush1.bf16.msra.mxu0 %v1707
    %1998 = vmatprep.subr.bf16.mxu0 %v1712
    %1999 = vmatpush1.bf16.msra.mxu0 %v1711
    %2000 = vmatprep.subr.bf16.mxu0 %v1716
    %2001 = vmatpush1.bf16.msra.mxu0 %v1715
    %2002 = vmatprep.subr.bf16.mxu0 %v1720
    %2003 = vmatpush1.bf16.msra.mxu0 %v1719
    %2004 = vmatprep.mubr.bf16.mxu0 %v1080
    %2005 = vmatmul.mubr.bf16.gmra.mrb[0].mxu0 %v1079
    %v2006 = vpop.f32.mrb[0].mxu0
    %v2007 = vadd.f32 %v1966, %v2006
    %v2008 = vpop.f32.mrb[0].mxu0
    %v2009 = vadd.f32 %v1968, %v2008
    %v2010 = vpop.f32.mrb[0].mxu0
    %v2011 = vpop.f32.mrb[0].mxu0
    %2012 = vdwg.mxu0
    %s2013 = scalar_lea.vmem %s7, 28
    %v2014 = vld [vmem:[%s2013] ss:$4 sm:$0xf]
    %s2015 = scalar_lea.vmem %s7, 29
    %v2016 = vld [vmem:[%s2015] ss:$4 sm:$0xf]
    %v2017 = vrot.slane %v1925, 4
    %v2018 = vadd.f32 %v1925, %v2017
    %v2019 = vrot.slane %v2018, 2
    %v2020 = vadd.f32 %v2018, %v2019
    %v2021 = vrot.slane %v2020, 1
    %v2022 = vadd.f32 %v2020, %v2021
    %v2023 = vrot.slane %v1927, 4
    %v2024 = vadd.f32 %v1927, %v2023
    %v2025 = vrot.slane %v2024, 2
    %v2026 = vadd.f32 %v2024, %v2025
    %v2027 = vrot.slane %v2026, 1
    %v2028 = vadd.f32 %v2026, %v2027
    %v2029 = vrot.slane %v2007, 4
    %v2030 = vadd.f32 %v2007, %v2029
    %v2031 = vrot.slane %v2030, 2
    %v2032 = vadd.f32 %v2030, %v2031
    %v2033 = vrot.slane %v2032, 1
    %v2034 = vadd.f32 %v2032, %v2033
    %v2035 = vrot.slane %v2009, 4
    %v2036 = vadd.f32 %v2009, %v2035
    %v2037 = vrot.slane %v2036, 2
    %v2038 = vadd.f32 %v2036, %v2037
    %v2039 = vrot.slane %v2038, 1
    %v2040 = vadd.f32 %v2038, %v2039
    %v2041 = vmul.f32 %v2022, %v142
    %v2042 = vmul.f32 %v2028, %v142
    %v2043 = vmul.f32 %v2034, %v142
    %v2044 = vmul.f32 %v2040, %v142
    %v2045 = vsub.f32 %v1925, %v2041
    %v2046 = vsub.f32 %v1927, %v2042
    %v2047 = vsub.f32 %v2007, %v2043
    %v2048 = vsub.f32 %v2009, %v2044
    %v2049 = vmul.f32 %v2045, %v2045
    %v2050 = vmul.f32 %v2046, %v2046
    %v2051 = vmul.f32 %v2047, %v2047
    %v2052 = vmul.f32 %v2048, %v2048
    %v2053 = vrot.slane %v2049, 4
    %v2054 = vadd.f32 %v2049, %v2053
    %v2055 = vrot.slane %v2054, 2
    %v2056 = vadd.f32 %v2054, %v2055
    %v2057 = vrot.slane %v2056, 1
    %v2058 = vadd.f32 %v2056, %v2057
    %v2059 = vrot.slane %v2050, 4
    %v2060 = vadd.f32 %v2050, %v2059
    %v2061 = vrot.slane %v2060, 2
    %v2062 = vadd.f32 %v2060, %v2061
    %v2063 = vrot.slane %v2062, 1
    %v2064 = vadd.f32 %v2062, %v2063
    %v2065 = vrot.slane %v2051, 4
    %v2066 = vadd.f32 %v2051, %v2065
    %v2067 = vrot.slane %v2066, 2
    %v2068 = vadd.f32 %v2066, %v2067
    %v2069 = vrot.slane %v2068, 1
    %v2070 = vadd.f32 %v2068, %v2069
    %v2071 = vrot.slane %v2052, 4
    %v2072 = vadd.f32 %v2052, %v2071
    %v2073 = vrot.slane %v2072, 2
    %v2074 = vadd.f32 %v2072, %v2073
    %v2075 = vrot.slane %v2074, 1
    %v2076 = vadd.f32 %v2074, %v2075
    %v2077 = vmul.f32 %v2058, %v142
    %v2078 = vmul.f32 %v2064, %v142
    %v2079 = vmul.f32 %v2070, %v142
    %v2080 = vmul.f32 %v2076, %v142
    %v2081 = vadd.f32 %v2077, 1e-05
    %v2082 = vadd.f32 %v2078, 1e-05
    %v2083 = vadd.f32 %v2079, 1e-05
    %v2084 = vadd.f32 %v2080, 1e-05
    %v2085 = vrsqrt.pop %v2081
    %v2086 = vrsqrt.pop %v2082
    %v2087 = vrsqrt.pop %v2083
    %v2088 = vrsqrt.pop %v2084
    %v2093 = vcombine.low %v2085, %v2086
    %v2094 = vcombine.low %v2087, %v2088
    %v2096 = vunpack.c.l.s4 1966171168
    %v2097 = vunpack.c.0.s8 %v2096
    %v2098 = vlaneseq
    %v2099 = vshrl.u32 %v2098, 7
    %v2100 = vsub.s32 %v2097, %v2099
    %v2101 = vrot.slane %v2093, %v2100
    %v2103 = vunpack.c.l.s4 1966171168
    %v2104 = vunpack.c.0.s8 %v2103
    %v2105 = vlaneseq
    %v2106 = vshrl.u32 %v2105, 7
    %v2107 = vsub.s32 %v2104, %v2106
    %v2108 = vrot.slane %v2094, %v2107
    %v2109 = vcombine.low %v2101, %v2108
    %v2111 = vunpack.c.l.s4 1966171168
    %v2112 = vunpack.c.0.s8 %v2111
    %v2113 = vlaneseq
    %v2114 = vshrl.u32 %v2113, 7
    %v2115 = vsub.s32 %v2112, %v2114
    %v2116 = vrot.slane %v2109, %v2115
    %v2118 = vmul.f32 %v2014, %v2116
    %v2120 = vlaneseq
    %v2121 = vshrl.u32 %v2120, 7
    %v2122 = vsub.s32 0, %v2121
    %v2123 = vrot.slane %v2118, %v2122
    %v2124 = vlaneseq
    %v2125 = vshrl.u32 %v2124, 7
    %v2126 = vsub.s32 1, %v2125
    %v2127 = vrot.slane %v2118, %v2126
    %v2128 = vlaneseq
    %v2129 = vshrl.u32 %v2128, 7
    %v2130 = vsub.s32 2, %v2129
    %v2131 = vrot.slane %v2118, %v2130
    %v2132 = vlaneseq
    %v2133 = vshrl.u32 %v2132, 7
    %v2134 = vsub.s32 3, %v2133
    %v2135 = vrot.slane %v2118, %v2134
    %v2140 = vmul.f32 %v2041, %v2123
    %v2141 = vmul.f32 %v2042, %v2127
    %v2142 = vmul.f32 %v2043, %v2131
    %v2143 = vmul.f32 %v2044, %v2135
    %v2148 = vcombine.low %v2140, %v2141
    %v2149 = vcombine.low %v2142, %v2143
    %v2151 = vunpack.c.l.s4 1966171168
    %v2152 = vunpack.c.0.s8 %v2151
    %v2153 = vlaneseq
    %v2154 = vshrl.u32 %v2153, 7
    %v2155 = vsub.s32 %v2152, %v2154
    %v2156 = vrot.slane %v2148, %v2155
    %v2158 = vunpack.c.l.s4 1966171168
    %v2159 = vunpack.c.0.s8 %v2158
    %v2160 = vlaneseq
    %v2161 = vshrl.u32 %v2160, 7
    %v2162 = vsub.s32 %v2159, %v2161
    %v2163 = vrot.slane %v2149, %v2162
    %v2164 = vcombine.low %v2156, %v2163
    %v2166 = vunpack.c.l.s4 1966171168
    %v2167 = vunpack.c.0.s8 %v2166
    %v2168 = vlaneseq
    %v2169 = vshrl.u32 %v2168, 7
    %v2170 = vsub.s32 %v2167, %v2169
    %v2171 = vrot.slane %v2164, %v2170
    %v2173 = vsub.f32 %v2016, %v2171
    %v2174 = vmul.f32 %v1925, %v2123
    %v2175 = vmul.f32 %v1927, %v2127
    %v2176 = vmul.f32 %v2007, %v2131
    %v2177 = vmul.f32 %v2009, %v2135
    %v2179 = vlaneseq
    %v2180 = vshrl.u32 %v2179, 7
    %v2181 = vsub.s32 0, %v2180
    %v2182 = vrot.slane %v2173, %v2181
    %v2183 = vlaneseq
    %v2184 = vshrl.u32 %v2183, 7
    %v2185 = vsub.s32 1, %v2184
    %v2186 = vrot.slane %v2173, %v2185
    %v2187 = vlaneseq
    %v2188 = vshrl.u32 %v2187, 7
    %v2189 = vsub.s32 2, %v2188
    %v2190 = vrot.slane %v2173, %v2189
    %v2191 = vlaneseq
    %v2192 = vshrl.u32 %v2191, 7
    %v2193 = vsub.s32 3, %v2192
    %v2194 = vrot.slane %v2173, %v2193
    %v2199 = vadd.f32 %v2174, %v2182
    %v2200 = vadd.f32 %v2175, %v2186
    %v2201 = vadd.f32 %v2176, %v2190
    %v2202 = vadd.f32 %v2177, %v2194
    %v2203 = vmax.f32 %v2199, 0.0
    %v2204 = vmax.f32 %v2200, 0.0
    %v2205 = vmax.f32 %v2201, 0.0
    %v2206 = vmax.f32 %v2202, 0.0
    %v2207 = vpack.c.bf16 %v2203, %v2203
    %v2208 = vpack.c.bf16 %v2204, %v2204
    %v2209 = vpack.c.bf16 %v2205, %v2205
    %v2210 = vpack.c.bf16 %v2206, %v2206
    %v2211 = vld [vmem:[#allocation7] sm:$0xff]
    %v2212 = vld [vmem:[#allocation7 + $0x8] sm:$0xff]
    %v2213 = vld [vmem:[#allocation7 + $0x10] sm:$0xff]
    %v2214 = vld [vmem:[#allocation7 + $0x18] sm:$0xff]
    %v2215 = vld [vmem:[#allocation7 + $0x20] sm:$0xff]
    %v2216 = vld [vmem:[#allocation7 + $0x28] sm:$0xff]
    %v2217 = vld [vmem:[#allocation7 + $0x30] sm:$0xff]
    %v2218 = vld [vmem:[#allocation7 + $0x38] sm:$0xff]
    %v2219 = vld [vmem:[#allocation7 + $0x40] sm:$0xff]
    %v2220 = vld [vmem:[#allocation7 + $0x48] sm:$0xff]
    %v2221 = vld [vmem:[#allocation7 + $0x50] sm:$0xff]
    %v2222 = vld [vmem:[#allocation7 + $0x58] sm:$0xff]
    %v2223 = vld [vmem:[#allocation7 + $0x60] sm:$0xff]
    %v2224 = vld [vmem:[#allocation7 + $0x68] sm:$0xff]
    %v2225 = vld [vmem:[#allocation7 + $0x70] sm:$0xff]
    %v2226 = vld [vmem:[#allocation7 + $0x78] sm:$0xff]
    %v2227 = vld [vmem:[#allocation7 + $0x80] sm:$0xff]
    %v2228 = vld [vmem:[#allocation7 + $0x88] sm:$0xff]
    %v2229 = vld [vmem:[#allocation7 + $0x90] sm:$0xff]
    %v2230 = vld [vmem:[#allocation7 + $0x98] sm:$0xff]
    %v2231 = vld [vmem:[#allocation7 + $0xa0] sm:$0xff]
    %v2232 = vld [vmem:[#allocation7 + $0xa8] sm:$0xff]
    %v2233 = vld [vmem:[#allocation7 + $0xb0] sm:$0xff]
    %v2234 = vld [vmem:[#allocation7 + $0xb8] sm:$0xff]
    %v2235 = vld [vmem:[#allocation7 + $0xc0] sm:$0xff]
    %v2236 = vld [vmem:[#allocation7 + $0xc8] sm:$0xff]
    %v2237 = vld [vmem:[#allocation7 + $0xd0] sm:$0xff]
    %v2238 = vld [vmem:[#allocation7 + $0xd8] sm:$0xff]
    %v2239 = vld [vmem:[#allocation7 + $0xe0] sm:$0xff]
    %v2240 = vld [vmem:[#allocation7 + $0xe8] sm:$0xff]
    %v2241 = vld [vmem:[#allocation7 + $0xf0] sm:$0xff]
    %v2242 = vld [vmem:[#allocation7 + $0xf8] sm:$0xff]
    %v2243 = vld [vmem:[#allocation7 + $0x100] sm:$0xff]
    %v2244 = vld [vmem:[#allocation7 + $0x108] sm:$0xff]
    %v2245 = vld [vmem:[#allocation7 + $0x110] sm:$0xff]
    %v2246 = vld [vmem:[#allocation7 + $0x118] sm:$0xff]
    %v2247 = vld [vmem:[#allocation7 + $0x120] sm:$0xff]
    %v2248 = vld [vmem:[#allocation7 + $0x128] sm:$0xff]
    %v2249 = vld [vmem:[#allocation7 + $0x130] sm:$0xff]
    %v2250 = vld [vmem:[#allocation7 + $0x138] sm:$0xff]
    %v2251 = vld [vmem:[#allocation7 + $0x140] sm:$0xff]
    %v2252 = vld [vmem:[#allocation7 + $0x148] sm:$0xff]
    %v2253 = vld [vmem:[#allocation7 + $0x150] sm:$0xff]
    %v2254 = vld [vmem:[#allocation7 + $0x158] sm:$0xff]
    %v2255 = vld [vmem:[#allocation7 + $0x160] sm:$0xff]
    %v2256 = vld [vmem:[#allocation7 + $0x168] sm:$0xff]
    %v2257 = vld [vmem:[#allocation7 + $0x170] sm:$0xff]
    %v2258 = vld [vmem:[#allocation7 + $0x178] sm:$0xff]
    %v2259 = vld [vmem:[#allocation7 + $0x180] sm:$0xff]
    %v2260 = vld [vmem:[#allocation7 + $0x188] sm:$0xff]
    %v2261 = vld [vmem:[#allocation7 + $0x190] sm:$0xff]
    %v2262 = vld [vmem:[#allocation7 + $0x198] sm:$0xff]
    %v2263 = vld [vmem:[#allocation7 + $0x1a0] sm:$0xff]
    %v2264 = vld [vmem:[#allocation7 + $0x1a8] sm:$0xff]
    %v2265 = vld [vmem:[#allocation7 + $0x1b0] sm:$0xff]
    %v2266 = vld [vmem:[#allocation7 + $0x1b8] sm:$0xff]
    %v2267 = vld [vmem:[#allocation7 + $0x1c0] sm:$0xff]
    %v2268 = vld [vmem:[#allocation7 + $0x1c8] sm:$0xff]
    %v2269 = vld [vmem:[#allocation7 + $0x1d0] sm:$0xff]
    %v2270 = vld [vmem:[#allocation7 + $0x1d8] sm:$0xff]
    %v2271 = vld [vmem:[#allocation7 + $0x1e0] sm:$0xff]
    %v2272 = vld [vmem:[#allocation7 + $0x1e8] sm:$0xff]
    %v2273 = vld [vmem:[#allocation7 + $0x1f0] sm:$0xff]
    %v2274 = vld [vmem:[#allocation7 + $0x1f8] sm:$0xff]
    %v2275 = vld [vmem:[#allocation7 + $0x200] sm:$0xff]
    %v2276 = vld [vmem:[#allocation7 + $0x208] sm:$0xff]
    %v2277 = vld [vmem:[#allocation7 + $0x210] sm:$0xff]
    %v2278 = vld [vmem:[#allocation7 + $0x218] sm:$0xff]
    %v2279 = vld [vmem:[#allocation7 + $0x220] sm:$0xff]
    %v2280 = vld [vmem:[#allocation7 + $0x228] sm:$0xff]
    %v2281 = vld [vmem:[#allocation7 + $0x230] sm:$0xff]
    %v2282 = vld [vmem:[#allocation7 + $0x238] sm:$0xff]
    %v2283 = vld [vmem:[#allocation7 + $0x240] sm:$0xff]
    %v2284 = vld [vmem:[#allocation7 + $0x248] sm:$0xff]
    %v2285 = vld [vmem:[#allocation7 + $0x250] sm:$0xff]
    %v2286 = vld [vmem:[#allocation7 + $0x258] sm:$0xff]
    %v2287 = vld [vmem:[#allocation7 + $0x260] sm:$0xff]
    %v2288 = vld [vmem:[#allocation7 + $0x268] sm:$0xff]
    %v2289 = vld [vmem:[#allocation7 + $0x270] sm:$0xff]
    %v2290 = vld [vmem:[#allocation7 + $0x278] sm:$0xff]
    %v2291 = vld [vmem:[#allocation7 + $0x280] sm:$0xff]
    %v2292 = vld [vmem:[#allocation7 + $0x288] sm:$0xff]
    %v2293 = vld [vmem:[#allocation7 + $0x290] sm:$0xff]
    %v2294 = vld [vmem:[#allocation7 + $0x298] sm:$0xff]
    %v2295 = vld [vmem:[#allocation7 + $0x2a0] sm:$0xff]
    %v2296 = vld [vmem:[#allocation7 + $0x2a8] sm:$0xff]
    %v2297 = vld [vmem:[#allocation7 + $0x2b0] sm:$0xff]
    %v2298 = vld [vmem:[#allocation7 + $0x2b8] sm:$0xff]
    %v2299 = vld [vmem:[#allocation7 + $0x2c0] sm:$0xff]
    %v2300 = vld [vmem:[#allocation7 + $0x2c8] sm:$0xff]
    %v2301 = vld [vmem:[#allocation7 + $0x2d0] sm:$0xff]
    %v2302 = vld [vmem:[#allocation7 + $0x2d8] sm:$0xff]
    %v2303 = vld [vmem:[#allocation7 + $0x2e0] sm:$0xff]
    %v2304 = vld [vmem:[#allocation7 + $0x2e8] sm:$0xff]
    %v2305 = vld [vmem:[#allocation7 + $0x2f0] sm:$0xff]
    %v2306 = vld [vmem:[#allocation7 + $0x2f8] sm:$0xff]
    %v2307 = vld [vmem:[#allocation7 + $0x300] sm:$0xff]
    %v2308 = vld [vmem:[#allocation7 + $0x308] sm:$0xff]
    %v2309 = vld [vmem:[#allocation7 + $0x310] sm:$0xff]
    %v2310 = vld [vmem:[#allocation7 + $0x318] sm:$0xff]
    %v2311 = vld [vmem:[#allocation7 + $0x320] sm:$0xff]
    %v2312 = vld [vmem:[#allocation7 + $0x328] sm:$0xff]
    %v2313 = vld [vmem:[#allocation7 + $0x330] sm:$0xff]
    %v2314 = vld [vmem:[#allocation7 + $0x338] sm:$0xff]
    %v2315 = vld [vmem:[#allocation7 + $0x340] sm:$0xff]
    %v2316 = vld [vmem:[#allocation7 + $0x348] sm:$0xff]
    %v2317 = vld [vmem:[#allocation7 + $0x350] sm:$0xff]
    %v2318 = vld [vmem:[#allocation7 + $0x358] sm:$0xff]
    %v2319 = vld [vmem:[#allocation7 + $0x360] sm:$0xff]
    %v2320 = vld [vmem:[#allocation7 + $0x368] sm:$0xff]
    %v2321 = vld [vmem:[#allocation7 + $0x370] sm:$0xff]
    %v2322 = vld [vmem:[#allocation7 + $0x378] sm:$0xff]
    %v2323 = vld [vmem:[#allocation7 + $0x380] sm:$0xff]
    %v2324 = vld [vmem:[#allocation7 + $0x388] sm:$0xff]
    %v2325 = vld [vmem:[#allocation7 + $0x390] sm:$0xff]
    %v2326 = vld [vmem:[#allocation7 + $0x398] sm:$0xff]
    %v2327 = vld [vmem:[#allocation7 + $0x3a0] sm:$0xff]
    %v2328 = vld [vmem:[#allocation7 + $0x3a8] sm:$0xff]
    %v2329 = vld [vmem:[#allocation7 + $0x3b0] sm:$0xff]
    %v2330 = vld [vmem:[#allocation7 + $0x3b8] sm:$0xff]
    %v2331 = vld [vmem:[#allocation7 + $0x3c0] sm:$0xff]
    %v2332 = vld [vmem:[#allocation7 + $0x3c8] sm:$0xff]
    %v2333 = vld [vmem:[#allocation7 + $0x3d0] sm:$0xff]
    %v2334 = vld [vmem:[#allocation7 + $0x3d8] sm:$0xff]
    %v2335 = vld [vmem:[#allocation7 + $0x3e0] sm:$0xff]
    %v2336 = vld [vmem:[#allocation7 + $0x3e8] sm:$0xff]
    %v2337 = vld [vmem:[#allocation7 + $0x3f0] sm:$0xff]
    %v2338 = vld [vmem:[#allocation7 + $0x3f8] sm:$0xff]
    %v2467 = vunpack.c.l.b16 %v2211
    %v2468 = vunpack.c.h.b16 %v2211
    %v2469 = vunpack.c.l.b16 %v2212
    %v2470 = vunpack.c.h.b16 %v2212
    %v2471 = vunpack.c.l.b16 %v2213
    %v2472 = vunpack.c.h.b16 %v2213
    %v2473 = vunpack.c.l.b16 %v2214
    %v2474 = vunpack.c.h.b16 %v2214
    %v2475 = vunpack.c.l.b16 %v2215
    %v2476 = vunpack.c.h.b16 %v2215
    %v2477 = vunpack.c.l.b16 %v2216
    %v2478 = vunpack.c.h.b16 %v2216
    %v2479 = vunpack.c.l.b16 %v2217
    %v2480 = vunpack.c.h.b16 %v2217
    %v2481 = vunpack.c.l.b16 %v2218
    %v2482 = vunpack.c.h.b16 %v2218
    %v2483 = vunpack.c.l.b16 %v2219
    %v2484 = vunpack.c.h.b16 %v2219
    %v2485 = vunpack.c.l.b16 %v2220
    %v2486 = vunpack.c.h.b16 %v2220
    %v2487 = vunpack.c.l.b16 %v2221
    %v2488 = vunpack.c.h.b16 %v2221
    %v2489 = vunpack.c.l.b16 %v2222
    %v2490 = vunpack.c.h.b16 %v2222
    %v2491 = vunpack.c.l.b16 %v2223
    %v2492 = vunpack.c.h.b16 %v2223
    %v2493 = vunpack.c.l.b16 %v2224
    %v2494 = vunpack.c.h.b16 %v2224
    %v2495 = vunpack.c.l.b16 %v2225
    %v2496 = vunpack.c.h.b16 %v2225
    %v2497 = vunpack.c.l.b16 %v2226
    %v2498 = vunpack.c.h.b16 %v2226
    %v2499 = vunpack.c.l.b16 %v2227
    %v2500 = vunpack.c.h.b16 %v2227
    %v2501 = vunpack.c.l.b16 %v2228
    %v2502 = vunpack.c.h.b16 %v2228
    %v2503 = vunpack.c.l.b16 %v2229
    %v2504 = vunpack.c.h.b16 %v2229
    %v2505 = vunpack.c.l.b16 %v2230
    %v2506 = vunpack.c.h.b16 %v2230
    %v2507 = vunpack.c.l.b16 %v2231
    %v2508 = vunpack.c.h.b16 %v2231
    %v2509 = vunpack.c.l.b16 %v2232
    %v2510 = vunpack.c.h.b16 %v2232
    %v2511 = vunpack.c.l.b16 %v2233
    %v2512 = vunpack.c.h.b16 %v2233
    %v2513 = vunpack.c.l.b16 %v2234
    %v2514 = vunpack.c.h.b16 %v2234
    %v2515 = vunpack.c.l.b16 %v2235
    %v2516 = vunpack.c.h.b16 %v2235
    %v2517 = vunpack.c.l.b16 %v2236
    %v2518 = vunpack.c.h.b16 %v2236
    %v2519 = vunpack.c.l.b16 %v2237
    %v2520 = vunpack.c.h.b16 %v2237
    %v2521 = vunpack.c.l.b16 %v2238
    %v2522 = vunpack.c.h.b16 %v2238
    %v2523 = vunpack.c.l.b16 %v2239
    %v2524 = vunpack.c.h.b16 %v2239
    %v2525 = vunpack.c.l.b16 %v2240
    %v2526 = vunpack.c.h.b16 %v2240
    %v2527 = vunpack.c.l.b16 %v2241
    %v2528 = vunpack.c.h.b16 %v2241
    %v2529 = vunpack.c.l.b16 %v2242
    %v2530 = vunpack.c.h.b16 %v2242
    %v2531 = vunpack.c.l.b16 %v2243
    %v2532 = vunpack.c.h.b16 %v2243
    %v2533 = vunpack.c.l.b16 %v2244
    %v2534 = vunpack.c.h.b16 %v2244
    %v2535 = vunpack.c.l.b16 %v2245
    %v2536 = vunpack.c.h.b16 %v2245
    %v2537 = vunpack.c.l.b16 %v2246
    %v2538 = vunpack.c.h.b16 %v2246
    %v2539 = vunpack.c.l.b16 %v2247
    %v2540 = vunpack.c.h.b16 %v2247
    %v2541 = vunpack.c.l.b16 %v2248
    %v2542 = vunpack.c.h.b16 %v2248
    %v2543 = vunpack.c.l.b16 %v2249
    %v2544 = vunpack.c.h.b16 %v2249
    %v2545 = vunpack.c.l.b16 %v2250
    %v2546 = vunpack.c.h.b16 %v2250
    %v2547 = vunpack.c.l.b16 %v2251
    %v2548 = vunpack.c.h.b16 %v2251
    %v2549 = vunpack.c.l.b16 %v2252
    %v2550 = vunpack.c.h.b16 %v2252
    %v2551 = vunpack.c.l.b16 %v2253
    %v2552 = vunpack.c.h.b16 %v2253
    %v2553 = vunpack.c.l.b16 %v2254
    %v2554 = vunpack.c.h.b16 %v2254
    %v2555 = vunpack.c.l.b16 %v2255
    %v2556 = vunpack.c.h.b16 %v2255
    %v2557 = vunpack.c.l.b16 %v2256
    %v2558 = vunpack.c.h.b16 %v2256
    %v2559 = vunpack.c.l.b16 %v2257
    %v2560 = vunpack.c.h.b16 %v2257
    %v2561 = vunpack.c.l.b16 %v2258
    %v2562 = vunpack.c.h.b16 %v2258
    %v2563 = vunpack.c.l.b16 %v2259
    %v2564 = vunpack.c.h.b16 %v2259
    %v2565 = vunpack.c.l.b16 %v2260
    %v2566 = vunpack.c.h.b16 %v2260
    %v2567 = vunpack.c.l.b16 %v2261
    %v2568 = vunpack.c.h.b16 %v2261
    %v2569 = vunpack.c.l.b16 %v2262
    %v2570 = vunpack.c.h.b16 %v2262
    %v2571 = vunpack.c.l.b16 %v2263
    %v2572 = vunpack.c.h.b16 %v2263
    %v2573 = vunpack.c.l.b16 %v2264
    %v2574 = vunpack.c.h.b16 %v2264
    %v2575 = vunpack.c.l.b16 %v2265
    %v2576 = vunpack.c.h.b16 %v2265
    %v2577 = vunpack.c.l.b16 %v2266
    %v2578 = vunpack.c.h.b16 %v2266
    %v2579 = vunpack.c.l.b16 %v2267
    %v2580 = vunpack.c.h.b16 %v2267
    %v2581 = vunpack.c.l.b16 %v2268
    %v2582 = vunpack.c.h.b16 %v2268
    %v2583 = vunpack.c.l.b16 %v2269
    %v2584 = vunpack.c.h.b16 %v2269
    %v2585 = vunpack.c.l.b16 %v2270
    %v2586 = vunpack.c.h.b16 %v2270
    %v2587 = vunpack.c.l.b16 %v2271
    %v2588 = vunpack.c.h.b16 %v2271
    %v2589 = vunpack.c.l.b16 %v2272
    %v2590 = vunpack.c.h.b16 %v2272
    %v2591 = vunpack.c.l.b16 %v2273
    %v2592 = vunpack.c.h.b16 %v2273
    %v2593 = vunpack.c.l.b16 %v2274
    %v2594 = vunpack.c.h.b16 %v2274
    %v2595 = vunpack.c.l.b16 %v2275
    %v2596 = vunpack.c.h.b16 %v2275
    %v2597 = vunpack.c.l.b16 %v2276
    %v2598 = vunpack.c.h.b16 %v2276
    %v2599 = vunpack.c.l.b16 %v2277
    %v2600 = vunpack.c.h.b16 %v2277
    %v2601 = vunpack.c.l.b16 %v2278
    %v2602 = vunpack.c.h.b16 %v2278
    %v2603 = vunpack.c.l.b16 %v2279
    %v2604 = vunpack.c.h.b16 %v2279
    %v2605 = vunpack.c.l.b16 %v2280
    %v2606 = vunpack.c.h.b16 %v2280
    %v2607 = vunpack.c.l.b16 %v2281
    %v2608 = vunpack.c.h.b16 %v2281
    %v2609 = vunpack.c.l.b16 %v2282
    %v2610 = vunpack.c.h.b16 %v2282
    %v2611 = vunpack.c.l.b16 %v2283
    %v2612 = vunpack.c.h.b16 %v2283
    %v2613 = vunpack.c.l.b16 %v2284
    %v2614 = vunpack.c.h.b16 %v2284
    %v2615 = vunpack.c.l.b16 %v2285
    %v2616 = vunpack.c.h.b16 %v2285
    %v2617 = vunpack.c.l.b16 %v2286
    %v2618 = vunpack.c.h.b16 %v2286
    %v2619 = vunpack.c.l.b16 %v2287
    %v2620 = vunpack.c.h.b16 %v2287
    %v2621 = vunpack.c.l.b16 %v2288
    %v2622 = vunpack.c.h.b16 %v2288
    %v2623 = vunpack.c.l.b16 %v2289
    %v2624 = vunpack.c.h.b16 %v2289
    %v2625 = vunpack.c.l.b16 %v2290
    %v2626 = vunpack.c.h.b16 %v2290
    %v2627 = vunpack.c.l.b16 %v2291
    %v2628 = vunpack.c.h.b16 %v2291
    %v2629 = vunpack.c.l.b16 %v2292
    %v2630 = vunpack.c.h.b16 %v2292
    %v2631 = vunpack.c.l.b16 %v2293
    %v2632 = vunpack.c.h.b16 %v2293
    %v2633 = vunpack.c.l.b16 %v2294
    %v2634 = vunpack.c.h.b16 %v2294
    %v2635 = vunpack.c.l.b16 %v2295
    %v2636 = vunpack.c.h.b16 %v2295
    %v2637 = vunpack.c.l.b16 %v2296
    %v2638 = vunpack.c.h.b16 %v2296
    %v2639 = vunpack.c.l.b16 %v2297
    %v2640 = vunpack.c.h.b16 %v2297
    %v2641 = vunpack.c.l.b16 %v2298
    %v2642 = vunpack.c.h.b16 %v2298
    %v2643 = vunpack.c.l.b16 %v2299
    %v2644 = vunpack.c.h.b16 %v2299
    %v2645 = vunpack.c.l.b16 %v2300
    %v2646 = vunpack.c.h.b16 %v2300
    %v2647 = vunpack.c.l.b16 %v2301
    %v2648 = vunpack.c.h.b16 %v2301
    %v2649 = vunpack.c.l.b16 %v2302
    %v2650 = vunpack.c.h.b16 %v2302
    %v2651 = vunpack.c.l.b16 %v2303
    %v2652 = vunpack.c.h.b16 %v2303
    %v2653 = vunpack.c.l.b16 %v2304
    %v2654 = vunpack.c.h.b16 %v2304
    %v2655 = vunpack.c.l.b16 %v2305
    %v2656 = vunpack.c.h.b16 %v2305
    %v2657 = vunpack.c.l.b16 %v2306
    %v2658 = vunpack.c.h.b16 %v2306
    %v2659 = vunpack.c.l.b16 %v2307
    %v2660 = vunpack.c.h.b16 %v2307
    %v2661 = vunpack.c.l.b16 %v2308
    %v2662 = vunpack.c.h.b16 %v2308
    %v2663 = vunpack.c.l.b16 %v2309
    %v2664 = vunpack.c.h.b16 %v2309
    %v2665 = vunpack.c.l.b16 %v2310
    %v2666 = vunpack.c.h.b16 %v2310
    %v2667 = vunpack.c.l.b16 %v2311
    %v2668 = vunpack.c.h.b16 %v2311
    %v2669 = vunpack.c.l.b16 %v2312
    %v2670 = vunpack.c.h.b16 %v2312
    %v2671 = vunpack.c.l.b16 %v2313
    %v2672 = vunpack.c.h.b16 %v2313
    %v2673 = vunpack.c.l.b16 %v2314
    %v2674 = vunpack.c.h.b16 %v2314
    %v2675 = vunpack.c.l.b16 %v2315
    %v2676 = vunpack.c.h.b16 %v2315
    %v2677 = vunpack.c.l.b16 %v2316
    %v2678 = vunpack.c.h.b16 %v2316
    %v2679 = vunpack.c.l.b16 %v2317
    %v2680 = vunpack.c.h.b16 %v2317
    %v2681 = vunpack.c.l.b16 %v2318
    %v2682 = vunpack.c.h.b16 %v2318
    %v2683 = vunpack.c.l.b16 %v2319
    %v2684 = vunpack.c.h.b16 %v2319
    %v2685 = vunpack.c.l.b16 %v2320
    %v2686 = vunpack.c.h.b16 %v2320
    %v2687 = vunpack.c.l.b16 %v2321
    %v2688 = vunpack.c.h.b16 %v2321
    %v2689 = vunpack.c.l.b16 %v2322
    %v2690 = vunpack.c.h.b16 %v2322
    %v2691 = vunpack.c.l.b16 %v2323
    %v2692 = vunpack.c.h.b16 %v2323
    %v2693 = vunpack.c.l.b16 %v2324
    %v2694 = vunpack.c.h.b16 %v2324
    %v2695 = vunpack.c.l.b16 %v2325
    %v2696 = vunpack.c.h.b16 %v2325
    %v2697 = vunpack.c.l.b16 %v2326
    %v2698 = vunpack.c.h.b16 %v2326
    %v2699 = vunpack.c.l.b16 %v2327
    %v2700 = vunpack.c.h.b16 %v2327
    %v2701 = vunpack.c.l.b16 %v2328
    %v2702 = vunpack.c.h.b16 %v2328
    %v2703 = vunpack.c.l.b16 %v2329
    %v2704 = vunpack.c.h.b16 %v2329
    %v2705 = vunpack.c.l.b16 %v2330
    %v2706 = vunpack.c.h.b16 %v2330
    %v2707 = vunpack.c.l.b16 %v2331
    %v2708 = vunpack.c.h.b16 %v2331
    %v2709 = vunpack.c.l.b16 %v2332
    %v2710 = vunpack.c.h.b16 %v2332
    %v2711 = vunpack.c.l.b16 %v2333
    %v2712 = vunpack.c.h.b16 %v2333
    %v2713 = vunpack.c.l.b16 %v2334
    %v2714 = vunpack.c.h.b16 %v2334
    %v2715 = vunpack.c.l.b16 %v2335
    %v2716 = vunpack.c.h.b16 %v2335
    %v2717 = vunpack.c.l.b16 %v2336
    %v2718 = vunpack.c.h.b16 %v2336
    %v2719 = vunpack.c.l.b16 %v2337
    %v2720 = vunpack.c.h.b16 %v2337
    %v2721 = vunpack.c.l.b16 %v2338
    %v2722 = vunpack.c.h.b16 %v2338
    %v2723 = vpack.c.b16 %v2471, %v2467
    %v2724 = vpack.c.b16 %v2472, %v2468
    %v2725 = vpack.c.b16 %v2473, %v2469
    %v2726 = vpack.c.b16 %v2474, %v2470
    %v2727 = vpack.c.b16 %v2479, %v2475
    %v2728 = vpack.c.b16 %v2480, %v2476
    %v2729 = vpack.c.b16 %v2481, %v2477
    %v2730 = vpack.c.b16 %v2482, %v2478
    %v2731 = vpack.c.b16 %v2487, %v2483
    %v2732 = vpack.c.b16 %v2488, %v2484
    %v2733 = vpack.c.b16 %v2489, %v2485
    %v2734 = vpack.c.b16 %v2490, %v2486
    %v2735 = vpack.c.b16 %v2495, %v2491
    %v2736 = vpack.c.b16 %v2496, %v2492
    %v2737 = vpack.c.b16 %v2497, %v2493
    %v2738 = vpack.c.b16 %v2498, %v2494
    %v2739 = vpack.c.b16 %v2503, %v2499
    %v2740 = vpack.c.b16 %v2504, %v2500
    %v2741 = vpack.c.b16 %v2505, %v2501
    %v2742 = vpack.c.b16 %v2506, %v2502
    %v2743 = vpack.c.b16 %v2511, %v2507
    %v2744 = vpack.c.b16 %v2512, %v2508
    %v2745 = vpack.c.b16 %v2513, %v2509
    %v2746 = vpack.c.b16 %v2514, %v2510
    %v2747 = vpack.c.b16 %v2519, %v2515
    %v2748 = vpack.c.b16 %v2520, %v2516
    %v2749 = vpack.c.b16 %v2521, %v2517
    %v2750 = vpack.c.b16 %v2522, %v2518
    %v2751 = vpack.c.b16 %v2527, %v2523
    %v2752 = vpack.c.b16 %v2528, %v2524
    %v2753 = vpack.c.b16 %v2529, %v2525
    %v2754 = vpack.c.b16 %v2530, %v2526
    %v2755 = vpack.c.b16 %v2535, %v2531
    %v2756 = vpack.c.b16 %v2536, %v2532
    %v2757 = vpack.c.b16 %v2537, %v2533
    %v2758 = vpack.c.b16 %v2538, %v2534
    %v2759 = vpack.c.b16 %v2543, %v2539
    %v2760 = vpack.c.b16 %v2544, %v2540
    %v2761 = vpack.c.b16 %v2545, %v2541
    %v2762 = vpack.c.b16 %v2546, %v2542
    %v2763 = vpack.c.b16 %v2551, %v2547
    %v2764 = vpack.c.b16 %v2552, %v2548
    %v2765 = vpack.c.b16 %v2553, %v2549
    %v2766 = vpack.c.b16 %v2554, %v2550
    %v2767 = vpack.c.b16 %v2559, %v2555
    %v2768 = vpack.c.b16 %v2560, %v2556
    %v2769 = vpack.c.b16 %v2561, %v2557
    %v2770 = vpack.c.b16 %v2562, %v2558
    %v2771 = vpack.c.b16 %v2567, %v2563
    %v2772 = vpack.c.b16 %v2568, %v2564
    %v2773 = vpack.c.b16 %v2569, %v2565
    %v2774 = vpack.c.b16 %v2570, %v2566
    %v2775 = vpack.c.b16 %v2575, %v2571
    %v2776 = vpack.c.b16 %v2576, %v2572
    %v2777 = vpack.c.b16 %v2577, %v2573
    %v2778 = vpack.c.b16 %v2578, %v2574
    %v2779 = vpack.c.b16 %v2583, %v2579
    %v2780 = vpack.c.b16 %v2584, %v2580
    %v2781 = vpack.c.b16 %v2585, %v2581
    %v2782 = vpack.c.b16 %v2586, %v2582
    %v2783 = vpack.c.b16 %v2591, %v2587
    %v2784 = vpack.c.b16 %v2592, %v2588
    %v2785 = vpack.c.b16 %v2593, %v2589
    %v2786 = vpack.c.b16 %v2594, %v2590
    %v2787 = vpack.c.b16 %v2599, %v2595
    %v2788 = vpack.c.b16 %v2600, %v2596
    %v2789 = vpack.c.b16 %v2601, %v2597
    %v2790 = vpack.c.b16 %v2602, %v2598
    %v2791 = vpack.c.b16 %v2607, %v2603
    %v2792 = vpack.c.b16 %v2608, %v2604
    %v2793 = vpack.c.b16 %v2609, %v2605
    %v2794 = vpack.c.b16 %v2610, %v2606
    %v2795 = vpack.c.b16 %v2615, %v2611
    %v2796 = vpack.c.b16 %v2616, %v2612
    %v2797 = vpack.c.b16 %v2617, %v2613
    %v2798 = vpack.c.b16 %v2618, %v2614
    %v2799 = vpack.c.b16 %v2623, %v2619
    %v2800 = vpack.c.b16 %v2624, %v2620
    %v2801 = vpack.c.b16 %v2625, %v2621
    %v2802 = vpack.c.b16 %v2626, %v2622
    %v2803 = vpack.c.b16 %v2631, %v2627
    %v2804 = vpack.c.b16 %v2632, %v2628
    %v2805 = vpack.c.b16 %v2633, %v2629
    %v2806 = vpack.c.b16 %v2634, %v2630
    %v2807 = vpack.c.b16 %v2639, %v2635
    %v2808 = vpack.c.b16 %v2640, %v2636
    %v2809 = vpack.c.b16 %v2641, %v2637
    %v2810 = vpack.c.b16 %v2642, %v2638
    %v2811 = vpack.c.b16 %v2647, %v2643
    %v2812 = vpack.c.b16 %v2648, %v2644
    %v2813 = vpack.c.b16 %v2649, %v2645
    %v2814 = vpack.c.b16 %v2650, %v2646
    %v2815 = vpack.c.b16 %v2655, %v2651
    %v2816 = vpack.c.b16 %v2656, %v2652
    %v2817 = vpack.c.b16 %v2657, %v2653
    %v2818 = vpack.c.b16 %v2658, %v2654
    %v2819 = vpack.c.b16 %v2663, %v2659
    %v2820 = vpack.c.b16 %v2664, %v2660
    %v2821 = vpack.c.b16 %v2665, %v2661
    %v2822 = vpack.c.b16 %v2666, %v2662
    %v2823 = vpack.c.b16 %v2671, %v2667
    %v2824 = vpack.c.b16 %v2672, %v2668
    %v2825 = vpack.c.b16 %v2673, %v2669
    %v2826 = vpack.c.b16 %v2674, %v2670
    %v2827 = vpack.c.b16 %v2679, %v2675
    %v2828 = vpack.c.b16 %v2680, %v2676
    %v2829 = vpack.c.b16 %v2681, %v2677
    %v2830 = vpack.c.b16 %v2682, %v2678
    %v2831 = vpack.c.b16 %v2687, %v2683
    %v2832 = vpack.c.b16 %v2688, %v2684
    %v2833 = vpack.c.b16 %v2689, %v2685
    %v2834 = vpack.c.b16 %v2690, %v2686
    %v2835 = vpack.c.b16 %v2695, %v2691
    %v2836 = vpack.c.b16 %v2696, %v2692
    %v2837 = vpack.c.b16 %v2697, %v2693
    %v2838 = vpack.c.b16 %v2698, %v2694
    %v2839 = vpack.c.b16 %v2703, %v2699
    %v2840 = vpack.c.b16 %v2704, %v2700
    %v2841 = vpack.c.b16 %v2705, %v2701
    %v2842 = vpack.c.b16 %v2706, %v2702
    %v2843 = vpack.c.b16 %v2711, %v2707
    %v2844 = vpack.c.b16 %v2712, %v2708
    %v2845 = vpack.c.b16 %v2713, %v2709
    %v2846 = vpack.c.b16 %v2714, %v2710
    %v2847 = vpack.c.b16 %v2719, %v2715
    %v2848 = vpack.c.b16 %v2720, %v2716
    %v2849 = vpack.c.b16 %v2721, %v2717
    %v2850 = vpack.c.b16 %v2722, %v2718
    %2979 = vmatprep.subr.bf16.mxu0 %v2724
    %2980 = vmatpush1.bf16.msra.mxu0 %v2723
    %2981 = vmatprep.subr.bf16.mxu0 %v2728
    %2982 = vmatpush1.bf16.msra.mxu0 %v2727
    %2983 = vmatprep.subr.bf16.mxu0 %v2732
    %2984 = vmatpush1.bf16.msra.mxu0 %v2731
    %2985 = vmatprep.subr.bf16.mxu0 %v2736
    %2986 = vmatpush1.bf16.msra.mxu0 %v2735
    %2987 = vmatprep.subr.bf16.mxu0 %v2740
    %2988 = vmatpush1.bf16.msra.mxu0 %v2739
    %2989 = vmatprep.subr.bf16.mxu0 %v2744
    %2990 = vmatpush1.bf16.msra.mxu0 %v2743
    %2991 = vmatprep.subr.bf16.mxu0 %v2748
    %2992 = vmatpush1.bf16.msra.mxu0 %v2747
    %2993 = vmatprep.subr.bf16.mxu0 %v2752
    %2994 = vmatpush1.bf16.msra.mxu0 %v2751
    %2995 = vmatprep.subr.bf16.mxu0 %v2756
    %2996 = vmatpush1.bf16.msra.mxu0 %v2755
    %2997 = vmatprep.subr.bf16.mxu0 %v2760
    %2998 = vmatpush1.bf16.msra.mxu0 %v2759
    %2999 = vmatprep.subr.bf16.mxu0 %v2764
    %3000 = vmatpush1.bf16.msra.mxu0 %v2763
    %3001 = vmatprep.subr.bf16.mxu0 %v2768
    %3002 = vmatpush1.bf16.msra.mxu0 %v2767
    %3003 = vmatprep.subr.bf16.mxu0 %v2772
    %3004 = vmatpush1.bf16.msra.mxu0 %v2771
    %3005 = vmatprep.subr.bf16.mxu0 %v2776
    %3006 = vmatpush1.bf16.msra.mxu0 %v2775
    %3007 = vmatprep.subr.bf16.mxu0 %v2780
    %3008 = vmatpush1.bf16.msra.mxu0 %v2779
    %3009 = vmatprep.subr.bf16.mxu0 %v2784
    %3010 = vmatpush1.bf16.msra.mxu0 %v2783
    %3011 = vmatprep.mubr.bf16.mxu0 %v2208
    %3012 = vmatmul.mubr.bf16.gmra.mrb[0].mxu0 %v2207
    %v3013 = vpop.f32.mrb[0].mxu0
    %v3014 = vadd.f32 0.0, %v3013
    %v3015 = vpop.f32.mrb[0].mxu0
    %v3016 = vadd.f32 0.0, %v3015
    %v3017 = vpop.f32.mrb[0].mxu0
    %v3018 = vpop.f32.mrb[0].mxu0
    %3019 = vdwg.mxu0
    %3020 = vmatprep.subr.bf16.mxu0 %v2788
    %3021 = vmatpush1.bf16.msra.mxu0 %v2787
    %3022 = vmatprep.subr.bf16.mxu0 %v2792
    %3023 = vmatpush1.bf16.msra.mxu0 %v2791
    %3024 = vmatprep.subr.bf16.mxu0 %v2796
    %3025 = vmatpush1.bf16.msra.mxu0 %v2795
    %3026 = vmatprep.subr.bf16.mxu0 %v2800
    %3027 = vmatpush1.bf16.msra.mxu0 %v2799
    %3028 = vmatprep.subr.bf16.mxu0 %v2804
    %3029 = vmatpush1.bf16.msra.mxu0 %v2803
    %3030 = vmatprep.subr.bf16.mxu0 %v2808
    %3031 = vmatpush1.bf16.msra.mxu0 %v2807
    %3032 = vmatprep.subr.bf16.mxu0 %v2812
    %3033 = vmatpush1.bf16.msra.mxu0 %v2811
    %3034 = vmatprep.subr.bf16.mxu0 %v2816
    %3035 = vmatpush1.bf16.msra.mxu0 %v2815
    %3036 = vmatprep.subr.bf16.mxu0 %v2820
    %3037 = vmatpush1.bf16.msra.mxu0 %v2819
    %3038 = vmatprep.subr.bf16.mxu0 %v2824
    %3039 = vmatpush1.bf16.msra.mxu0 %v2823
    %3040 = vmatprep.subr.bf16.mxu0 %v2828
    %3041 = vmatpush1.bf16.msra.mxu0 %v2827
    %3042 = vmatprep.subr.bf16.mxu0 %v2832
    %3043 = vmatpush1.bf16.msra.mxu0 %v2831
    %3044 = vmatprep.subr.bf16.mxu0 %v2836
    %3045 = vmatpush1.bf16.msra.mxu0 %v2835
    %3046 = vmatprep.subr.bf16.mxu0 %v2840
    %3047 = vmatpush1.bf16.msra.mxu0 %v2839
    %3048 = vmatprep.subr.bf16.mxu0 %v2844
    %3049 = vmatpush1.bf16.msra.mxu0 %v2843
    %3050 = vmatprep.subr.bf16.mxu0 %v2848
    %3051 = vmatpush1.bf16.msra.mxu0 %v2847
    %3052 = vmatprep.mubr.bf16.mxu0 %v2210
    %3053 = vmatmul.mubr.bf16.gmra.mrb[0].mxu0 %v2209
    %v3054 = vpop.f32.mrb[0].mxu0
    %v3055 = vadd.f32 %v3014, %v3054
    %v3056 = vpop.f32.mrb[0].mxu0
    %v3057 = vadd.f32 %v3016, %v3056
    %v3058 = vpop.f32.mrb[0].mxu0
    %v3059 = vpop.f32.mrb[0].mxu0
    %3060 = vdwg.mxu0
    %3061 = vmatprep.subr.bf16.mxu0 %v2726
    %3062 = vmatpush1.bf16.msra.mxu0 %v2725
    %3063 = vmatprep.subr.bf16.mxu0 %v2730
    %3064 = vmatpush1.bf16.msra.mxu0 %v2729
    %3065 = vmatprep.subr.bf16.mxu0 %v2734
    %3066 = vmatpush1.bf16.msra.mxu0 %v2733
    %3067 = vmatprep.subr.bf16.mxu0 %v2738
    %3068 = vmatpush1.bf16.msra.mxu0 %v2737
    %3069 = vmatprep.subr.bf16.mxu0 %v2742
    %3070 = vmatpush1.bf16.msra.mxu0 %v2741
    %3071 = vmatprep.subr.bf16.mxu0 %v2746
    %3072 = vmatpush1.bf16.msra.mxu0 %v2745
    %3073 = vmatprep.subr.bf16.mxu0 %v2750
    %3074 = vmatpush1.bf16.msra.mxu0 %v2749
    %3075 = vmatprep.subr.bf16.mxu0 %v2754
    %3076 = vmatpush1.bf16.msra.mxu0 %v2753
    %3077 = vmatprep.subr.bf16.mxu0 %v2758
    %3078 = vmatpush1.bf16.msra.mxu0 %v2757
    %3079 = vmatprep.subr.bf16.mxu0 %v2762
    %3080 = vmatpush1.bf16.msra.mxu0 %v2761
    %3081 = vmatprep.subr.bf16.mxu0 %v2766
    %3082 = vmatpush1.bf16.msra.mxu0 %v2765
    %3083 = vmatprep.subr.bf16.mxu0 %v2770
    %3084 = vmatpush1.bf16.msra.mxu0 %v2769
    %3085 = vmatprep.subr.bf16.mxu0 %v2774
    %3086 = vmatpush1.bf16.msra.mxu0 %v2773
    %3087 = vmatprep.subr.bf16.mxu0 %v2778
    %3088 = vmatpush1.bf16.msra.mxu0 %v2777
    %3089 = vmatprep.subr.bf16.mxu0 %v2782
    %3090 = vmatpush1.bf16.msra.mxu0 %v2781
    %3091 = vmatprep.subr.bf16.mxu0 %v2786
    %3092 = vmatpush1.bf16.msra.mxu0 %v2785
    %3093 = vmatprep.mubr.bf16.mxu0 %v2208
    %3094 = vmatmul.mubr.bf16.gmra.mrb[0].mxu0 %v2207
    %v3095 = vpop.f32.mrb[0].mxu0
    %v3096 = vadd.f32 0.0, %v3095
    %v3097 = vpop.f32.mrb[0].mxu0
    %v3098 = vadd.f32 0.0, %v3097
    %v3099 = vpop.f32.mrb[0].mxu0
    %v3100 = vpop.f32.mrb[0].mxu0
    %3101 = vdwg.mxu0
    %3102 = vmatprep.subr.bf16.mxu0 %v2790
    %3103 = vmatpush1.bf16.msra.mxu0 %v2789
    %3104 = vmatprep.subr.bf16.mxu0 %v2794
    %3105 = vmatpush1.bf16.msra.mxu0 %v2793
    %3106 = vmatprep.subr.bf16.mxu0 %v2798
    %3107 = vmatpush1.bf16.msra.mxu0 %v2797
    %3108 = vmatprep.subr.bf16.mxu0 %v2802
    %3109 = vmatpush1.bf16.msra.mxu0 %v2801
    %3110 = vmatprep.subr.bf16.mxu0 %v2806
    %3111 = vmatpush1.bf16.msra.mxu0 %v2805
    %3112 = vmatprep.subr.bf16.mxu0 %v2810
    %3113 = vmatpush1.bf16.msra.mxu0 %v2809
    %3114 = vmatprep.subr.bf16.mxu0 %v2814
    %3115 = vmatpush1.bf16.msra.mxu0 %v2813
    %3116 = vmatprep.subr.bf16.mxu0 %v2818
    %3117 = vmatpush1.bf16.msra.mxu0 %v2817
    %3118 = vmatprep.subr.bf16.mxu0 %v2822
    %3119 = vmatpush1.bf16.msra.mxu0 %v2821
    %3120 = vmatprep.subr.bf16.mxu0 %v2826
    %3121 = vmatpush1.bf16.msra.mxu0 %v2825
    %3122 = vmatprep.subr.bf16.mxu0 %v2830
    %3123 = vmatpush1.bf16.msra.mxu0 %v2829
    %3124 = vmatprep.subr.bf16.mxu0 %v2834
    %3125 = vmatpush1.bf16.msra.mxu0 %v2833
    %3126 = vmatprep.subr.bf16.mxu0 %v2838
    %3127 = vmatpush1.bf16.msra.mxu0 %v2837
    %3128 = vmatprep.subr.bf16.mxu0 %v2842
    %3129 = vmatpush1.bf16.msra.mxu0 %v2841
    %3130 = vmatprep.subr.bf16.mxu0 %v2846
    %3131 = vmatpush1.bf16.msra.mxu0 %v2845
    %3132 = vmatprep.subr.bf16.mxu0 %v2850
    %3133 = vmatpush1.bf16.msra.mxu0 %v2849
    %3134 = vmatprep.mubr.bf16.mxu0 %v2210
    %3135 = vmatmul.mubr.bf16.gmra.mrb[0].mxu0 %v2209
    %v3136 = vpop.f32.mrb[0].mxu0
    %v3137 = vadd.f32 %v3096, %v3136
    %v3138 = vpop.f32.mrb[0].mxu0
    %v3139 = vadd.f32 %v3098, %v3138
    %v3140 = vpop.f32.mrb[0].mxu0
    %v3141 = vpop.f32.mrb[0].mxu0
    %3142 = vdwg.mxu0
    %s3143 = scalar_lea.vmem %s7, 44
    %v3144 = vld [vmem:[%s3143] ss:$4 sm:$0xf]
    %s3145 = scalar_lea.vmem %s7, 45
    %v3146 = vld [vmem:[%s3145] ss:$4 sm:$0xf]
    %v3147 = vrot.slane %v3055, 4
    %v3148 = vadd.f32 %v3055, %v3147
    %v3149 = vrot.slane %v3148, 2
    %v3150 = vadd.f32 %v3148, %v3149
    %v3151 = vrot.slane %v3150, 1
    %v3152 = vadd.f32 %v3150, %v3151
    %v3153 = vrot.slane %v3057, 4
    %v3154 = vadd.f32 %v3057, %v3153
    %v3155 = vrot.slane %v3154, 2
    %v3156 = vadd.f32 %v3154, %v3155
    %v3157 = vrot.slane %v3156, 1
    %v3158 = vadd.f32 %v3156, %v3157
    %v3159 = vrot.slane %v3137, 4
    %v3160 = vadd.f32 %v3137, %v3159
    %v3161 = vrot.slane %v3160, 2
    %v3162 = vadd.f32 %v3160, %v3161
    %v3163 = vrot.slane %v3162, 1
    %v3164 = vadd.f32 %v3162, %v3163
    %v3165 = vrot.slane %v3139, 4
    %v3166 = vadd.f32 %v3139, %v3165
    %v3167 = vrot.slane %v3166, 2
    %v3168 = vadd.f32 %v3166, %v3167
    %v3169 = vrot.slane %v3168, 1
    %v3170 = vadd.f32 %v3168, %v3169
    %v3171 = vmul.f32 %v3152, %v142
    %v3172 = vmul.f32 %v3158, %v142
    %v3173 = vmul.f32 %v3164, %v142
    %v3174 = vmul.f32 %v3170, %v142
    %v3175 = vsub.f32 %v3055, %v3171
    %v3176 = vsub.f32 %v3057, %v3172
    %v3177 = vsub.f32 %v3137, %v3173
    %v3178 = vsub.f32 %v3139, %v3174
    %v3179 = vmul.f32 %v3175, %v3175
    %v3180 = vmul.f32 %v3176, %v3176
    %v3181 = vmul.f32 %v3177, %v3177
    %v3182 = vmul.f32 %v3178, %v3178
    %v3183 = vrot.slane %v3179, 4
    %v3184 = vadd.f32 %v3179, %v3183
    %v3185 = vrot.slane %v3184, 2
    %v3186 = vadd.f32 %v3184, %v3185
    %v3187 = vrot.slane %v3186, 1
    %v3188 = vadd.f32 %v3186, %v3187
    %v3189 = vrot.slane %v3180, 4
    %v3190 = vadd.f32 %v3180, %v3189
    %v3191 = vrot.slane %v3190, 2
    %v3192 = vadd.f32 %v3190, %v3191
    %v3193 = vrot.slane %v3192, 1
    %v3194 = vadd.f32 %v3192, %v3193
    %v3195 = vrot.slane %v3181, 4
    %v3196 = vadd.f32 %v3181, %v3195
    %v3197 = vrot.slane %v3196, 2
    %v3198 = vadd.f32 %v3196, %v3197
    %v3199 = vrot.slane %v3198, 1
    %v3200 = vadd.f32 %v3198, %v3199
    %v3201 = vrot.slane %v3182, 4
    %v3202 = vadd.f32 %v3182, %v3201
    %v3203 = vrot.slane %v3202, 2
    %v3204 = vadd.f32 %v3202, %v3203
    %v3205 = vrot.slane %v3204, 1
    %v3206 = vadd.f32 %v3204, %v3205
    %v3207 = vmul.f32 %v3188, %v142
    %v3208 = vmul.f32 %v3194, %v142
    %v3209 = vmul.f32 %v3200, %v142
    %v3210 = vmul.f32 %v3206, %v142
    %v3211 = vadd.f32 %v3207, 1e-05
    %v3212 = vadd.f32 %v3208, 1e-05
    %v3213 = vadd.f32 %v3209, 1e-05
    %v3214 = vadd.f32 %v3210, 1e-05
    %v3215 = vrsqrt.pop %v3211
    %v3216 = vrsqrt.pop %v3212
    %v3217 = vrsqrt.pop %v3213
    %v3218 = vrsqrt.pop %v3214
    %v3223 = vcombine.low %v3215, %v3216
    %v3224 = vcombine.low %v3217, %v3218
    %v3226 = vunpack.c.l.s4 1966171168
    %v3227 = vunpack.c.0.s8 %v3226
    %v3228 = vlaneseq
    %v3229 = vshrl.u32 %v3228, 7
    %v3230 = vsub.s32 %v3227, %v3229
    %v3231 = vrot.slane %v3223, %v3230
    %v3233 = vunpack.c.l.s4 1966171168
    %v3234 = vunpack.c.0.s8 %v3233
    %v3235 = vlaneseq
    %v3236 = vshrl.u32 %v3235, 7
    %v3237 = vsub.s32 %v3234, %v3236
    %v3238 = vrot.slane %v3224, %v3237
    %v3239 = vcombine.low %v3231, %v3238
    %v3241 = vunpack.c.l.s4 1966171168
    %v3242 = vunpack.c.0.s8 %v3241
    %v3243 = vlaneseq
    %v3244 = vshrl.u32 %v3243, 7
    %v3245 = vsub.s32 %v3242, %v3244
    %v3246 = vrot.slane %v3239, %v3245
    %v3248 = vmul.f32 %v3144, %v3246
    %v3250 = vlaneseq
    %v3251 = vshrl.u32 %v3250, 7
    %v3252 = vsub.s32 0, %v3251
    %v3253 = vrot.slane %v3248, %v3252
    %v3254 = vlaneseq
    %v3255 = vshrl.u32 %v3254, 7
    %v3256 = vsub.s32 1, %v3255
    %v3257 = vrot.slane %v3248, %v3256
    %v3258 = vlaneseq
    %v3259 = vshrl.u32 %v3258, 7
    %v3260 = vsub.s32 2, %v3259
    %v3261 = vrot.slane %v3248, %v3260
    %v3262 = vlaneseq
    %v3263 = vshrl.u32 %v3262, 7
    %v3264 = vsub.s32 3, %v3263
    %v3265 = vrot.slane %v3248, %v3264
    %v3270 = vmul.f32 %v3171, %v3253
    %v3271 = vmul.f32 %v3172, %v3257
    %v3272 = vmul.f32 %v3173, %v3261
    %v3273 = vmul.f32 %v3174, %v3265
    %v3278 = vcombine.low %v3270, %v3271
    %v3279 = vcombine.low %v3272, %v3273
    %v3281 = vunpack.c.l.s4 1966171168
    %v3282 = vunpack.c.0.s8 %v3281
    %v3283 = vlaneseq
    %v3284 = vshrl.u32 %v3283, 7
    %v3285 = vsub.s32 %v3282, %v3284
    %v3286 = vrot.slane %v3278, %v3285
    %v3288 = vunpack.c.l.s4 1966171168
    %v3289 = vunpack.c.0.s8 %v3288
    %v3290 = vlaneseq
    %v3291 = vshrl.u32 %v3290, 7
    %v3292 = vsub.s32 %v3289, %v3291
    %v3293 = vrot.slane %v3279, %v3292
    %v3294 = vcombine.low %v3286, %v3293
    %v3296 = vunpack.c.l.s4 1966171168
    %v3297 = vunpack.c.0.s8 %v3296
    %v3298 = vlaneseq
    %v3299 = vshrl.u32 %v3298, 7
    %v3300 = vsub.s32 %v3297, %v3299
    %v3301 = vrot.slane %v3294, %v3300
    %v3303 = vsub.f32 %v3146, %v3301
    %v3304 = vmul.f32 %v3055, %v3253
    %v3305 = vmul.f32 %v3057, %v3257
    %v3306 = vmul.f32 %v3137, %v3261
    %v3307 = vmul.f32 %v3139, %v3265
    %v3309 = vlaneseq
    %v3310 = vshrl.u32 %v3309, 7
    %v3311 = vsub.s32 0, %v3310
    %v3312 = vrot.slane %v3303, %v3311
    %v3313 = vlaneseq
    %v3314 = vshrl.u32 %v3313, 7
    %v3315 = vsub.s32 1, %v3314
    %v3316 = vrot.slane %v3303, %v3315
    %v3317 = vlaneseq
    %v3318 = vshrl.u32 %v3317, 7
    %v3319 = vsub.s32 2, %v3318
    %v3320 = vrot.slane %v3303, %v3319
    %v3321 = vlaneseq
    %v3322 = vshrl.u32 %v3321, 7
    %v3323 = vsub.s32 3, %v3322
    %v3324 = vrot.slane %v3303, %v3323
    %v3329 = vadd.f32 %v3304, %v3312
    %v3330 = vadd.f32 %v3305, %v3316
    %v3331 = vadd.f32 %v3306, %v3320
    %v3332 = vadd.f32 %v3307, %v3324
    %v3333 = vmax.f32 %v3329, 0.0
    %v3334 = vmax.f32 %v3330, 0.0
    %v3335 = vmax.f32 %v3331, 0.0
    %v3336 = vmax.f32 %v3332, 0.0
    %v3337 = vpack.c.bf16 %v3333, %v3333
    %v3338 = vpack.c.bf16 %v3334, %v3334
    %v3339 = vpack.c.bf16 %v3335, %v3335
    %v3340 = vpack.c.bf16 %v3336, %v3336
    %v3341 = vld [vmem:[%s7 + $0x2] sm:$0x1]
    %v3342 = vld [vmem:[%s6] sm:$0xf]
    %v3343 = vld [vmem:[%s6 + $0x4] sm:$0xf]
    %v3344 = vld [vmem:[%s6 + $0x8] sm:$0xf]
    %v3345 = vld [vmem:[%s6 + $0xc] sm:$0xf]
    %v3346 = vld [vmem:[%s6 + $0x10] sm:$0xf]
    %v3347 = vld [vmem:[%s6 + $0x14] sm:$0xf]
    %v3348 = vld [vmem:[%s6 + $0x18] sm:$0xf]
    %v3349 = vld [vmem:[%s6 + $0x1c] sm:$0xf]
    %v3350 = vld [vmem:[%s6 + $0x20] sm:$0xf]
    %v3351 = vld [vmem:[%s6 + $0x24] sm:$0xf]
    %v3352 = vld [vmem:[%s6 + $0x28] sm:$0xf]
    %v3353 = vld [vmem:[%s6 + $0x2c] sm:$0xf]
    %v3354 = vld [vmem:[%s6 + $0x30] sm:$0xf]
    %v3355 = vld [vmem:[%s6 + $0x34] sm:$0xf]
    %v3356 = vld [vmem:[%s6 + $0x38] sm:$0xf]
    %v3357 = vld [vmem:[%s6 + $0x3c] sm:$0xf]
    %v3358 = vld [vmem:[%s6 + $0x40] sm:$0xf]
    %v3359 = vld [vmem:[%s6 + $0x44] sm:$0xf]
    %v3360 = vld [vmem:[%s6 + $0x48] sm:$0xf]
    %v3361 = vld [vmem:[%s6 + $0x4c] sm:$0xf]
    %v3362 = vld [vmem:[%s6 + $0x50] sm:$0xf]
    %v3363 = vld [vmem:[%s6 + $0x54] sm:$0xf]
    %v3364 = vld [vmem:[%s6 + $0x58] sm:$0xf]
    %v3365 = vld [vmem:[%s6 + $0x5c] sm:$0xf]
    %v3366 = vld [vmem:[%s6 + $0x60] sm:$0xf]
    %v3367 = vld [vmem:[%s6 + $0x64] sm:$0xf]
    %v3368 = vld [vmem:[%s6 + $0x68] sm:$0xf]
    %v3369 = vld [vmem:[%s6 + $0x6c] sm:$0xf]
    %v3370 = vld [vmem:[%s6 + $0x70] sm:$0xf]
    %v3371 = vld [vmem:[%s6 + $0x74] sm:$0xf]
    %v3372 = vld [vmem:[%s6 + $0x78] sm:$0xf]
    %v3373 = vld [vmem:[%s6 + $0x7c] sm:$0xf]
    %v3374 = vld [vmem:[%s6 + $0x80] sm:$0xf]
    %v3375 = vld [vmem:[%s6 + $0x84] sm:$0xf]
    %v3376 = vld [vmem:[%s6 + $0x88] sm:$0xf]
    %v3377 = vld [vmem:[%s6 + $0x8c] sm:$0xf]
    %v3378 = vld [vmem:[%s6 + $0x90] sm:$0xf]
    %v3379 = vld [vmem:[%s6 + $0x94] sm:$0xf]
    %v3380 = vld [vmem:[%s6 + $0x98] sm:$0xf]
    %v3381 = vld [vmem:[%s6 + $0x9c] sm:$0xf]
    %v3382 = vld [vmem:[%s6 + $0xa0] sm:$0xf]
    %v3383 = vld [vmem:[%s6 + $0xa4] sm:$0xf]
    %v3384 = vld [vmem:[%s6 + $0xa8] sm:$0xf]
    %v3385 = vld [vmem:[%s6 + $0xac] sm:$0xf]
    %v3386 = vld [vmem:[%s6 + $0xb0] sm:$0xf]
    %v3387 = vld [vmem:[%s6 + $0xb4] sm:$0xf]
    %v3388 = vld [vmem:[%s6 + $0xb8] sm:$0xf]
    %v3389 = vld [vmem:[%s6 + $0xbc] sm:$0xf]
    %v3390 = vld [vmem:[%s6 + $0xc0] sm:$0xf]
    %v3391 = vld [vmem:[%s6 + $0xc4] sm:$0xf]
    %v3392 = vld [vmem:[%s6 + $0xc8] sm:$0xf]
    %v3393 = vld [vmem:[%s6 + $0xcc] sm:$0xf]
    %v3394 = vld [vmem:[%s6 + $0xd0] sm:$0xf]
    %v3395 = vld [vmem:[%s6 + $0xd4] sm:$0xf]
    %v3396 = vld [vmem:[%s6 + $0xd8] sm:$0xf]
    %v3397 = vld [vmem:[%s6 + $0xdc] sm:$0xf]
    %v3398 = vld [vmem:[%s6 + $0xe0] sm:$0xf]
    %v3399 = vld [vmem:[%s6 + $0xe4] sm:$0xf]
    %v3400 = vld [vmem:[%s6 + $0xe8] sm:$0xf]
    %v3401 = vld [vmem:[%s6 + $0xec] sm:$0xf]
    %v3402 = vld [vmem:[%s6 + $0xf0] sm:$0xf]
    %v3403 = vld [vmem:[%s6 + $0xf4] sm:$0xf]
    %v3404 = vld [vmem:[%s6 + $0xf8] sm:$0xf]
    %v3405 = vld [vmem:[%s6 + $0xfc] sm:$0xf]
    %v3406 = vlaneseq
    %v3407 = vshrl.u32 %v3406, 7
    %v3408 = vsub.s32 0, %v3407
    %v3409 = vrot.slane %v3341, %v3408
    %v3474 = vunpack.c.l.b16 %v3342
    %v3475 = vunpack.c.l.b16 %v3343
    %v3476 = vunpack.c.l.b16 %v3344
    %v3477 = vunpack.c.l.b16 %v3345
    %v3478 = vunpack.c.l.b16 %v3346
    %v3479 = vunpack.c.l.b16 %v3347
    %v3480 = vunpack.c.l.b16 %v3348
    %v3481 = vunpack.c.l.b16 %v3349
    %v3482 = vunpack.c.l.b16 %v3350
    %v3483 = vunpack.c.l.b16 %v3351
    %v3484 = vunpack.c.l.b16 %v3352
    %v3485 = vunpack.c.l.b16 %v3353
    %v3486 = vunpack.c.l.b16 %v3354
    %v3487 = vunpack.c.l.b16 %v3355
    %v3488 = vunpack.c.l.b16 %v3356
    %v3489 = vunpack.c.l.b16 %v3357
    %v3490 = vunpack.c.l.b16 %v3358
    %v3491 = vunpack.c.l.b16 %v3359
    %v3492 = vunpack.c.l.b16 %v3360
    %v3493 = vunpack.c.l.b16 %v3361
    %v3494 = vunpack.c.l.b16 %v3362
    %v3495 = vunpack.c.l.b16 %v3363
    %v3496 = vunpack.c.l.b16 %v3364
    %v3497 = vunpack.c.l.b16 %v3365
    %v3498 = vunpack.c.l.b16 %v3366
    %v3499 = vunpack.c.l.b16 %v3367
    %v3500 = vunpack.c.l.b16 %v3368
    %v3501 = vunpack.c.l.b16 %v3369
    %v3502 = vunpack.c.l.b16 %v3370
    %v3503 = vunpack.c.l.b16 %v3371
    %v3504 = vunpack.c.l.b16 %v3372
    %v3505 = vunpack.c.l.b16 %v3373
    %v3506 = vunpack.c.l.b16 %v3374
    %v3507 = vunpack.c.l.b16 %v3375
    %v3508 = vunpack.c.l.b16 %v3376
    %v3509 = vunpack.c.l.b16 %v3377
    %v3510 = vunpack.c.l.b16 %v3378
    %v3511 = vunpack.c.l.b16 %v3379
    %v3512 = vunpack.c.l.b16 %v3380
    %v3513 = vunpack.c.l.b16 %v3381
    %v3514 = vunpack.c.l.b16 %v3382
    %v3515 = vunpack.c.l.b16 %v3383
    %v3516 = vunpack.c.l.b16 %v3384
    %v3517 = vunpack.c.l.b16 %v3385
    %v3518 = vunpack.c.l.b16 %v3386
    %v3519 = vunpack.c.l.b16 %v3387
    %v3520 = vunpack.c.l.b16 %v3388
    %v3521 = vunpack.c.l.b16 %v3389
    %v3522 = vunpack.c.l.b16 %v3390
    %v3523 = vunpack.c.l.b16 %v3391
    %v3524 = vunpack.c.l.b16 %v3392
    %v3525 = vunpack.c.l.b16 %v3393
    %v3526 = vunpack.c.l.b16 %v3394
    %v3527 = vunpack.c.l.b16 %v3395
    %v3528 = vunpack.c.l.b16 %v3396
    %v3529 = vunpack.c.l.b16 %v3397
    %v3530 = vunpack.c.l.b16 %v3398
    %v3531 = vunpack.c.l.b16 %v3399
    %v3532 = vunpack.c.l.b16 %v3400
    %v3533 = vunpack.c.l.b16 %v3401
    %v3534 = vunpack.c.l.b16 %v3402
    %v3535 = vunpack.c.l.b16 %v3403
    %v3536 = vunpack.c.l.b16 %v3404
    %v3537 = vunpack.c.l.b16 %v3405
    %v3538 = vpack.c.b16 %v3475, %v3474
    %v3539 = vpack.c.b16 %v3477, %v3476
    %v3540 = vpack.c.b16 %v3479, %v3478
    %v3541 = vpack.c.b16 %v3481, %v3480
    %v3542 = vpack.c.b16 %v3483, %v3482
    %v3543 = vpack.c.b16 %v3485, %v3484
    %v3544 = vpack.c.b16 %v3487, %v3486
    %v3545 = vpack.c.b16 %v3489, %v3488
    %v3546 = vpack.c.b16 %v3491, %v3490
    %v3547 = vpack.c.b16 %v3493, %v3492
    %v3548 = vpack.c.b16 %v3495, %v3494
    %v3549 = vpack.c.b16 %v3497, %v3496
    %v3550 = vpack.c.b16 %v3499, %v3498
    %v3551 = vpack.c.b16 %v3501, %v3500
    %v3552 = vpack.c.b16 %v3503, %v3502
    %v3553 = vpack.c.b16 %v3505, %v3504
    %v3554 = vpack.c.b16 %v3507, %v3506
    %v3555 = vpack.c.b16 %v3509, %v3508
    %v3556 = vpack.c.b16 %v3511, %v3510
    %v3557 = vpack.c.b16 %v3513, %v3512
    %v3558 = vpack.c.b16 %v3515, %v3514
    %v3559 = vpack.c.b16 %v3517, %v3516
    %v3560 = vpack.c.b16 %v3519, %v3518
    %v3561 = vpack.c.b16 %v3521, %v3520
    %v3562 = vpack.c.b16 %v3523, %v3522
    %v3563 = vpack.c.b16 %v3525, %v3524
    %v3564 = vpack.c.b16 %v3527, %v3526
    %v3565 = vpack.c.b16 %v3529, %v3528
    %v3566 = vpack.c.b16 %v3531, %v3530
    %v3567 = vpack.c.b16 %v3533, %v3532
    %v3568 = vpack.c.b16 %v3535, %v3534
    %v3569 = vpack.c.b16 %v3537, %v3536
    %3602 = vmatprep.subr.bf16.mxu0 0
    %3603 = vmatpush1.bf16.msra.mxu0 %v3538
    %3604 = vmatprep.subr.bf16.mxu0 0
    %3605 = vmatpush1.bf16.msra.mxu0 %v3539
    %3606 = vmatprep.subr.bf16.mxu0 0
    %3607 = vmatpush1.bf16.msra.mxu0 %v3540
    %3608 = vmatprep.subr.bf16.mxu0 0
    %3609 = vmatpush1.bf16.msra.mxu0 %v3541
    %3610 = vmatprep.subr.bf16.mxu0 0
    %3611 = vmatpush1.bf16.msra.mxu0 %v3542
    %3612 = vmatprep.subr.bf16.mxu0 0
    %3613 = vmatpush1.bf16.msra.mxu0 %v3543
    %3614 = vmatprep.subr.bf16.mxu0 0
    %3615 = vmatpush1.bf16.msra.mxu0 %v3544
    %3616 = vmatprep.subr.bf16.mxu0 0
    %3617 = vmatpush1.bf16.msra.mxu0 %v3545
    %3618 = vmatprep.subr.bf16.mxu0 0
    %3619 = vmatpush1.bf16.msra.mxu0 %v3546
    %3620 = vmatprep.subr.bf16.mxu0 0
    %3621 = vmatpush1.bf16.msra.mxu0 %v3547
    %3622 = vmatprep.subr.bf16.mxu0 0
    %3623 = vmatpush1.bf16.msra.mxu0 %v3548
    %3624 = vmatprep.subr.bf16.mxu0 0
    %3625 = vmatpush1.bf16.msra.mxu0 %v3549
    %3626 = vmatprep.subr.bf16.mxu0 0
    %3627 = vmatpush1.bf16.msra.mxu0 %v3550
    %3628 = vmatprep.subr.bf16.mxu0 0
    %3629 = vmatpush1.bf16.msra.mxu0 %v3551
    %3630 = vmatprep.subr.bf16.mxu0 0
    %3631 = vmatpush1.bf16.msra.mxu0 %v3552
    %3632 = vmatprep.subr.bf16.mxu0 0
    %3633 = vmatpush1.bf16.msra.mxu0 %v3553
    %3634 = vmatprep.mubr.bf16.mxu0 %v3338
    %3635 = vmatmul.mubr.bf16.gmra.mrb[0].mxu0 %v3337
    %v3636 = vpop.f32.mrb[0].mxu0
    %v3637 = vadd.f32 %v3409, %v3636
    %v3638 = vpop.f32.mrb[0].mxu0
    %v3639 = vpop.f32.mrb[0].mxu0
    %v3640 = vpop.f32.mrb[0].mxu0
    %3641 = vdwg.mxu0
    %3642 = vmatprep.subr.bf16.mxu0 0
    %3643 = vmatpush1.bf16.msra.mxu0 %v3554
    %3644 = vmatprep.subr.bf16.mxu0 0
    %3645 = vmatpush1.bf16.msra.mxu0 %v3555
    %3646 = vmatprep.subr.bf16.mxu0 0
    %3647 = vmatpush1.bf16.msra.mxu0 %v3556
    %3648 = vmatprep.subr.bf16.mxu0 0
    %3649 = vmatpush1.bf16.msra.mxu0 %v3557
    %3650 = vmatprep.subr.bf16.mxu0 0
    %3651 = vmatpush1.bf16.msra.mxu0 %v3558
    %3652 = vmatprep.subr.bf16.mxu0 0
    %3653 = vmatpush1.bf16.msra.mxu0 %v3559
    %3654 = vmatprep.subr.bf16.mxu0 0
    %3655 = vmatpush1.bf16.msra.mxu0 %v3560
    %3656 = vmatprep.subr.bf16.mxu0 0
    %3657 = vmatpush1.bf16.msra.mxu0 %v3561
    %3658 = vmatprep.subr.bf16.mxu0 0
    %3659 = vmatpush1.bf16.msra.mxu0 %v3562
    %3660 = vmatprep.subr.bf16.mxu0 0
    %3661 = vmatpush1.bf16.msra.mxu0 %v3563
    %3662 = vmatprep.subr.bf16.mxu0 0
    %3663 = vmatpush1.bf16.msra.mxu0 %v3564
    %3664 = vmatprep.subr.bf16.mxu0 0
    %3665 = vmatpush1.bf16.msra.mxu0 %v3565
    %3666 = vmatprep.subr.bf16.mxu0 0
    %3667 = vmatpush1.bf16.msra.mxu0 %v3566
    %3668 = vmatprep.subr.bf16.mxu0 0
    %3669 = vmatpush1.bf16.msra.mxu0 %v3567
    %3670 = vmatprep.subr.bf16.mxu0 0
    %3671 = vmatpush1.bf16.msra.mxu0 %v3568
    %3672 = vmatprep.subr.bf16.mxu0 0
    %3673 = vmatpush1.bf16.msra.mxu0 %v3569
    %3674 = vmatprep.mubr.bf16.mxu0 %v3340
    %3675 = vmatmul.mubr.bf16.gmra.mrb[0].mxu0 %v3339
    %v3676 = vpop.f32.mrb[0].mxu0
    %v3677 = vadd.f32 %v3637, %v3676
    %v3678 = vpop.f32.mrb[0].mxu0
    %v3679 = vpop.f32.mrb[0].mxu0
    %v3680 = vpop.f32.mrb[0].mxu0
    %3681 = vdwg.mxu0
    %vm3682 = vcmask 523264
    %3683 = vst.msk [vmem:[#allocation8] sm:$0xff] %vm3682, %v3677
    // Predicated region
    $region46: #{tpu_custom_call.1} parent=1 // pred_check
      _
    $region47: #{tpu_custom_call.1} parent=1 // pred_check_branch
      %3685 = sbr.rel (0) target = $region49
    $region48: #{tpu_custom_call.1} parent=1 // pred_region
      %s3687 = ssub.s32 128, 128
      %3688 = vsyncadd [#allocation4], %s3687
      %s3690 = sshll.u32 [#allocation8], 4
      %s3691 = int_to_ptr.vmem [resolvable:$true] %s3690
      %3693 = dma.vmem_to_hbm [thread:$0]  %s3691, 128, %s8, [#allocation4]
    $region49: #{tpu_custom_call.1} parent=1 // pred_fallthru
      _
    // Predicated region
    $region50: #{tpu_custom_call.1} parent=1 // pred_check
      _
    $region51: #{tpu_custom_call.1} parent=1 // pred_check_branch
      %3695 = sbr.rel (0) target = $region53
    $region52: #{tpu_custom_call.1} parent=1 // pred_region
      %3696 = dma.done [#allocation4], 128
    $region53: #{tpu_custom_call.1} parent=1 // pred_fallthru
      _
    %3697 = vsyncpa [#allocation3], 1
    %3698 = vsyncpa [#allocation6], 1
    %3699 = vsyncpa [#allocation4], 1

</llo_original>
